<compile_context>
chip_gen: v5e
topology: v5e:2x2
jax: 0.10.0
libtpu: 0.0.40
codegen_flags: <defaults>
</compile_context>

<pallas_src>
import numpy as np
import jax
import jax.numpy as jnp
from jax import lax
from jax.experimental import pallas as pl
from jax.experimental.pallas import tpu as pltpu


# --------------------------------------------------------------------------
# In-kernel helpers (operate on (H*W, C) values, rows ordered m = h*W + w)
# --------------------------------------------------------------------------
def _conv3x3_relu(act, col_ref, w_ref, b_ref, H, W, Cin):
    """act: (H*W, Cin) value.  Returns relu(conv3x3(act) + b) as (H*W, Cout).

    Builds the (H*W, 9*Cin) im2col buffer in VMEM scratch via 9 statically
    shifted copies of `act`.  Conv padding=1 is realized by (a) rows the
    shifted copy never touches (stay zero) and (b) per-row w-boundary masks
    that zero taps which would wrap around a row edge.
    """
    M = H * W
    # w-coordinate of every flat row m = h*W + w: ONE iota per layer, hoisted
    # out of the 9-tap loop; broadcast over lanes at the use sites.
    wcoord = lax.broadcasted_iota(jnp.int32, (M, 1), 0) % W
    left_ok = wcoord >= 1           # tap with ow == -1 stays inside the row
    right_ok = wcoord <= W - 2      # tap with ow == +1 stays inside the row

    col_ref[...] = jnp.zeros_like(col_ref)
    for dh in range(3):
        for dw in range(3):
            oh, ow = dh - 1, dw - 1
            s = oh * W + ow                    # flat row shift of this tap
            t = dh * 3 + dw
            lo_d = max(0, -s)                  # first destination row written
            hi_d = M - max(0, s)               # one past last destination row
            lo_s = max(0, s)                   # first source row read
            n = hi_d - lo_d
            src = act[lo_s:lo_s + n, :]        # static contiguous slice
            if ow == -1:
                src = jnp.where(left_ok[lo_d:hi_d], src, 0.0)
            elif ow == 1:
                src = jnp.where(right_ok[lo_d:hi_d], src, 0.0)
            col_ref[lo_d:hi_d, t * Cin:(t + 1) * Cin] = src

    y = jnp.dot(col_ref[...], w_ref[...], preferred_element_type=jnp.float32)
    return jnp.maximum(y + b_ref[...], 0.0)    # (H*W, Cout)


def _maxpool2x2(y, sel, W):
    """y: (H*W, C) value, sel: precomputed 0/1 selection (H/2*W/2, H*W-W-1)."""
    M = y.shape[0]
    a = jnp.maximum(y[:M - W, :], y[W:, :])    # vertical pair max
    b = jnp.maximum(a[:-1, :], a[1:, :])       # horizontal pair max
    # MXU row-selection keeps the op lane/sublane friendly (no strided slices).
    return jnp.dot(sel, b, preferred_element_type=jnp.float32)


def _pool_select(H, W):
    """0/1 matrix picking rows m = 2*i*W + 2*j out of the pair-maxed buffer."""
    H2, W2 = H // 2, W // 2
    Mb = H * W - W - 1
    sel = np.zeros((H2 * W2, Mb), np.float32)
    for i in range(H2):
        for j in range(W2):
            sel[i * W2 + j, 2 * i * W + 2 * j] = 1.0
    return jnp.asarray(sel)


# --------------------------------------------------------------------------
# Fused kernel (whole network, one batch element per grid step)
# --------------------------------------------------------------------------
def _make_fused_kernel(H, W, c0, c1, c2, c3):
    H2, W2 = H // 2, W // 2
    H3, W3 = H2 // 2, W2 // 2

    def kernel(x_ref, w1_ref, b1_ref, w2_ref, b2_ref, w3_ref, b3_ref,
               sel1_ref, sel2_ref, o_ref, col1, col2, col3):
        a0 = x_ref[0]                                           # (H*W, c0)
        y1 = _conv3x3_relu(a0, col1, w1_ref, b1_ref, H, W, c0)  # (H*W, c1)
        p1 = _maxpool2x2(y1, sel1_ref[...], W)                  # (H2*W2, c1)
        y2 = _conv3x3_relu(p1, col2, w2_ref, b2_ref, H2, W2, c1)
        p2 = _maxpool2x2(y2, sel2_ref[...], W2)                 # (H3*W3, c2)
        y3 = _conv3x3_relu(p2, col3, w3_ref, b3_ref, H3, W3, c2)
        o_ref[0] = y3.astype(o_ref.dtype)                       # lane-dense slab

    return kernel


# --------------------------------------------------------------------------
# Public forward (NCHW in, NCHW out, like the PyTorch module)
# --------------------------------------------------------------------------
def cnn_model_forward(x_nchw, params):
    N, c0, H, W = x_nchw.shape
    c1 = params["w1"].shape[-1]
    c2 = params["w2"].shape[-1]
    c3 = params["w3"].shape[-1]
    H2, W2 = H // 2, W // 2
    H3, W3 = H2 // 2, W2 // 2

    # layout glue on the (tiny) network input/output only: channels -> lanes
    x2d = jnp.transpose(x_nchw, (0, 2, 3, 1)).reshape(N, H * W, c0)
    w1 = params["w1"].reshape(9 * c0, c1)
    w2 = params["w2"].reshape(9 * c1, c2)
    w3 = params["w3"].reshape(9 * c2, c3)
    b1 = params["b1"].reshape(1, c1)
    b2 = params["b2"].reshape(1, c2)
    b3 = params["b3"].reshape(1, c3)
    sel1 = _pool_select(H, W)        # (H2*W2, H*W - W - 1)
    sel2 = _pool_select(H2, W2)      # (H3*W3, H2*W2 - W2 - 1)

    out2d = pl.pallas_call(
        _make_fused_kernel(H, W, c0, c1, c2, c3),
        out_shape=jax.ShapeDtypeStruct((N, H3 * W3, c3), x_nchw.dtype),
        grid=(N,),
        in_specs=[
            pl.BlockSpec((1, H * W, c0), lambda n: (n, 0, 0)),
            pl.BlockSpec((9 * c0, c1), lambda n: (0, 0)),
            pl.BlockSpec((1, c1), lambda n: (0, 0)),
            pl.BlockSpec((9 * c1, c2), lambda n: (0, 0)),
            pl.BlockSpec((1, c2), lambda n: (0, 0)),
            pl.BlockSpec((9 * c2, c3), lambda n: (0, 0)),
            pl.BlockSpec((1, c3), lambda n: (0, 0)),
            pl.BlockSpec(sel1.shape, lambda n: (0, 0)),
            pl.BlockSpec(sel2.shape, lambda n: (0, 0)),
        ],
        out_specs=pl.BlockSpec((1, H3 * W3, c3), lambda n: (n, 0, 0)),
        scratch_shapes=[
            pltpu.VMEM((H * W, 9 * c0), jnp.float32),    # im2col, layer 1
            pltpu.VMEM((H2 * W2, 9 * c1), jnp.float32),  # im2col, layer 2
            pltpu.VMEM((H3 * W3, 9 * c2), jnp.float32),  # im2col, layer 3
        ],
        compiler_params=pltpu.CompilerParams(
            dimension_semantics=("parallel",)),          # batch across TCs
    )(x2d, w1, b1, w2, b2, w3, b3, sel1, sel2)

    out = out2d.reshape(N, H3, W3, c3)
    return jnp.transpose(out, (0, 3, 1, 2))              # back to NCHW


# --------------------------------------------------------------------------
# Parameters + pure-JAX reference (correctness check only)
# --------------------------------------------------------------------------
def init_params(key, in_channels=8, out_channels=128):
    """Deterministic Kaiming-uniform-style init (same shapes as the nn.Module)."""
    dims = [(in_channels, 32), (32, 64), (64, out_channels)]
    params = {}
    for i, (cin, cout) in enumerate(dims, start=1):
        key, kw, kb = jax.random.split(key, 3)
        bound = 1.0 / (cin * 9) ** 0.5
        params[f"w{i}"] = jax.random.uniform(kw, (3, 3, cin, cout),
                                             jnp.float32, -bound, bound)
        params[f"b{i}"] = jax.random.uniform(kb, (cout,),
                                             jnp.float32, -bound, bound)
    return params


def reference_forward(x_nchw, params):
    x = x_nchw
    for i in range(1, 4):
        w = jnp.transpose(params[f"w{i}"], (3, 2, 0, 1))  # HWIO -> OIHW
        x = jax.lax.conv_general_dilated(
            x, w, (1, 1), ((1, 1), (1, 1)),
            dimension_numbers=("NCHW", "OIHW", "NCHW"),
            precision=jax.lax.Precision.HIGHEST)
        x = jax.nn.relu(x + params[f"b{i}"][None, :, None, None])
        if i < 3:
            x = jax.lax.reduce_window(x, -jnp.inf, jax.lax.max,
                                      (1, 1, 2, 2), (1, 1, 2, 2), "VALID")
    return x


if __name__ == "__main__":
    key = jax.random.PRNGKey(0)
    kx, kp = jax.random.split(key)
    x = jax.random.normal(kx, (2, 8, 16, 16), jnp.float32)   # NCHW, like PyTorch
    params = init_params(kp, in_channels=8, out_channels=128)

    out = jax.jit(cnn_model_forward)(x, params)
    out = jax.block_until_ready(out)
    assert out.shape == (2, 128, 4, 4), out.shape

    ref = reference_forward(x, params)
    assert jnp.allclose(out, ref, atol=1e-3, rtol=1e-3), \
        float(jnp.max(jnp.abs(out - ref)))

    print("KERNEL_OK")
</pallas_src>

<mosaic_0001>
module attributes {stable_mosaic.version = 11 : i64} {
  func.func @kernel(%arg0: i32, %arg1: memref<1x256x8xf32, #tpu.memory_space<vmem>>, %arg2: memref<72x32xf32, #tpu.memory_space<vmem>>, %arg3: memref<1x32xf32, #tpu.memory_space<vmem>>, %arg4: memref<288x64xf32, #tpu.memory_space<vmem>>, %arg5: memref<1x64xf32, #tpu.memory_space<vmem>>, %arg6: memref<576x128xf32, #tpu.memory_space<vmem>>, %arg7: memref<1x128xf32, #tpu.memory_space<vmem>>, %arg8: memref<64x239xf32, #tpu.memory_space<vmem>>, %arg9: memref<16x55xf32, #tpu.memory_space<vmem>>, %arg10: memref<1x16x128xf32, #tpu.memory_space<vmem>>, %arg11: memref<256x72xf32, #tpu.memory_space<vmem>>, %arg12: memref<64x288xf32, #tpu.memory_space<vmem>>, %arg13: memref<16x576xf32, #tpu.memory_space<vmem>>) attributes {dimension_semantics = [#tpu.dimension_semantics<parallel>], iteration_bounds = array<i64: 2>, scalar_prefetch = 0 : i64, scratch_operands = 3 : i64, tpu.core_type = #tpu.core_type<tc>, window_params = [{transform_indices = @transform_0, window_bounds = array<i64: 1, 256, 8>}, {pipeline_mode = #tpu.pipeline_mode<synchronous>, transform_indices = @transform_1, window_bounds = array<i64: 72, 32>}, {pipeline_mode = #tpu.pipeline_mode<synchronous>, transform_indices = @transform_2, window_bounds = array<i64: 1, 32>}, {pipeline_mode = #tpu.pipeline_mode<synchronous>, transform_indices = @transform_3, window_bounds = array<i64: 288, 64>}, {pipeline_mode = #tpu.pipeline_mode<synchronous>, transform_indices = @transform_4, window_bounds = array<i64: 1, 64>}, {pipeline_mode = #tpu.pipeline_mode<synchronous>, transform_indices = @transform_5, window_bounds = array<i64: 576, 128>}, {pipeline_mode = #tpu.pipeline_mode<synchronous>, transform_indices = @transform_6, window_bounds = array<i64: 1, 128>}, {pipeline_mode = #tpu.pipeline_mode<synchronous>, transform_indices = @transform_7, window_bounds = array<i64: 64, 239>}, {pipeline_mode = #tpu.pipeline_mode<synchronous>, transform_indices = @transform_8, window_bounds = array<i64: 16, 55>}, {transform_indices = @transform_9, window_bounds = array<i64: 1, 16, 128>}]} {
    %c0 = arith.constant 0 : index
    %c0_0 = arith.constant 0 : index
    %c0_1 = arith.constant 0 : index
    %0 = vector.load %arg1[%c0, %c0_0, %c0_1] : memref<1x256x8xf32, #tpu.memory_space<vmem>>, vector<1x256x8xf32>
    %1 = vector.shape_cast %0 : vector<1x256x8xf32> to vector<256x8xf32>
    %2 = tpu.iota {dimensions = array<i32: 0>} : vector<256x1xi32>
    %c16_i32 = arith.constant 16 : i32
    %c0_i32 = arith.constant 0 : i32
    %3 = arith.cmpi eq, %c16_i32, %c0_i32 : i32
    %c1_i32 = arith.constant 1 : i32
    %4 = arith.select %3, %c1_i32, %c16_i32 : i32
    %5 = vector.broadcast %4 : i32 to vector<256x1xi32>
    %6 = arith.remsi %2, %5 : vector<256x1xi32>
    %c0_i32_2 = arith.constant 0 : i32
    %7 = vector.broadcast %c0_i32_2 : i32 to vector<256x1xi32>
    %8 = arith.cmpi ne, %6, %7 : vector<256x1xi32>
    %c0_i32_3 = arith.constant 0 : i32
    %9 = vector.broadcast %c0_i32_3 : i32 to vector<256x1xi32>
    %10 = arith.cmpi slt, %6, %9 : vector<256x1xi32>
    %c0_i32_4 = arith.constant 0 : i32
    %11 = arith.cmpi slt, %4, %c0_i32_4 : i32
    %12 = vector.broadcast %11 : i1 to vector<256x1xi1>
    %13 = vector.broadcast %12 : vector<256x1xi1> to vector<256x1xi1>
    %14 = arith.xori %10, %13 : vector<256x1xi1>
    %15 = arith.andi %14, %8 : vector<256x1xi1>
    %16 = vector.broadcast %4 : i32 to vector<256x1xi32>
    %17 = arith.addi %6, %16 : vector<256x1xi32>
    %18 = arith.select %15, %17, %6 : vector<256x1xi1>, vector<256x1xi32>
    %c1_i32_5 = arith.constant 1 : i32
    %19 = vector.broadcast %c1_i32_5 : i32 to vector<256x1xi32>
    %20 = arith.cmpi sge, %18, %19 : vector<256x1xi32>
    %c14_i32 = arith.constant 14 : i32
    %21 = vector.broadcast %c14_i32 : i32 to vector<256x1xi32>
    %22 = arith.cmpi sle, %18, %21 : vector<256x1xi32>
    %cst = arith.constant 0.000000e+00 : f32
    %23 = vector.broadcast %cst : f32 to vector<256x72xf32>
    %c0_6 = arith.constant 0 : index
    %c0_7 = arith.constant 0 : index
    %24 = vector.load %arg11[%c0_6, %c0_7] : memref<256x72xf32, #tpu.memory_space<vmem>>, vector<256x72xf32>
    tpu.vector_store %arg11[%c0_6, %c0_7], %23 {strides = array<i32>} : memref<256x72xf32, #tpu.memory_space<vmem>>, vector<256x72xf32>,
    %25 = vector.extract_strided_slice %1 {offsets = [0, 0], sizes = [239, 8], strides = [1, 1]} : vector<256x8xf32> to vector<239x8xf32>
    %26 = vector.extract_strided_slice %20 {offsets = [17, 0], sizes = [239, 1], strides = [1, 1]} : vector<256x1xi1> to vector<239x1xi1>
    %cst_8 = arith.constant 0.000000e+00 : f32
    %27 = vector.shape_cast %26 : vector<239x1xi1> to vector<239x1xi1>
    %28 = vector.broadcast %27 : vector<239x1xi1> to vector<239x8xi1>
    %29 = vector.broadcast %cst_8 : f32 to vector<239x8xf32>
    %30 = arith.select %28, %25, %29 : vector<239x8xi1>, vector<239x8xf32>
    %c17 = arith.constant 17 : index
    %c0_9 = arith.constant 0 : index
    %31 = vector.load %arg11[%c17, %c0_9] : memref<256x72xf32, #tpu.memory_space<vmem>>, vector<239x8xf32>
    tpu.vector_store %arg11[%c17, %c0_9], %30 {strides = array<i32>} : memref<256x72xf32, #tpu.memory_space<vmem>>, vector<239x8xf32>,
    %32 = vector.extract_strided_slice %1 {offsets = [0, 0], sizes = [240, 8], strides = [1, 1]} : vector<256x8xf32> to vector<240x8xf32>
    %c16 = arith.constant 16 : index
    %c8 = arith.constant 8 : index
    %33 = vector.load %arg11[%c16, %c8] : memref<256x72xf32, #tpu.memory_space<vmem>>, vector<240x8xf32>
    tpu.vector_store %arg11[%c16, %c8], %32 {strides = array<i32>} : memref<256x72xf32, #tpu.memory_space<vmem>>, vector<240x8xf32>,
    %34 = vector.extract_strided_slice %1 {offsets = [0, 0], sizes = [241, 8], strides = [1, 1]} : vector<256x8xf32> to vector<241x8xf32>
    %35 = vector.extract_strided_slice %22 {offsets = [15, 0], sizes = [241, 1], strides = [1, 1]} : vector<256x1xi1> to vector<241x1xi1>
    %cst_10 = arith.constant 0.000000e+00 : f32
    %36 = vector.shape_cast %35 : vector<241x1xi1> to vector<241x1xi1>
    %37 = vector.broadcast %36 : vector<241x1xi1> to vector<241x8xi1>
    %38 = vector.broadcast %cst_10 : f32 to vector<241x8xf32>
    %39 = arith.select %37, %34, %38 : vector<241x8xi1>, vector<241x8xf32>
    %c15 = arith.constant 15 : index
    %c16_11 = arith.constant 16 : index
    %40 = vector.load %arg11[%c15, %c16_11] : memref<256x72xf32, #tpu.memory_space<vmem>>, vector<241x8xf32>
    tpu.vector_store %arg11[%c15, %c16_11], %39 {strides = array<i32>} : memref<256x72xf32, #tpu.memory_space<vmem>>, vector<241x8xf32>,
    %41 = vector.extract_strided_slice %1 {offsets = [0, 0], sizes = [255, 8], strides = [1, 1]} : vector<256x8xf32> to vector<255x8xf32>
    %42 = vector.extract_strided_slice %20 {offsets = [1, 0], sizes = [255, 1], strides = [1, 1]} : vector<256x1xi1> to vector<255x1xi1>
    %cst_12 = arith.constant 0.000000e+00 : f32
    %43 = vector.shape_cast %42 : vector<255x1xi1> to vector<255x1xi1>
    %44 = vector.broadcast %43 : vector<255x1xi1> to vector<255x8xi1>
    %45 = vector.broadcast %cst_12 : f32 to vector<255x8xf32>
    %46 = arith.select %44, %41, %45 : vector<255x8xi1>, vector<255x8xf32>
    %c1 = arith.constant 1 : index
    %c24 = arith.constant 24 : index
    %47 = vector.load %arg11[%c1, %c24] : memref<256x72xf32, #tpu.memory_space<vmem>>, vector<255x8xf32>
    tpu.vector_store %arg11[%c1, %c24], %46 {strides = array<i32>} : memref<256x72xf32, #tpu.memory_space<vmem>>, vector<255x8xf32>,
    %c0_13 = arith.constant 0 : index
    %c32 = arith.constant 32 : index
    %48 = vector.load %arg11[%c0_13, %c32] : memref<256x72xf32, #tpu.memory_space<vmem>>, vector<256x8xf32>
    tpu.vector_store %arg11[%c0_13, %c32], %1 {strides = array<i32>} : memref<256x72xf32, #tpu.memory_space<vmem>>, vector<256x8xf32>,
    %49 = vector.extract_strided_slice %1 {offsets = [1, 0], sizes = [255, 8], strides = [1, 1]} : vector<256x8xf32> to vector<255x8xf32>
    %50 = vector.extract_strided_slice %22 {offsets = [0, 0], sizes = [255, 1], strides = [1, 1]} : vector<256x1xi1> to vector<255x1xi1>
    %cst_14 = arith.constant 0.000000e+00 : f32
    %51 = vector.shape_cast %50 : vector<255x1xi1> to vector<255x1xi1>
    %52 = vector.broadcast %51 : vector<255x1xi1> to vector<255x8xi1>
    %53 = vector.broadcast %cst_14 : f32 to vector<255x8xf32>
    %54 = arith.select %52, %49, %53 : vector<255x8xi1>, vector<255x8xf32>
    %c0_15 = arith.constant 0 : index
    %c40 = arith.constant 40 : index
    %55 = vector.load %arg11[%c0_15, %c40] : memref<256x72xf32, #tpu.memory_space<vmem>>, vector<255x8xf32>
    tpu.vector_store %arg11[%c0_15, %c40], %54 {strides = array<i32>} : memref<256x72xf32, #tpu.memory_space<vmem>>, vector<255x8xf32>,
    %56 = vector.extract_strided_slice %1 {offsets = [15, 0], sizes = [241, 8], strides = [1, 1]} : vector<256x8xf32> to vector<241x8xf32>
    %57 = vector.extract_strided_slice %20 {offsets = [0, 0], sizes = [241, 1], strides = [1, 1]} : vector<256x1xi1> to vector<241x1xi1>
    %cst_16 = arith.constant 0.000000e+00 : f32
    %58 = vector.shape_cast %57 : vector<241x1xi1> to vector<241x1xi1>
    %59 = vector.broadcast %58 : vector<241x1xi1> to vector<241x8xi1>
    %60 = vector.broadcast %cst_16 : f32 to vector<241x8xf32>
    %61 = arith.select %59, %56, %60 : vector<241x8xi1>, vector<241x8xf32>
    %c0_17 = arith.constant 0 : index
    %c48 = arith.constant 48 : index
    %62 = vector.load %arg11[%c0_17, %c48] : memref<256x72xf32, #tpu.memory_space<vmem>>, vector<241x8xf32>
    tpu.vector_store %arg11[%c0_17, %c48], %61 {strides = array<i32>} : memref<256x72xf32, #tpu.memory_space<vmem>>, vector<241x8xf32>,
    %63 = vector.extract_strided_slice %1 {offsets = [16, 0], sizes = [240, 8], strides = [1, 1]} : vector<256x8xf32> to vector<240x8xf32>
    %c0_18 = arith.constant 0 : index
    %c56 = arith.constant 56 : index
    %64 = vector.load %arg11[%c0_18, %c56] : memref<256x72xf32, #tpu.memory_space<vmem>>, vector<240x8xf32>
    tpu.vector_store %arg11[%c0_18, %c56], %63 {strides = array<i32>} : memref<256x72xf32, #tpu.memory_space<vmem>>, vector<240x8xf32>,
    %65 = vector.extract_strided_slice %1 {offsets = [17, 0], sizes = [239, 8], strides = [1, 1]} : vector<256x8xf32> to vector<239x8xf32>
    %66 = vector.extract_strided_slice %22 {offsets = [0, 0], sizes = [239, 1], strides = [1, 1]} : vector<256x1xi1> to vector<239x1xi1>
    %cst_19 = arith.constant 0.000000e+00 : f32
    %67 = vector.shape_cast %66 : vector<239x1xi1> to vector<239x1xi1>
    %68 = vector.broadcast %67 : vector<239x1xi1> to vector<239x8xi1>
    %69 = vector.broadcast %cst_19 : f32 to vector<239x8xf32>
    %70 = arith.select %68, %65, %69 : vector<239x8xi1>, vector<239x8xf32>
    %c0_20 = arith.constant 0 : index
    %c64 = arith.constant 64 : index
    %71 = vector.load %arg11[%c0_20, %c64] : memref<256x72xf32, #tpu.memory_space<vmem>>, vector<239x8xf32>
    tpu.vector_store %arg11[%c0_20, %c64], %70 {strides = array<i32>} : memref<256x72xf32, #tpu.memory_space<vmem>>, vector<239x8xf32>,
    %c0_21 = arith.constant 0 : index
    %c0_22 = arith.constant 0 : index
    %72 = vector.load %arg11[%c0_21, %c0_22] : memref<256x72xf32, #tpu.memory_space<vmem>>, vector<256x72xf32>
    %c0_23 = arith.constant 0 : index
    %c0_24 = arith.constant 0 : index
    %73 = vector.load %arg2[%c0_23, %c0_24] : memref<72x32xf32, #tpu.memory_space<vmem>>, vector<72x32xf32>
    %cst_25 = arith.constant dense<0.000000e+00> : vector<256x32xf32>
    %74 = tpu.matmul %72, %73, %cst_25 {dimension_numbers = #tpu.dot_dimension_numbers<[1], [0], [0], [1], [0, 0, 1, 1], [], []>} : vector<256x72xf32>, vector<72x32xf32>, vector<256x32xf32> -> vector<256x32xf32>
    %c0_26 = arith.constant 0 : index
    %c0_27 = arith.constant 0 : index
    %75 = vector.load %arg3[%c0_26, %c0_27] : memref<1x32xf32, #tpu.memory_space<vmem>>, vector<1x32xf32>
    %76 = vector.broadcast %75 : vector<1x32xf32> to vector<256x32xf32>
    %77 = arith.addf %74, %76 : vector<256x32xf32>
    %cst_28 = arith.constant 0.000000e+00 : f32
    %78 = vector.broadcast %cst_28 : f32 to vector<256x32xf32>
    %79 = arith.maximumf %77, %78 : vector<256x32xf32>
    %c0_29 = arith.constant 0 : index
    %c0_30 = arith.constant 0 : index
    %80 = vector.load %arg8[%c0_29, %c0_30] : memref<64x239xf32, #tpu.memory_space<vmem>>, vector<64x239xf32>
    %81 = vector.extract_strided_slice %79 {offsets = [0, 0], sizes = [240, 32], strides = [1, 1]} : vector<256x32xf32> to vector<240x32xf32>
    %82 = vector.extract_strided_slice %79 {offsets = [16, 0], sizes = [240, 32], strides = [1, 1]} : vector<256x32xf32> to vector<240x32xf32>
    %83 = arith.maximumf %81, %82 : vector<240x32xf32>
    %84 = vector.extract_strided_slice %83 {offsets = [0, 0], sizes = [239, 32], strides = [1, 1]} : vector<240x32xf32> to vector<239x32xf32>
    %85 = vector.extract_strided_slice %83 {offsets = [1, 0], sizes = [239, 32], strides = [1, 1]} : vector<240x32xf32> to vector<239x32xf32>
    %86 = arith.maximumf %84, %85 : vector<239x32xf32>
    %cst_31 = arith.constant dense<0.000000e+00> : vector<64x32xf32>
    %87 = tpu.matmul %80, %86, %cst_31 {dimension_numbers = #tpu.dot_dimension_numbers<[1], [0], [0], [1], [0, 0, 1, 1], [], []>} : vector<64x239xf32>, vector<239x32xf32>, vector<64x32xf32> -> vector<64x32xf32>
    %88 = tpu.iota {dimensions = array<i32: 0>} : vector<64x1xi32>
    %c8_i32 = arith.constant 8 : i32
    %c0_i32_32 = arith.constant 0 : i32
    %89 = arith.cmpi eq, %c8_i32, %c0_i32_32 : i32
    %c1_i32_33 = arith.constant 1 : i32
    %90 = arith.select %89, %c1_i32_33, %c8_i32 : i32
    %91 = vector.broadcast %90 : i32 to vector<64x1xi32>
    %92 = arith.remsi %88, %91 : vector<64x1xi32>
    %c0_i32_34 = arith.constant 0 : i32
    %93 = vector.broadcast %c0_i32_34 : i32 to vector<64x1xi32>
    %94 = arith.cmpi ne, %92, %93 : vector<64x1xi32>
    %c0_i32_35 = arith.constant 0 : i32
    %95 = vector.broadcast %c0_i32_35 : i32 to vector<64x1xi32>
    %96 = arith.cmpi slt, %92, %95 : vector<64x1xi32>
    %c0_i32_36 = arith.constant 0 : i32
    %97 = arith.cmpi slt, %90, %c0_i32_36 : i32
    %98 = vector.broadcast %97 : i1 to vector<64x1xi1>
    %99 = vector.broadcast %98 : vector<64x1xi1> to vector<64x1xi1>
    %100 = arith.xori %96, %99 : vector<64x1xi1>
    %101 = arith.andi %100, %94 : vector<64x1xi1>
    %102 = vector.broadcast %90 : i32 to vector<64x1xi32>
    %103 = arith.addi %92, %102 : vector<64x1xi32>
    %104 = arith.select %101, %103, %92 : vector<64x1xi1>, vector<64x1xi32>
    %c1_i32_37 = arith.constant 1 : i32
    %105 = vector.broadcast %c1_i32_37 : i32 to vector<64x1xi32>
    %106 = arith.cmpi sge, %104, %105 : vector<64x1xi32>
    %c6_i32 = arith.constant 6 : i32
    %107 = vector.broadcast %c6_i32 : i32 to vector<64x1xi32>
    %108 = arith.cmpi sle, %104, %107 : vector<64x1xi32>
    %cst_38 = arith.constant 0.000000e+00 : f32
    %109 = vector.broadcast %cst_38 : f32 to vector<64x288xf32>
    %c0_39 = arith.constant 0 : index
    %c0_40 = arith.constant 0 : index
    %110 = vector.load %arg12[%c0_39, %c0_40] : memref<64x288xf32, #tpu.memory_space<vmem>>, vector<64x288xf32>
    tpu.vector_store %arg12[%c0_39, %c0_40], %109 {strides = array<i32>} : memref<64x288xf32, #tpu.memory_space<vmem>>, vector<64x288xf32>,
    %111 = vector.extract_strided_slice %87 {offsets = [0, 0], sizes = [55, 32], strides = [1, 1]} : vector<64x32xf32> to vector<55x32xf32>
    %112 = vector.extract_strided_slice %106 {offsets = [9, 0], sizes = [55, 1], strides = [1, 1]} : vector<64x1xi1> to vector<55x1xi1>
    %cst_41 = arith.constant 0.000000e+00 : f32
    %113 = vector.shape_cast %112 : vector<55x1xi1> to vector<55x1xi1>
    %114 = vector.broadcast %113 : vector<55x1xi1> to vector<55x32xi1>
    %115 = vector.broadcast %cst_41 : f32 to vector<55x32xf32>
    %116 = arith.select %114, %111, %115 : vector<55x32xi1>, vector<55x32xf32>
    %c9 = arith.constant 9 : index
    %c0_42 = arith.constant 0 : index
    %117 = vector.load %arg12[%c9, %c0_42] : memref<64x288xf32, #tpu.memory_space<vmem>>, vector<55x32xf32>
    tpu.vector_store %arg12[%c9, %c0_42], %116 {strides = array<i32>} : memref<64x288xf32, #tpu.memory_space<vmem>>, vector<55x32xf32>,
    %118 = vector.extract_strided_slice %87 {offsets = [0, 0], sizes = [56, 32], strides = [1, 1]} : vector<64x32xf32> to vector<56x32xf32>
    %c8_43 = arith.constant 8 : index
    %c32_44 = arith.constant 32 : index
    %119 = vector.load %arg12[%c8_43, %c32_44] : memref<64x288xf32, #tpu.memory_space<vmem>>, vector<56x32xf32>
    tpu.vector_store %arg12[%c8_43, %c32_44], %118 {strides = array<i32>} : memref<64x288xf32, #tpu.memory_space<vmem>>, vector<56x32xf32>,
    %120 = vector.extract_strided_slice %87 {offsets = [0, 0], sizes = [57, 32], strides = [1, 1]} : vector<64x32xf32> to vector<57x32xf32>
    %121 = vector.extract_strided_slice %108 {offsets = [7, 0], sizes = [57, 1], strides = [1, 1]} : vector<64x1xi1> to vector<57x1xi1>
    %cst_45 = arith.constant 0.000000e+00 : f32
    %122 = vector.shape_cast %121 : vector<57x1xi1> to vector<57x1xi1>
    %123 = vector.broadcast %122 : vector<57x1xi1> to vector<57x32xi1>
    %124 = vector.broadcast %cst_45 : f32 to vector<57x32xf32>
    %125 = arith.select %123, %120, %124 : vector<57x32xi1>, vector<57x32xf32>
    %c7 = arith.constant 7 : index
    %c64_46 = arith.constant 64 : index
    %126 = vector.load %arg12[%c7, %c64_46] : memref<64x288xf32, #tpu.memory_space<vmem>>, vector<57x32xf32>
    tpu.vector_store %arg12[%c7, %c64_46], %125 {strides = array<i32>} : memref<64x288xf32, #tpu.memory_space<vmem>>, vector<57x32xf32>,
    %127 = vector.extract_strided_slice %87 {offsets = [0, 0], sizes = [63, 32], strides = [1, 1]} : vector<64x32xf32> to vector<63x32xf32>
    %128 = vector.extract_strided_slice %106 {offsets = [1, 0], sizes = [63, 1], strides = [1, 1]} : vector<64x1xi1> to vector<63x1xi1>
    %cst_47 = arith.constant 0.000000e+00 : f32
    %129 = vector.shape_cast %128 : vector<63x1xi1> to vector<63x1xi1>
    %130 = vector.broadcast %129 : vector<63x1xi1> to vector<63x32xi1>
    %131 = vector.broadcast %cst_47 : f32 to vector<63x32xf32>
    %132 = arith.select %130, %127, %131 : vector<63x32xi1>, vector<63x32xf32>
    %c1_48 = arith.constant 1 : index
    %c96 = arith.constant 96 : index
    %133 = vector.load %arg12[%c1_48, %c96] : memref<64x288xf32, #tpu.memory_space<vmem>>, vector<63x32xf32>
    tpu.vector_store %arg12[%c1_48, %c96], %132 {strides = array<i32>} : memref<64x288xf32, #tpu.memory_space<vmem>>, vector<63x32xf32>,
    %c0_49 = arith.constant 0 : index
    %c128 = arith.constant 128 : index
    %134 = vector.load %arg12[%c0_49, %c128] : memref<64x288xf32, #tpu.memory_space<vmem>>, vector<64x32xf32>
    tpu.vector_store %arg12[%c0_49, %c128], %87 {strides = array<i32>} : memref<64x288xf32, #tpu.memory_space<vmem>>, vector<64x32xf32>,
    %135 = vector.extract_strided_slice %87 {offsets = [1, 0], sizes = [63, 32], strides = [1, 1]} : vector<64x32xf32> to vector<63x32xf32>
    %136 = vector.extract_strided_slice %108 {offsets = [0, 0], sizes = [63, 1], strides = [1, 1]} : vector<64x1xi1> to vector<63x1xi1>
    %cst_50 = arith.constant 0.000000e+00 : f32
    %137 = vector.shape_cast %136 : vector<63x1xi1> to vector<63x1xi1>
    %138 = vector.broadcast %137 : vector<63x1xi1> to vector<63x32xi1>
    %139 = vector.broadcast %cst_50 : f32 to vector<63x32xf32>
    %140 = arith.select %138, %135, %139 : vector<63x32xi1>, vector<63x32xf32>
    %c0_51 = arith.constant 0 : index
    %c160 = arith.constant 160 : index
    %141 = vector.load %arg12[%c0_51, %c160] : memref<64x288xf32, #tpu.memory_space<vmem>>, vector<63x32xf32>
    tpu.vector_store %arg12[%c0_51, %c160], %140 {strides = array<i32>} : memref<64x288xf32, #tpu.memory_space<vmem>>, vector<63x32xf32>,
    %142 = vector.extract_strided_slice %87 {offsets = [7, 0], sizes = [57, 32], strides = [1, 1]} : vector<64x32xf32> to vector<57x32xf32>
    %143 = vector.extract_strided_slice %106 {offsets = [0, 0], sizes = [57, 1], strides = [1, 1]} : vector<64x1xi1> to vector<57x1xi1>
    %cst_52 = arith.constant 0.000000e+00 : f32
    %144 = vector.shape_cast %143 : vector<57x1xi1> to vector<57x1xi1>
    %145 = vector.broadcast %144 : vector<57x1xi1> to vector<57x32xi1>
    %146 = vector.broadcast %cst_52 : f32 to vector<57x32xf32>
    %147 = arith.select %145, %142, %146 : vector<57x32xi1>, vector<57x32xf32>
    %c0_53 = arith.constant 0 : index
    %c192 = arith.constant 192 : index
    %148 = vector.load %arg12[%c0_53, %c192] : memref<64x288xf32, #tpu.memory_space<vmem>>, vector<57x32xf32>
    tpu.vector_store %arg12[%c0_53, %c192], %147 {strides = array<i32>} : memref<64x288xf32, #tpu.memory_space<vmem>>, vector<57x32xf32>,
    %149 = vector.extract_strided_slice %87 {offsets = [8, 0], sizes = [56, 32], strides = [1, 1]} : vector<64x32xf32> to vector<56x32xf32>
    %c0_54 = arith.constant 0 : index
    %c224 = arith.constant 224 : index
    %150 = vector.load %arg12[%c0_54, %c224] : memref<64x288xf32, #tpu.memory_space<vmem>>, vector<56x32xf32>
    tpu.vector_store %arg12[%c0_54, %c224], %149 {strides = array<i32>} : memref<64x288xf32, #tpu.memory_space<vmem>>, vector<56x32xf32>,
    %151 = vector.extract_strided_slice %87 {offsets = [9, 0], sizes = [55, 32], strides = [1, 1]} : vector<64x32xf32> to vector<55x32xf32>
    %152 = vector.extract_strided_slice %108 {offsets = [0, 0], sizes = [55, 1], strides = [1, 1]} : vector<64x1xi1> to vector<55x1xi1>
    %cst_55 = arith.constant 0.000000e+00 : f32
    %153 = vector.shape_cast %152 : vector<55x1xi1> to vector<55x1xi1>
    %154 = vector.broadcast %153 : vector<55x1xi1> to vector<55x32xi1>
    %155 = vector.broadcast %cst_55 : f32 to vector<55x32xf32>
    %156 = arith.select %154, %151, %155 : vector<55x32xi1>, vector<55x32xf32>
    %c0_56 = arith.constant 0 : index
    %c256 = arith.constant 256 : index
    %157 = vector.load %arg12[%c0_56, %c256] : memref<64x288xf32, #tpu.memory_space<vmem>>, vector<55x32xf32>
    tpu.vector_store %arg12[%c0_56, %c256], %156 {strides = array<i32>} : memref<64x288xf32, #tpu.memory_space<vmem>>, vector<55x32xf32>,
    %c0_57 = arith.constant 0 : index
    %c0_58 = arith.constant 0 : index
    %158 = vector.load %arg12[%c0_57, %c0_58] : memref<64x288xf32, #tpu.memory_space<vmem>>, vector<64x288xf32>
    %c0_59 = arith.constant 0 : index
    %c0_60 = arith.constant 0 : index
    %159 = vector.load %arg4[%c0_59, %c0_60] : memref<288x64xf32, #tpu.memory_space<vmem>>, vector<288x64xf32>
    %cst_61 = arith.constant dense<0.000000e+00> : vector<64x64xf32>
    %160 = tpu.matmul %158, %159, %cst_61 {dimension_numbers = #tpu.dot_dimension_numbers<[1], [0], [0], [1], [0, 0, 1, 1], [], []>} : vector<64x288xf32>, vector<288x64xf32>, vector<64x64xf32> -> vector<64x64xf32>
    %c0_62 = arith.constant 0 : index
    %c0_63 = arith.constant 0 : index
    %161 = vector.load %arg5[%c0_62, %c0_63] : memref<1x64xf32, #tpu.memory_space<vmem>>, vector<1x64xf32>
    %162 = vector.broadcast %161 : vector<1x64xf32> to vector<64x64xf32>
    %163 = arith.addf %160, %162 : vector<64x64xf32>
    %cst_64 = arith.constant 0.000000e+00 : f32
    %164 = vector.broadcast %cst_64 : f32 to vector<64x64xf32>
    %165 = arith.maximumf %163, %164 : vector<64x64xf32>
    %c0_65 = arith.constant 0 : index
    %c0_66 = arith.constant 0 : index
    %166 = vector.load %arg9[%c0_65, %c0_66] : memref<16x55xf32, #tpu.memory_space<vmem>>, vector<16x55xf32>
    %167 = vector.extract_strided_slice %165 {offsets = [0, 0], sizes = [56, 64], strides = [1, 1]} : vector<64x64xf32> to vector<56x64xf32>
    %168 = vector.extract_strided_slice %165 {offsets = [8, 0], sizes = [56, 64], strides = [1, 1]} : vector<64x64xf32> to vector<56x64xf32>
    %169 = arith.maximumf %167, %168 : vector<56x64xf32>
    %170 = vector.extract_strided_slice %169 {offsets = [0, 0], sizes = [55, 64], strides = [1, 1]} : vector<56x64xf32> to vector<55x64xf32>
    %171 = vector.extract_strided_slice %169 {offsets = [1, 0], sizes = [55, 64], strides = [1, 1]} : vector<56x64xf32> to vector<55x64xf32>
    %172 = arith.maximumf %170, %171 : vector<55x64xf32>
    %cst_67 = arith.constant dense<0.000000e+00> : vector<16x64xf32>
    %173 = tpu.matmul %166, %172, %cst_67 {dimension_numbers = #tpu.dot_dimension_numbers<[1], [0], [0], [1], [0, 0, 1, 1], [], []>} : vector<16x55xf32>, vector<55x64xf32>, vector<16x64xf32> -> vector<16x64xf32>
    %174 = tpu.iota {dimensions = array<i32: 0>} : vector<16x1xi32>
    %c4_i32 = arith.constant 4 : i32
    %c0_i32_68 = arith.constant 0 : i32
    %175 = arith.cmpi eq, %c4_i32, %c0_i32_68 : i32
    %c1_i32_69 = arith.constant 1 : i32
    %176 = arith.select %175, %c1_i32_69, %c4_i32 : i32
    %177 = vector.broadcast %176 : i32 to vector<16x1xi32>
    %178 = arith.remsi %174, %177 : vector<16x1xi32>
    %c0_i32_70 = arith.constant 0 : i32
    %179 = vector.broadcast %c0_i32_70 : i32 to vector<16x1xi32>
    %180 = arith.cmpi ne, %178, %179 : vector<16x1xi32>
    %c0_i32_71 = arith.constant 0 : i32
    %181 = vector.broadcast %c0_i32_71 : i32 to vector<16x1xi32>
    %182 = arith.cmpi slt, %178, %181 : vector<16x1xi32>
    %c0_i32_72 = arith.constant 0 : i32
    %183 = arith.cmpi slt, %176, %c0_i32_72 : i32
    %184 = vector.broadcast %183 : i1 to vector<16x1xi1>
    %185 = vector.broadcast %184 : vector<16x1xi1> to vector<16x1xi1>
    %186 = arith.xori %182, %185 : vector<16x1xi1>
    %187 = arith.andi %186, %180 : vector<16x1xi1>
    %188 = vector.broadcast %176 : i32 to vector<16x1xi32>
    %189 = arith.addi %178, %188 : vector<16x1xi32>
    %190 = arith.select %187, %189, %178 : vector<16x1xi1>, vector<16x1xi32>
    %c1_i32_73 = arith.constant 1 : i32
    %191 = vector.broadcast %c1_i32_73 : i32 to vector<16x1xi32>
    %192 = arith.cmpi sge, %190, %191 : vector<16x1xi32>
    %c2_i32 = arith.constant 2 : i32
    %193 = vector.broadcast %c2_i32 : i32 to vector<16x1xi32>
    %194 = arith.cmpi sle, %190, %193 : vector<16x1xi32>
    %cst_74 = arith.constant 0.000000e+00 : f32
    %195 = vector.broadcast %cst_74 : f32 to vector<16x576xf32>
    %c0_75 = arith.constant 0 : index
    %c0_76 = arith.constant 0 : index
    %196 = vector.load %arg13[%c0_75, %c0_76] : memref<16x576xf32, #tpu.memory_space<vmem>>, vector<16x576xf32>
    tpu.vector_store %arg13[%c0_75, %c0_76], %195 {strides = array<i32>} : memref<16x576xf32, #tpu.memory_space<vmem>>, vector<16x576xf32>,
    %197 = vector.extract_strided_slice %173 {offsets = [0, 0], sizes = [11, 64], strides = [1, 1]} : vector<16x64xf32> to vector<11x64xf32>
    %198 = vector.extract_strided_slice %192 {offsets = [5, 0], sizes = [11, 1], strides = [1, 1]} : vector<16x1xi1> to vector<11x1xi1>
    %cst_77 = arith.constant 0.000000e+00 : f32
    %199 = vector.shape_cast %198 : vector<11x1xi1> to vector<11x1xi1>
    %200 = vector.broadcast %199 : vector<11x1xi1> to vector<11x64xi1>
    %201 = vector.broadcast %cst_77 : f32 to vector<11x64xf32>
    %202 = arith.select %200, %197, %201 : vector<11x64xi1>, vector<11x64xf32>
    %c5 = arith.constant 5 : index
    %c0_78 = arith.constant 0 : index
    %203 = vector.load %arg13[%c5, %c0_78] : memref<16x576xf32, #tpu.memory_space<vmem>>, vector<11x64xf32>
    tpu.vector_store %arg13[%c5, %c0_78], %202 {strides = array<i32>} : memref<16x576xf32, #tpu.memory_space<vmem>>, vector<11x64xf32>,
    %204 = vector.extract_strided_slice %173 {offsets = [0, 0], sizes = [12, 64], strides = [1, 1]} : vector<16x64xf32> to vector<12x64xf32>
    %c4 = arith.constant 4 : index
    %c64_79 = arith.constant 64 : index
    %205 = vector.load %arg13[%c4, %c64_79] : memref<16x576xf32, #tpu.memory_space<vmem>>, vector<12x64xf32>
    tpu.vector_store %arg13[%c4, %c64_79], %204 {strides = array<i32>} : memref<16x576xf32, #tpu.memory_space<vmem>>, vector<12x64xf32>,
    %206 = vector.extract_strided_slice %173 {offsets = [0, 0], sizes = [13, 64], strides = [1, 1]} : vector<16x64xf32> to vector<13x64xf32>
    %207 = vector.extract_strided_slice %194 {offsets = [3, 0], sizes = [13, 1], strides = [1, 1]} : vector<16x1xi1> to vector<13x1xi1>
    %cst_80 = arith.constant 0.000000e+00 : f32
    %208 = vector.shape_cast %207 : vector<13x1xi1> to vector<13x1xi1>
    %209 = vector.broadcast %208 : vector<13x1xi1> to vector<13x64xi1>
    %210 = vector.broadcast %cst_80 : f32 to vector<13x64xf32>
    %211 = arith.select %209, %206, %210 : vector<13x64xi1>, vector<13x64xf32>
    %c3 = arith.constant 3 : index
    %c128_81 = arith.constant 128 : index
    %212 = vector.load %arg13[%c3, %c128_81] : memref<16x576xf32, #tpu.memory_space<vmem>>, vector<13x64xf32>
    tpu.vector_store %arg13[%c3, %c128_81], %211 {strides = array<i32>} : memref<16x576xf32, #tpu.memory_space<vmem>>, vector<13x64xf32>,
    %213 = vector.extract_strided_slice %173 {offsets = [0, 0], sizes = [15, 64], strides = [1, 1]} : vector<16x64xf32> to vector<15x64xf32>
    %214 = vector.extract_strided_slice %192 {offsets = [1, 0], sizes = [15, 1], strides = [1, 1]} : vector<16x1xi1> to vector<15x1xi1>
    %cst_82 = arith.constant 0.000000e+00 : f32
    %215 = vector.shape_cast %214 : vector<15x1xi1> to vector<15x1xi1>
    %216 = vector.broadcast %215 : vector<15x1xi1> to vector<15x64xi1>
    %217 = vector.broadcast %cst_82 : f32 to vector<15x64xf32>
    %218 = arith.select %216, %213, %217 : vector<15x64xi1>, vector<15x64xf32>
    %c1_83 = arith.constant 1 : index
    %c192_84 = arith.constant 192 : index
    %219 = vector.load %arg13[%c1_83, %c192_84] : memref<16x576xf32, #tpu.memory_space<vmem>>, vector<15x64xf32>
    tpu.vector_store %arg13[%c1_83, %c192_84], %218 {strides = array<i32>} : memref<16x576xf32, #tpu.memory_space<vmem>>, vector<15x64xf32>,
    %c0_85 = arith.constant 0 : index
    %c256_86 = arith.constant 256 : index
    %220 = vector.load %arg13[%c0_85, %c256_86] : memref<16x576xf32, #tpu.memory_space<vmem>>, vector<16x64xf32>
    tpu.vector_store %arg13[%c0_85, %c256_86], %173 {strides = array<i32>} : memref<16x576xf32, #tpu.memory_space<vmem>>, vector<16x64xf32>,
    %221 = vector.extract_strided_slice %173 {offsets = [1, 0], sizes = [15, 64], strides = [1, 1]} : vector<16x64xf32> to vector<15x64xf32>
    %222 = vector.extract_strided_slice %194 {offsets = [0, 0], sizes = [15, 1], strides = [1, 1]} : vector<16x1xi1> to vector<15x1xi1>
    %cst_87 = arith.constant 0.000000e+00 : f32
    %223 = vector.shape_cast %222 : vector<15x1xi1> to vector<15x1xi1>
    %224 = vector.broadcast %223 : vector<15x1xi1> to vector<15x64xi1>
    %225 = vector.broadcast %cst_87 : f32 to vector<15x64xf32>
    %226 = arith.select %224, %221, %225 : vector<15x64xi1>, vector<15x64xf32>
    %c0_88 = arith.constant 0 : index
    %c320 = arith.constant 320 : index
    %227 = vector.load %arg13[%c0_88, %c320] : memref<16x576xf32, #tpu.memory_space<vmem>>, vector<15x64xf32>
    tpu.vector_store %arg13[%c0_88, %c320], %226 {strides = array<i32>} : memref<16x576xf32, #tpu.memory_space<vmem>>, vector<15x64xf32>,
    %228 = vector.extract_strided_slice %173 {offsets = [3, 0], sizes = [13, 64], strides = [1, 1]} : vector<16x64xf32> to vector<13x64xf32>
    %229 = vector.extract_strided_slice %192 {offsets = [0, 0], sizes = [13, 1], strides = [1, 1]} : vector<16x1xi1> to vector<13x1xi1>
    %cst_89 = arith.constant 0.000000e+00 : f32
    %230 = vector.shape_cast %229 : vector<13x1xi1> to vector<13x1xi1>
    %231 = vector.broadcast %230 : vector<13x1xi1> to vector<13x64xi1>
    %232 = vector.broadcast %cst_89 : f32 to vector<13x64xf32>
    %233 = arith.select %231, %228, %232 : vector<13x64xi1>, vector<13x64xf32>
    %c0_90 = arith.constant 0 : index
    %c384 = arith.constant 384 : index
    %234 = vector.load %arg13[%c0_90, %c384] : memref<16x576xf32, #tpu.memory_space<vmem>>, vector<13x64xf32>
    tpu.vector_store %arg13[%c0_90, %c384], %233 {strides = array<i32>} : memref<16x576xf32, #tpu.memory_space<vmem>>, vector<13x64xf32>,
    %235 = vector.extract_strided_slice %173 {offsets = [4, 0], sizes = [12, 64], strides = [1, 1]} : vector<16x64xf32> to vector<12x64xf32>
    %c0_91 = arith.constant 0 : index
    %c448 = arith.constant 448 : index
    %236 = vector.load %arg13[%c0_91, %c448] : memref<16x576xf32, #tpu.memory_space<vmem>>, vector<12x64xf32>
    tpu.vector_store %arg13[%c0_91, %c448], %235 {strides = array<i32>} : memref<16x576xf32, #tpu.memory_space<vmem>>, vector<12x64xf32>,
    %237 = vector.extract_strided_slice %173 {offsets = [5, 0], sizes = [11, 64], strides = [1, 1]} : vector<16x64xf32> to vector<11x64xf32>
    %238 = vector.extract_strided_slice %194 {offsets = [0, 0], sizes = [11, 1], strides = [1, 1]} : vector<16x1xi1> to vector<11x1xi1>
    %cst_92 = arith.constant 0.000000e+00 : f32
    %239 = vector.shape_cast %238 : vector<11x1xi1> to vector<11x1xi1>
    %240 = vector.broadcast %239 : vector<11x1xi1> to vector<11x64xi1>
    %241 = vector.broadcast %cst_92 : f32 to vector<11x64xf32>
    %242 = arith.select %240, %237, %241 : vector<11x64xi1>, vector<11x64xf32>
    %c0_93 = arith.constant 0 : index
    %c512 = arith.constant 512 : index
    %243 = vector.load %arg13[%c0_93, %c512] : memref<16x576xf32, #tpu.memory_space<vmem>>, vector<11x64xf32>
    tpu.vector_store %arg13[%c0_93, %c512], %242 {strides = array<i32>} : memref<16x576xf32, #tpu.memory_space<vmem>>, vector<11x64xf32>,
    %c0_94 = arith.constant 0 : index
    %c0_95 = arith.constant 0 : index
    %244 = vector.load %arg13[%c0_94, %c0_95] : memref<16x576xf32, #tpu.memory_space<vmem>>, vector<16x576xf32>
    %c0_96 = arith.constant 0 : index
    %c0_97 = arith.constant 0 : index
    %245 = vector.load %arg6[%c0_96, %c0_97] : memref<576x128xf32, #tpu.memory_space<vmem>>, vector<576x128xf32>
    %cst_98 = arith.constant dense<0.000000e+00> : vector<16x128xf32>
    %246 = tpu.matmul %244, %245, %cst_98 {dimension_numbers = #tpu.dot_dimension_numbers<[1], [0], [0], [1], [0, 0, 1, 1], [], []>} : vector<16x576xf32>, vector<576x128xf32>, vector<16x128xf32> -> vector<16x128xf32>
    %c0_99 = arith.constant 0 : index
    %c0_100 = arith.constant 0 : index
    %247 = vector.load %arg7[%c0_99, %c0_100] : memref<1x128xf32, #tpu.memory_space<vmem>>, vector<1x128xf32>
    %248 = vector.broadcast %247 : vector<1x128xf32> to vector<16x128xf32>
    %249 = arith.addf %246, %248 : vector<16x128xf32>
    %cst_101 = arith.constant 0.000000e+00 : f32
    %250 = vector.broadcast %cst_101 : f32 to vector<16x128xf32>
    %251 = arith.maximumf %249, %250 : vector<16x128xf32>
    %c0_102 = arith.constant 0 : index
    %c0_103 = arith.constant 0 : index
    %c0_104 = arith.constant 0 : index
    %252 = vector.load %arg10[%c0_102, %c0_103, %c0_104] : memref<1x16x128xf32, #tpu.memory_space<vmem>>, vector<1x16x128xf32>
    %253 = vector.shape_cast %252 : vector<1x16x128xf32> to vector<16x128xf32>
    %254 = vector.shape_cast %251 : vector<16x128xf32> to vector<1x16x128xf32>
    tpu.vector_store %arg10[%c0_102, %c0_103, %c0_104], %254 {strides = array<i32>} : memref<1x16x128xf32, #tpu.memory_space<vmem>>, vector<1x16x128xf32>,
    return
  }
  func.func @transform_0(%arg0: i32) -> (i32, i32, i32) {
    %c0_i32 = arith.constant 0 : i32
    %c0_i32_0 = arith.constant 0 : i32
    %c0_i32_1 = arith.constant 0 : i32
    return %arg0, %c0_i32, %c0_i32_0 : i32, i32, i32
  }
  func.func @transform_1(%arg0: i32) -> (i32, i32) {
    %c0_i32 = arith.constant 0 : i32
    %c0_i32_0 = arith.constant 0 : i32
    %c0_i32_1 = arith.constant 0 : i32
    return %c0_i32, %c0_i32_0 : i32, i32
  }
  func.func @transform_2(%arg0: i32) -> (i32, i32) {
    %c0_i32 = arith.constant 0 : i32
    %c0_i32_0 = arith.constant 0 : i32
    %c0_i32_1 = arith.constant 0 : i32
    return %c0_i32, %c0_i32_0 : i32, i32
  }
  func.func @transform_3(%arg0: i32) -> (i32, i32) {
    %c0_i32 = arith.constant 0 : i32
    %c0_i32_0 = arith.constant 0 : i32
    %c0_i32_1 = arith.constant 0 : i32
    return %c0_i32, %c0_i32_0 : i32, i32
  }
  func.func @transform_4(%arg0: i32) -> (i32, i32) {
    %c0_i32 = arith.constant 0 : i32
    %c0_i32_0 = arith.constant 0 : i32
    %c0_i32_1 = arith.constant 0 : i32
    return %c0_i32, %c0_i32_0 : i32, i32
  }
  func.func @transform_5(%arg0: i32) -> (i32, i32) {
    %c0_i32 = arith.constant 0 : i32
    %c0_i32_0 = arith.constant 0 : i32
    %c0_i32_1 = arith.constant 0 : i32
    return %c0_i32, %c0_i32_0 : i32, i32
  }
  func.func @transform_6(%arg0: i32) -> (i32, i32) {
    %c0_i32 = arith.constant 0 : i32
    %c0_i32_0 = arith.constant 0 : i32
    %c0_i32_1 = arith.constant 0 : i32
    return %c0_i32, %c0_i32_0 : i32, i32
  }
  func.func @transform_7(%arg0: i32) -> (i32, i32) {
    %c0_i32 = arith.constant 0 : i32
    %c0_i32_0 = arith.constant 0 : i32
    %c0_i32_1 = arith.constant 0 : i32
    return %c0_i32, %c0_i32_0 : i32, i32
  }
  func.func @transform_8(%arg0: i32) -> (i32, i32) {
    %c0_i32 = arith.constant 0 : i32
    %c0_i32_0 = arith.constant 0 : i32
    %c0_i32_1 = arith.constant 0 : i32
    return %c0_i32, %c0_i32_0 : i32, i32
  }
  func.func @transform_9(%arg0: i32) -> (i32, i32, i32) {
    %c0_i32 = arith.constant 0 : i32
    %c0_i32_0 = arith.constant 0 : i32
    %c0_i32_1 = arith.constant 0 : i32
    return %arg0, %c0_i32, %c0_i32_0 : i32, i32, i32
  }
}

</mosaic_0001>

<llo_original>
// kernel: cnn_model_forward.1
$region0: #{cnn_model_forward.1}
  #allocation0 [shape = 'u32[]', space=smem, size = 0x4, offset = 0x4, fixed_abs, tag = 'smem constant byte address 0x4 - core index']
  #allocation1 [shape = 'u32[72,128]{1,0:T(1,128)}', space=vmem, size = 0x9000, scoped, tag = 'internal scratch']
  #allocation2 [shape = 'f32[256,72]{1,0:T(8,128)}', space=vmem, size = 0x20000, scoped, tag = 'scratch operand']
  #allocation3 [shape = 'f32[64,288]{1,0:T(8,128)}', space=vmem, size = 0x18000, scoped, tag = 'scratch operand']
  #allocation4 [shape = 'f32[16,576]{1,0:T(8,128)}', space=vmem, size = 0xa000, scoped, tag = 'scratch operand']
  %s0 = inlined_call_operand.vmem [shape: f32[2,256,8], index: 0, kind: input, shape index: {}]
  %s1 = inlined_call_operand.vmem [shape: f32[72,32], index: 1, kind: input, shape index: {}]
  %s2 = inlined_call_operand.vmem [shape: f32[1,32], index: 2, kind: input, shape index: {}]
  %s3 = inlined_call_operand.hbm [shape: f32[288,64], index: 3, kind: input, shape index: {}]
  %s4 = inlined_call_operand.vmem [shape: f32[1,64], index: 4, kind: input, shape index: {}]
  %s5 = inlined_call_operand.vmem [shape: f32[576,128], index: 5, kind: input, shape index: {}]
  %s6 = inlined_call_operand.vmem [shape: f32[1,128], index: 6, kind: input, shape index: {}]
  %s7 = inlined_call_operand.vmem [shape: f32[64,239], index: 7, kind: input, shape index: {}]
  %s8 = inlined_call_operand.hbm [shape: f32[16,55], index: 8, kind: input, shape index: {}]
  %s9 = inlined_call_operand.hbm [shape: f32[2,16,128], index: 9, kind: output, shape index: {}]
  %s10 = sld [smem:[#allocation0]]
  $region77: #{cnn_model_forward.1} parent=0
    _
  %s12 = ssub.s32 1, %s10
  %s13 = scalar_select 0, %s12, %s10
  $region1: #{cnn_model_forward.1} parent=0
    #allocation5 [shape = 'u8[147456]{0}', space=vmem, size = 0x24000, scoped, tag = 'input window, operand 3, single buffered']
    #allocation6 [shape = 's32[2]{0}', space=sflag, size = 0x8, scoped, tag = 'scoped memory for cnn_model_forward.1']
    #allocation7 [shape = 's32[2]{0}', space=sflag, size = 0x8, scoped, tag = 'scoped memory for cnn_model_forward.1']
    #allocation8 [shape = 'u8[8192]{0}', space=vmem, size = 0x2000, scoped, tag = 'input window, operand 8, single buffered']
    #allocation9 [shape = 's32[1]{0}', space=sflag, size = 0x4, scoped, tag = 'scoped memory for cnn_model_forward.1']
    #allocation10 [shape = 'u8[16384]{0}', space=vmem, size = 0x4000, scoped, tag = 'output window, operand 0']
    %14 = vsyncpa [#allocation6], 0
    %15 = vsyncpa [#allocation9], 0
    %16 = vsyncpa [#allocation7], 0
    %s17 = scalar_lea.sflag [#allocation7], 1
    %18 = vsyncpa %s17, 0
    loop: start=0, step=1, limit=4
    $region2: #{cnn_model_forward.1} parent=1 // loop_pre_header
      _
    $region3: #{cnn_model_forward.1} parent=1 // loop_header
      %s20 = sphi 0, %s24
      %p21 = scmp.ge.s32.totalorder %s20, 4
      %s30 = sphi 0, %s32
      %s33 = sphi 0, %s30
      %s34 = sphi 0, %s33
      %s50 = sphi 0, %s34
      %s54 = sphi 0, %s54
      %s56 = sphi 0, %s54
      %s57 = sphi 0, %s56
      %s71 = sphi 0, %s57
      %s75 = sphi 0, %s75
      %s77 = sphi 0, %s75
      %s78 = sphi 0, %s77
      %s92 = sphi 0, %s78
      %s96 = sphi 0, %s96
      %s98 = sphi 0, %s96
      %s99 = sphi 0, %s98
      %s113 = sphi 0, %s99
      %s117 = sphi 0, %s117
      %s119 = sphi 0, %s117
      %s120 = sphi 0, %s119
      %s134 = sphi 0, %s120
      %s138 = sphi 0, %s138
      %s140 = sphi 0, %s138
      %s141 = sphi 0, %s140
      %s155 = sphi 0, %s141
      %s159 = sphi 0, %s159
      %s161 = sphi 0, %s159
      %s162 = sphi 0, %s161
      %s176 = sphi 0, %s162
      %s180 = sphi 0, %s180
      %s182 = sphi 0, %s180
      %s183 = sphi 0, %s182
      %s197 = sphi 0, %s183
      %s201 = sphi 0, %s201
      %s203 = sphi 0, %s201
      %s204 = sphi 0, %s203
      %s218 = sphi 0, %s204
      %s224 = sphi 0, %s226
      %s227 = sphi 0, %s224
      %s228 = sphi 0, %s227
      %s244 = sphi 0, %s228
    $region4: #{cnn_model_forward.1} parent=1 // loop_header_branch
      %23 = sbr.rel (%p21) target = $region8
    $region5: #{cnn_model_forward.1} parent=1 // loop_body
      %s25 = ssub.s32 %s20, 1
      %s26 = ssub.s32 %s20, 2
      %s27 = sadd.s32 %s20, 1
      %s28 = ssub.s32 %s20, %s27
      %p29 = scmp.eq.s32.totalorder %s28, 0
      %s31 = sadd.s32 %s30, 1
      %s32 = scalar_select %p29, %s30, %s31
      %p35 = pneg %p29
      %p36 = scmp.eq.s32.totalorder %s20, 1
      %p37 = por %p35, %p36
      %p38 = scmp.ne.s32.totalorder %s30, %s33
      %p39 = scmp.eq.s32.totalorder %s20, 0
      %p40 = por %p38, %p39
      %p41 = scmp.ne.s32.totalorder %s30, %s33
      %p42 = scmp.eq.s32.totalorder %s25, 1
      %p43 = por %p41, %p42
      %p44 = scmp.ne.s32.totalorder %s33, %s34
      %p45 = scmp.eq.s32.totalorder %s25, 0
      %p46 = por %p44, %p45
      %p47 = scmp.ne.s32.totalorder %s33, %s34
      %p48 = scmp.eq.s32.totalorder %s26, 1
      %p49 = por %p47, %p48
      %p51 = scmp.ne.s32.totalorder %s34, %s50
      %p52 = scmp.eq.s32.totalorder %s26, 0
      %p53 = por %p51, %p52
      %s55 = sadd.s32 %s54, 1
      %p58 = scmp.eq.s32.totalorder %s20, 1
      %p59 = scmp.ne.s32.totalorder %s54, %s56
      %p60 = scmp.eq.s32.totalorder %s20, 0
      %p61 = por %p59, %p60
      %p62 = scmp.ne.s32.totalorder %s54, %s56
      %p63 = scmp.eq.s32.totalorder %s25, 1
      %p64 = por %p62, %p63
      %p65 = scmp.ne.s32.totalorder %s56, %s57
      %p66 = scmp.eq.s32.totalorder %s25, 0
      %p67 = por %p65, %p66
      %p68 = scmp.ne.s32.totalorder %s56, %s57
      %p69 = scmp.eq.s32.totalorder %s26, 1
      %p70 = por %p68, %p69
      %p72 = scmp.ne.s32.totalorder %s57, %s71
      %p73 = scmp.eq.s32.totalorder %s26, 0
      %p74 = por %p72, %p73
      %s76 = sadd.s32 %s75, 1
      %p79 = scmp.eq.s32.totalorder %s20, 1
      %p80 = scmp.ne.s32.totalorder %s75, %s77
      %p81 = scmp.eq.s32.totalorder %s20, 0
      %p82 = por %p80, %p81
      %p83 = scmp.ne.s32.totalorder %s75, %s77
      %p84 = scmp.eq.s32.totalorder %s25, 1
      %p85 = por %p83, %p84
      %p86 = scmp.ne.s32.totalorder %s77, %s78
      %p87 = scmp.eq.s32.totalorder %s25, 0
      %p88 = por %p86, %p87
      %p89 = scmp.ne.s32.totalorder %s77, %s78
      %p90 = scmp.eq.s32.totalorder %s26, 1
      %p91 = por %p89, %p90
      %p93 = scmp.ne.s32.totalorder %s78, %s92
      %p94 = scmp.eq.s32.totalorder %s26, 0
      %p95 = por %p93, %p94
      %s97 = sadd.s32 %s96, 1
      %p100 = scmp.eq.s32.totalorder %s20, 1
      %p101 = scmp.ne.s32.totalorder %s96, %s98
      %p102 = scmp.eq.s32.totalorder %s20, 0
      %p103 = por %p101, %p102
      %p104 = scmp.ne.s32.totalorder %s96, %s98
      %p105 = scmp.eq.s32.totalorder %s25, 1
      %p106 = por %p104, %p105
      %p107 = scmp.ne.s32.totalorder %s98, %s99
      %p108 = scmp.eq.s32.totalorder %s25, 0
      %p109 = por %p107, %p108
      %p110 = scmp.ne.s32.totalorder %s98, %s99
      %p111 = scmp.eq.s32.totalorder %s26, 1
      %p112 = por %p110, %p111
      %p114 = scmp.ne.s32.totalorder %s99, %s113
      %p115 = scmp.eq.s32.totalorder %s26, 0
      %p116 = por %p114, %p115
      %s118 = sadd.s32 %s117, 1
      %p121 = scmp.eq.s32.totalorder %s20, 1
      %p122 = scmp.ne.s32.totalorder %s117, %s119
      %p123 = scmp.eq.s32.totalorder %s20, 0
      %p124 = por %p122, %p123
      %p125 = scmp.ne.s32.totalorder %s117, %s119
      %p126 = scmp.eq.s32.totalorder %s25, 1
      %p127 = por %p125, %p126
      %p128 = scmp.ne.s32.totalorder %s119, %s120
      %p129 = scmp.eq.s32.totalorder %s25, 0
      %p130 = por %p128, %p129
      %p131 = scmp.ne.s32.totalorder %s119, %s120
      %p132 = scmp.eq.s32.totalorder %s26, 1
      %p133 = por %p131, %p132
      %p135 = scmp.ne.s32.totalorder %s120, %s134
      %p136 = scmp.eq.s32.totalorder %s26, 0
      %p137 = por %p135, %p136
      %s139 = sadd.s32 %s138, 1
      %p142 = scmp.eq.s32.totalorder %s20, 1
      %p143 = scmp.ne.s32.totalorder %s138, %s140
      %p144 = scmp.eq.s32.totalorder %s20, 0
      %p145 = por %p143, %p144
      %p146 = scmp.ne.s32.totalorder %s138, %s140
      %p147 = scmp.eq.s32.totalorder %s25, 1
      %p148 = por %p146, %p147
      %p149 = scmp.ne.s32.totalorder %s140, %s141
      %p150 = scmp.eq.s32.totalorder %s25, 0
      %p151 = por %p149, %p150
      %p152 = scmp.ne.s32.totalorder %s140, %s141
      %p153 = scmp.eq.s32.totalorder %s26, 1
      %p154 = por %p152, %p153
      %p156 = scmp.ne.s32.totalorder %s141, %s155
      %p157 = scmp.eq.s32.totalorder %s26, 0
      %p158 = por %p156, %p157
      %s160 = sadd.s32 %s159, 1
      %p163 = scmp.eq.s32.totalorder %s20, 1
      %p164 = scmp.ne.s32.totalorder %s159, %s161
      %p165 = scmp.eq.s32.totalorder %s20, 0
      %p166 = por %p164, %p165
      %p167 = scmp.ne.s32.totalorder %s159, %s161
      %p168 = scmp.eq.s32.totalorder %s25, 1
      %p169 = por %p167, %p168
      %p170 = scmp.ne.s32.totalorder %s161, %s162
      %p171 = scmp.eq.s32.totalorder %s25, 0
      %p172 = por %p170, %p171
      %p173 = scmp.ne.s32.totalorder %s161, %s162
      %p174 = scmp.eq.s32.totalorder %s26, 1
      %p175 = por %p173, %p174
      %p177 = scmp.ne.s32.totalorder %s162, %s176
      %p178 = scmp.eq.s32.totalorder %s26, 0
      %p179 = por %p177, %p178
      %s181 = sadd.s32 %s180, 1
      %p184 = scmp.eq.s32.totalorder %s20, 1
      %p185 = scmp.ne.s32.totalorder %s180, %s182
      %p186 = scmp.eq.s32.totalorder %s20, 0
      %p187 = por %p185, %p186
      %p188 = scmp.ne.s32.totalorder %s180, %s182
      %p189 = scmp.eq.s32.totalorder %s25, 1
      %p190 = por %p188, %p189
      %p191 = scmp.ne.s32.totalorder %s182, %s183
      %p192 = scmp.eq.s32.totalorder %s25, 0
      %p193 = por %p191, %p192
      %p194 = scmp.ne.s32.totalorder %s182, %s183
      %p195 = scmp.eq.s32.totalorder %s26, 1
      %p196 = por %p194, %p195
      %p198 = scmp.ne.s32.totalorder %s183, %s197
      %p199 = scmp.eq.s32.totalorder %s26, 0
      %p200 = por %p198, %p199
      %s202 = sadd.s32 %s201, 1
      %p205 = scmp.eq.s32.totalorder %s20, 1
      %p206 = scmp.ne.s32.totalorder %s201, %s203
      %p207 = scmp.eq.s32.totalorder %s20, 0
      %p208 = por %p206, %p207
      %p209 = scmp.ne.s32.totalorder %s201, %s203
      %p210 = scmp.eq.s32.totalorder %s25, 1
      %p211 = por %p209, %p210
      %p212 = scmp.ne.s32.totalorder %s203, %s204
      %p213 = scmp.eq.s32.totalorder %s25, 0
      %p214 = por %p212, %p213
      %p215 = scmp.ne.s32.totalorder %s203, %s204
      %p216 = scmp.eq.s32.totalorder %s26, 1
      %p217 = por %p215, %p216
      %p219 = scmp.ne.s32.totalorder %s204, %s218
      %p220 = scmp.eq.s32.totalorder %s26, 0
      %p221 = por %p219, %p220
      %s222 = ssub.s32 %s20, %s27
      %p223 = scmp.eq.s32.totalorder %s222, 0
      %s225 = sadd.s32 %s224, 1
      %s226 = scalar_select %p223, %s224, %s225
      %p229 = pneg %p223
      %p230 = scmp.eq.s32.totalorder %s20, 1
      %p231 = por %p229, %p230
      %p232 = scmp.ne.s32.totalorder %s224, %s227
      %p233 = scmp.eq.s32.totalorder %s20, 0
      %p234 = por %p232, %p233
      %p235 = scmp.ne.s32.totalorder %s224, %s227
      %p236 = scmp.eq.s32.totalorder %s25, 1
      %p237 = por %p235, %p236
      %p238 = scmp.ne.s32.totalorder %s227, %s228
      %p239 = scmp.eq.s32.totalorder %s25, 0
      %p240 = por %p238, %p239
      %p241 = scmp.ne.s32.totalorder %s227, %s228
      %p242 = scmp.eq.s32.totalorder %s26, 1
      %p243 = por %p241, %p242
      %p245 = scmp.ne.s32.totalorder %s228, %s244
      %p246 = scmp.eq.s32.totalorder %s26, 0
      %p247 = por %p245, %p246
      %p248 = scmp.le.s32.totalorder 1, %s20
      %p249 = scmp.lt.s32.totalorder %s20, 3
      %p250 = pnand %p248, %p249
      %p251 = pneg %p250
      // Predicated region
      $region9: #{cnn_model_forward.1} parent=5 // pred_check
        _
      $region10: #{cnn_model_forward.1} parent=5 // pred_check_branch
        %253 = sbr.rel (%p250) target = $region12
      $region11: #{cnn_model_forward.1} parent=5 // pred_region
        %s254 = ssub.s32 %s20, 1
        // Predicated region
        $region13: #{cnn_model_forward.1} parent=11 // pred_check
          %p255 = pneg %p67
        $region14: #{cnn_model_forward.1} parent=11 // pred_check_branch
          %257 = sbr.rel (%p255) target = $region16
        $region15: #{cnn_model_forward.1} parent=11 // pred_region
          _
        $region16: #{cnn_model_forward.1} parent=11 // pred_fallthru
          _
        // Predicated region
        $region17: #{cnn_model_forward.1} parent=11 // pred_check
          %p258 = pneg %p88
        $region18: #{cnn_model_forward.1} parent=11 // pred_check_branch
          %260 = sbr.rel (%p258) target = $region20
        $region19: #{cnn_model_forward.1} parent=11 // pred_region
          _
        $region20: #{cnn_model_forward.1} parent=11 // pred_fallthru
          _
        // Predicated region
        $region21: #{cnn_model_forward.1} parent=11 // pred_check
          %p261 = pneg %p109
        $region22: #{cnn_model_forward.1} parent=11 // pred_check_branch
          %263 = sbr.rel (%p261) target = $region24
        $region23: #{cnn_model_forward.1} parent=11 // pred_region
          %265 = vsyncadd [#allocation6], 0
          %s266 = sshll.u32 %s3, 4
          %s267 = int_to_ptr.hbm [resolvable:$true] %s266
          %s268 = sshll.u32 [#allocation5], 4
          %s269 = int_to_ptr.vmem [resolvable:$true] %s268
          %274 = dma.hbm_to_vmem [thread:$0]  %s267, 4608, %s269, [#allocation6], 128, 128, 8
        $region24: #{cnn_model_forward.1} parent=11 // pred_fallthru
          _
        // Predicated region
        $region25: #{cnn_model_forward.1} parent=11 // pred_check
          %p275 = pneg %p130
        $region26: #{cnn_model_forward.1} parent=11 // pred_check_branch
          %277 = sbr.rel (%p275) target = $region28
        $region27: #{cnn_model_forward.1} parent=11 // pred_region
          _
        $region28: #{cnn_model_forward.1} parent=11 // pred_fallthru
          _
        // Predicated region
        $region29: #{cnn_model_forward.1} parent=11 // pred_check
          %p278 = pneg %p151
        $region30: #{cnn_model_forward.1} parent=11 // pred_check_branch
          %280 = sbr.rel (%p278) target = $region32
        $region31: #{cnn_model_forward.1} parent=11 // pred_region
          _
        $region32: #{cnn_model_forward.1} parent=11 // pred_fallthru
          _
        // Predicated region
        $region33: #{cnn_model_forward.1} parent=11 // pred_check
          %p281 = pneg %p172
        $region34: #{cnn_model_forward.1} parent=11 // pred_check_branch
          %283 = sbr.rel (%p281) target = $region36
        $region35: #{cnn_model_forward.1} parent=11 // pred_region
          _
        $region36: #{cnn_model_forward.1} parent=11 // pred_fallthru
          _
        // Predicated region
        $region37: #{cnn_model_forward.1} parent=11 // pred_check
          %p284 = pneg %p193
        $region38: #{cnn_model_forward.1} parent=11 // pred_check_branch
          %286 = sbr.rel (%p284) target = $region40
        $region39: #{cnn_model_forward.1} parent=11 // pred_region
          _
        $region40: #{cnn_model_forward.1} parent=11 // pred_fallthru
          _
        // Predicated region
        $region41: #{cnn_model_forward.1} parent=11 // pred_check
          %p287 = pneg %p214
        $region42: #{cnn_model_forward.1} parent=11 // pred_check_branch
          %289 = sbr.rel (%p287) target = $region44
        $region43: #{cnn_model_forward.1} parent=11 // pred_region
          %291 = vsyncadd [#allocation9], 0
          %s292 = sshll.u32 %s8, 4
          %s293 = int_to_ptr.hbm [resolvable:$true] %s292
          %s294 = sshll.u32 [#allocation8], 4
          %s295 = int_to_ptr.vmem [resolvable:$true] %s294
          %300 = dma.hbm_to_vmem [thread:$0]  %s293, 256, %s295, [#allocation9], 128, 128, 8
        $region44: #{cnn_model_forward.1} parent=11 // pred_fallthru
          _
      $region12: #{cnn_model_forward.1} parent=5 // pred_fallthru
        _
      %p301 = scmp.lt.s32.totalorder %s20, 2
      // Predicated region
      $region45: #{cnn_model_forward.1} parent=5 // pred_check
        %p302 = pneg %p301
      $region46: #{cnn_model_forward.1} parent=5 // pred_check_branch
        %304 = sbr.rel (%p302) target = $region48
      $region47: #{cnn_model_forward.1} parent=5 // pred_region
        // Predicated region
        $region49: #{cnn_model_forward.1} parent=47 // pred_check
          %p305 = pneg %p40
        $region50: #{cnn_model_forward.1} parent=47 // pred_check_branch
          %307 = sbr.rel (%p305) target = $region52
        $region51: #{cnn_model_forward.1} parent=47 // pred_region
          %p308 = scmp.lt.s32.totalorder %s20, 1
          %s309 = scalar_select %p308, %s20, 1
          %s310 = smul.addr %s309, 32
          %s311 = smul.addr %s310, 8
          %s312 = scalar_lea.vmem %s0, %s311
        $region52: #{cnn_model_forward.1} parent=47 // pred_fallthru
          _
      $region48: #{cnn_model_forward.1} parent=5 // pred_fallthru
        _
      %p313 = scmp.le.s32.totalorder 1, %s20
      %p314 = scmp.lt.s32.totalorder %s20, 3
      %p315 = pnand %p313, %p314
      %p316 = pneg %p315
      // Predicated region
      $region53: #{cnn_model_forward.1} parent=5 // pred_check
        _
      $region54: #{cnn_model_forward.1} parent=5 // pred_check_branch
        %318 = sbr.rel (%p315) target = $region56
      $region55: #{cnn_model_forward.1} parent=5 // pred_region
        %s319 = ssub.s32 %s20, 1
        // Predicated region
        $region57: #{cnn_model_forward.1} parent=55 // pred_check
          %p320 = pneg %p109
        $region58: #{cnn_model_forward.1} parent=55 // pred_check_branch
          %322 = sbr.rel (%p320) target = $region60
        $region59: #{cnn_model_forward.1} parent=55 // pred_region
          %324 = dma.done [#allocation6], 4608
        $region60: #{cnn_model_forward.1} parent=55 // pred_fallthru
          _
        // Predicated region
        $region61: #{cnn_model_forward.1} parent=55 // pred_check
          %p325 = pneg %p214
        $region62: #{cnn_model_forward.1} parent=55 // pred_check_branch
          %327 = sbr.rel (%p325) target = $region64
        $region63: #{cnn_model_forward.1} parent=55 // pred_region
          %329 = dma.done [#allocation9], 256
        $region64: #{cnn_model_forward.1} parent=55 // pred_fallthru
          _
        %p330 = scmp.lt.s32.totalorder %s25, 1
        %s331 = scalar_select %p330, %s25, 1
        %s332 = smul.addr %s331, 32
        %s333 = smul.addr %s332, 8
        %s334 = scalar_lea.vmem %s0, %s333
        %p335 = pneg %p46
        %p336 = pneg %p43
        %p337 = pneg %p67
        %p338 = pneg %p64
        %p339 = pneg %p88
        %p340 = pneg %p85
        %p341 = pneg %p109
        %p342 = pneg %p106
        %p343 = pneg %p130
        %p344 = pneg %p127
        %p345 = pneg %p151
        %p346 = pneg %p148
        %p347 = pneg %p172
        %p348 = pneg %p169
        %p349 = pneg %p193
        %p350 = pneg %p190
        %p351 = pneg %p214
        %p352 = pneg %p211
        %p353 = pneg %p240
        %p354 = pneg %p237
        %s355 = sand.u32 %s227, 1
        %s356 = scalar_lea.sflag [#allocation7], %s355
        %s357 = sand.u32 %s227, 1
        %s358 = smul.addr %s357, 16
        %s359 = scalar_lea.vmem [#allocation10], %s358
        %p360 = scmp.lt.s32.totalorder %s25, 1
        %s361 = scalar_select %p360, %s25, 1
        %s362 = smul.addr %s361, 32
        %s363 = smul.addr %s362, 8
        %s364 = scalar_lea.vmem %s0, %s363
        %v365 = vld [vmem:[%s364] sm:$0xff]
        %v366 = vld [vmem:[%s364 + $0x8] sm:$0xff]
        %v367 = vld [vmem:[%s364 + $0x10] sm:$0xff]
        %v368 = vld [vmem:[%s364 + $0x18] sm:$0xff]
        %v369 = vld [vmem:[%s364 + $0x20] sm:$0xff]
        %v370 = vld [vmem:[%s364 + $0x28] sm:$0xff]
        %v371 = vld [vmem:[%s364 + $0x30] sm:$0xff]
        %v372 = vld [vmem:[%s364 + $0x38] sm:$0xff]
        %v373 = vld [vmem:[%s364 + $0x40] sm:$0xff]
        %v374 = vld [vmem:[%s364 + $0x48] sm:$0xff]
        %v375 = vld [vmem:[%s364 + $0x50] sm:$0xff]
        %v376 = vld [vmem:[%s364 + $0x58] sm:$0xff]
        %v377 = vld [vmem:[%s364 + $0x60] sm:$0xff]
        %v378 = vld [vmem:[%s364 + $0x68] sm:$0xff]
        %v379 = vld [vmem:[%s364 + $0x70] sm:$0xff]
        %v380 = vld [vmem:[%s364 + $0x78] sm:$0xff]
        %v381 = vld [vmem:[%s364 + $0x80] sm:$0xff]
        %v382 = vld [vmem:[%s364 + $0x88] sm:$0xff]
        %v383 = vld [vmem:[%s364 + $0x90] sm:$0xff]
        %v384 = vld [vmem:[%s364 + $0x98] sm:$0xff]
        %v385 = vld [vmem:[%s364 + $0xa0] sm:$0xff]
        %v386 = vld [vmem:[%s364 + $0xa8] sm:$0xff]
        %v387 = vld [vmem:[%s364 + $0xb0] sm:$0xff]
        %v388 = vld [vmem:[%s364 + $0xb8] sm:$0xff]
        %v389 = vld [vmem:[%s364 + $0xc0] sm:$0xff]
        %v390 = vld [vmem:[%s364 + $0xc8] sm:$0xff]
        %v391 = vld [vmem:[%s364 + $0xd0] sm:$0xff]
        %v392 = vld [vmem:[%s364 + $0xd8] sm:$0xff]
        %v393 = vld [vmem:[%s364 + $0xe0] sm:$0xff]
        %v394 = vld [vmem:[%s364 + $0xe8] sm:$0xff]
        %v395 = vld [vmem:[%s364 + $0xf0] sm:$0xff]
        %v396 = vld [vmem:[%s364 + $0xf8] sm:$0xff]
        %v397 = vlaneseq
        %v398 = vshrl.u32 %v397, 7
        %v399 = vadd.s32 %v398, 8
        %v400 = vadd.s32 %v398, 16
        %v401 = vadd.s32 %v398, 24
        %v402 = vadd.s32 %v398, 32
        %v403 = vadd.s32 %v398, 40
        %v404 = vadd.s32 %v398, 48
        %v405 = vadd.s32 %v398, 56
        %v406 = vadd.s32 %v398, 64
        %v407 = vadd.s32 %v398, 72
        %v408 = vadd.s32 %v398, 80
        %v409 = vadd.s32 %v398, 88
        %v410 = vadd.s32 %v398, 96
        %v411 = vadd.s32 %v398, 104
        %v412 = vadd.s32 %v398, 112
        %v413 = vadd.s32 %v398, 120
        %v414 = vadd.s32 %v398, 128
        %v415 = vadd.s32 %v398, 136
        %v416 = vadd.s32 %v398, 144
        %v417 = vadd.s32 %v398, 152
        %v418 = vadd.s32 %v398, 160
        %v419 = vadd.s32 %v398, 168
        %v420 = vadd.s32 %v398, 176
        %v421 = vadd.s32 %v398, 184
        %v422 = vadd.s32 %v398, 192
        %v423 = vadd.s32 %v398, 200
        %v424 = vadd.s32 %v398, 208
        %v425 = vadd.s32 %v398, 216
        %v426 = vadd.s32 %v398, 224
        %v427 = vadd.s32 %v398, 232
        %v428 = vadd.s32 %v398, 240
        %v429 = vadd.s32 %v398, 248
        %vm430 = vcmp.lt.s32.totalorder %v398, 0
        %v431 = vsub.s32 0, %v398
        %v432 = vsel %vm430, %v431, %v398
        %v433 = vshrl.u32 %v432, 4
        %v434 = vand.u32 %v432, 15
        %v435 = vsub.s32 0, %v434
        %v436 = vsel %vm430, %v435, %v434
        %vm437 = vcmp.lt.s32.totalorder %v399, 0
        %v438 = vsub.s32 0, %v399
        %v439 = vsel %vm437, %v438, %v399
        %v440 = vshrl.u32 %v439, 4
        %v441 = vand.u32 %v439, 15
        %v442 = vsub.s32 0, %v441
        %v443 = vsel %vm437, %v442, %v441
        %vm444 = vcmp.lt.s32.totalorder %v400, 0
        %v445 = vsub.s32 0, %v400
        %v446 = vsel %vm444, %v445, %v400
        %v447 = vshrl.u32 %v446, 4
        %v448 = vand.u32 %v446, 15
        %v449 = vsub.s32 0, %v448
        %v450 = vsel %vm444, %v449, %v448
        %vm451 = vcmp.lt.s32.totalorder %v401, 0
        %v452 = vsub.s32 0, %v401
        %v453 = vsel %vm451, %v452, %v401
        %v454 = vshrl.u32 %v453, 4
        %v455 = vand.u32 %v453, 15
        %v456 = vsub.s32 0, %v455
        %v457 = vsel %vm451, %v456, %v455
        %vm458 = vcmp.lt.s32.totalorder %v402, 0
        %v459 = vsub.s32 0, %v402
        %v460 = vsel %vm458, %v459, %v402
        %v461 = vshrl.u32 %v460, 4
        %v462 = vand.u32 %v460, 15
        %v463 = vsub.s32 0, %v462
        %v464 = vsel %vm458, %v463, %v462
        %vm465 = vcmp.lt.s32.totalorder %v403, 0
        %v466 = vsub.s32 0, %v403
        %v467 = vsel %vm465, %v466, %v403
        %v468 = vshrl.u32 %v467, 4
        %v469 = vand.u32 %v467, 15
        %v470 = vsub.s32 0, %v469
        %v471 = vsel %vm465, %v470, %v469
        %vm472 = vcmp.lt.s32.totalorder %v404, 0
        %v473 = vsub.s32 0, %v404
        %v474 = vsel %vm472, %v473, %v404
        %v475 = vshrl.u32 %v474, 4
        %v476 = vand.u32 %v474, 15
        %v477 = vsub.s32 0, %v476
        %v478 = vsel %vm472, %v477, %v476
        %vm479 = vcmp.lt.s32.totalorder %v405, 0
        %v480 = vsub.s32 0, %v405
        %v481 = vsel %vm479, %v480, %v405
        %v482 = vshrl.u32 %v481, 4
        %v483 = vand.u32 %v481, 15
        %v484 = vsub.s32 0, %v483
        %v485 = vsel %vm479, %v484, %v483
        %vm486 = vcmp.lt.s32.totalorder %v406, 0
        %v487 = vsub.s32 0, %v406
        %v488 = vsel %vm486, %v487, %v406
        %v489 = vshrl.u32 %v488, 4
        %v490 = vand.u32 %v488, 15
        %v491 = vsub.s32 0, %v490
        %v492 = vsel %vm486, %v491, %v490
        %vm493 = vcmp.lt.s32.totalorder %v407, 0
        %v494 = vsub.s32 0, %v407
        %v495 = vsel %vm493, %v494, %v407
        %v496 = vshrl.u32 %v495, 4
        %v497 = vand.u32 %v495, 15
        %v498 = vsub.s32 0, %v497
        %v499 = vsel %vm493, %v498, %v497
        %vm500 = vcmp.lt.s32.totalorder %v408, 0
        %v501 = vsub.s32 0, %v408
        %v502 = vsel %vm500, %v501, %v408
        %v503 = vshrl.u32 %v502, 4
        %v504 = vand.u32 %v502, 15
        %v505 = vsub.s32 0, %v504
        %v506 = vsel %vm500, %v505, %v504
        %vm507 = vcmp.lt.s32.totalorder %v409, 0
        %v508 = vsub.s32 0, %v409
        %v509 = vsel %vm507, %v508, %v409
        %v510 = vshrl.u32 %v509, 4
        %v511 = vand.u32 %v509, 15
        %v512 = vsub.s32 0, %v511
        %v513 = vsel %vm507, %v512, %v511
        %vm514 = vcmp.lt.s32.totalorder %v410, 0
        %v515 = vsub.s32 0, %v410
        %v516 = vsel %vm514, %v515, %v410
        %v517 = vshrl.u32 %v516, 4
        %v518 = vand.u32 %v516, 15
        %v519 = vsub.s32 0, %v518
        %v520 = vsel %vm514, %v519, %v518
        %vm521 = vcmp.lt.s32.totalorder %v411, 0
        %v522 = vsub.s32 0, %v411
        %v523 = vsel %vm521, %v522, %v411
        %v524 = vshrl.u32 %v523, 4
        %v525 = vand.u32 %v523, 15
        %v526 = vsub.s32 0, %v525
        %v527 = vsel %vm521, %v526, %v525
        %vm528 = vcmp.lt.s32.totalorder %v412, 0
        %v529 = vsub.s32 0, %v412
        %v530 = vsel %vm528, %v529, %v412
        %v531 = vshrl.u32 %v530, 4
        %v532 = vand.u32 %v530, 15
        %v533 = vsub.s32 0, %v532
        %v534 = vsel %vm528, %v533, %v532
        %vm535 = vcmp.lt.s32.totalorder %v413, 0
        %v536 = vsub.s32 0, %v413
        %v537 = vsel %vm535, %v536, %v413
        %v538 = vshrl.u32 %v537, 4
        %v539 = vand.u32 %v537, 15
        %v540 = vsub.s32 0, %v539
        %v541 = vsel %vm535, %v540, %v539
        %vm542 = vcmp.lt.s32.totalorder %v414, 0
        %v543 = vsub.s32 0, %v414
        %v544 = vsel %vm542, %v543, %v414
        %v545 = vshrl.u32 %v544, 4
        %v546 = vand.u32 %v544, 15
        %v547 = vsub.s32 0, %v546
        %v548 = vsel %vm542, %v547, %v546
        %vm549 = vcmp.lt.s32.totalorder %v415, 0
        %v550 = vsub.s32 0, %v415
        %v551 = vsel %vm549, %v550, %v415
        %v552 = vshrl.u32 %v551, 4
        %v553 = vand.u32 %v551, 15
        %v554 = vsub.s32 0, %v553
        %v555 = vsel %vm549, %v554, %v553
        %vm556 = vcmp.lt.s32.totalorder %v416, 0
        %v557 = vsub.s32 0, %v416
        %v558 = vsel %vm556, %v557, %v416
        %v559 = vshrl.u32 %v558, 4
        %v560 = vand.u32 %v558, 15
        %v561 = vsub.s32 0, %v560
        %v562 = vsel %vm556, %v561, %v560
        %vm563 = vcmp.lt.s32.totalorder %v417, 0
        %v564 = vsub.s32 0, %v417
        %v565 = vsel %vm563, %v564, %v417
        %v566 = vshrl.u32 %v565, 4
        %v567 = vand.u32 %v565, 15
        %v568 = vsub.s32 0, %v567
        %v569 = vsel %vm563, %v568, %v567
        %vm570 = vcmp.lt.s32.totalorder %v418, 0
        %v571 = vsub.s32 0, %v418
        %v572 = vsel %vm570, %v571, %v418
        %v573 = vshrl.u32 %v572, 4
        %v574 = vand.u32 %v572, 15
        %v575 = vsub.s32 0, %v574
        %v576 = vsel %vm570, %v575, %v574
        %vm577 = vcmp.lt.s32.totalorder %v419, 0
        %v578 = vsub.s32 0, %v419
        %v579 = vsel %vm577, %v578, %v419
        %v580 = vshrl.u32 %v579, 4
        %v581 = vand.u32 %v579, 15
        %v582 = vsub.s32 0, %v581
        %v583 = vsel %vm577, %v582, %v581
        %vm584 = vcmp.lt.s32.totalorder %v420, 0
        %v585 = vsub.s32 0, %v420
        %v586 = vsel %vm584, %v585, %v420
        %v587 = vshrl.u32 %v586, 4
        %v588 = vand.u32 %v586, 15
        %v589 = vsub.s32 0, %v588
        %v590 = vsel %vm584, %v589, %v588
        %vm591 = vcmp.lt.s32.totalorder %v421, 0
        %v592 = vsub.s32 0, %v421
        %v593 = vsel %vm591, %v592, %v421
        %v594 = vshrl.u32 %v593, 4
        %v595 = vand.u32 %v593, 15
        %v596 = vsub.s32 0, %v595
        %v597 = vsel %vm591, %v596, %v595
        %vm598 = vcmp.lt.s32.totalorder %v422, 0
        %v599 = vsub.s32 0, %v422
        %v600 = vsel %vm598, %v599, %v422
        %v601 = vshrl.u32 %v600, 4
        %v602 = vand.u32 %v600, 15
        %v603 = vsub.s32 0, %v602
        %v604 = vsel %vm598, %v603, %v602
        %vm605 = vcmp.lt.s32.totalorder %v423, 0
        %v606 = vsub.s32 0, %v423
        %v607 = vsel %vm605, %v606, %v423
        %v608 = vshrl.u32 %v607, 4
        %v609 = vand.u32 %v607, 15
        %v610 = vsub.s32 0, %v609
        %v611 = vsel %vm605, %v610, %v609
        %vm612 = vcmp.lt.s32.totalorder %v424, 0
        %v613 = vsub.s32 0, %v424
        %v614 = vsel %vm612, %v613, %v424
        %v615 = vshrl.u32 %v614, 4
        %v616 = vand.u32 %v614, 15
        %v617 = vsub.s32 0, %v616
        %v618 = vsel %vm612, %v617, %v616
        %vm619 = vcmp.lt.s32.totalorder %v425, 0
        %v620 = vsub.s32 0, %v425
        %v621 = vsel %vm619, %v620, %v425
        %v622 = vshrl.u32 %v621, 4
        %v623 = vand.u32 %v621, 15
        %v624 = vsub.s32 0, %v623
        %v625 = vsel %vm619, %v624, %v623
        %vm626 = vcmp.lt.s32.totalorder %v426, 0
        %v627 = vsub.s32 0, %v426
        %v628 = vsel %vm626, %v627, %v426
        %v629 = vshrl.u32 %v628, 4
        %v630 = vand.u32 %v628, 15
        %v631 = vsub.s32 0, %v630
        %v632 = vsel %vm626, %v631, %v630
        %vm633 = vcmp.lt.s32.totalorder %v427, 0
        %v634 = vsub.s32 0, %v427
        %v635 = vsel %vm633, %v634, %v427
        %v636 = vshrl.u32 %v635, 4
        %v637 = vand.u32 %v635, 15
        %v638 = vsub.s32 0, %v637
        %v639 = vsel %vm633, %v638, %v637
        %vm640 = vcmp.lt.s32.totalorder %v428, 0
        %v641 = vsub.s32 0, %v428
        %v642 = vsel %vm640, %v641, %v428
        %v643 = vshrl.u32 %v642, 4
        %v644 = vand.u32 %v642, 15
        %v645 = vsub.s32 0, %v644
        %v646 = vsel %vm640, %v645, %v644
        %vm647 = vcmp.lt.s32.totalorder %v429, 0
        %v648 = vsub.s32 0, %v429
        %v649 = vsel %vm647, %v648, %v429
        %v650 = vshrl.u32 %v649, 4
        %v651 = vand.u32 %v649, 15
        %v652 = vsub.s32 0, %v651
        %v653 = vsel %vm647, %v652, %v651
        %vm654 = vcmp.ne.s32.totalorder %v436, 0
        %vm655 = vcmp.ne.s32.totalorder %v443, 0
        %vm656 = vcmp.ne.s32.totalorder %v450, 0
        %vm657 = vcmp.ne.s32.totalorder %v457, 0
        %vm658 = vcmp.ne.s32.totalorder %v464, 0
        %vm659 = vcmp.ne.s32.totalorder %v471, 0
        %vm660 = vcmp.ne.s32.totalorder %v478, 0
        %vm661 = vcmp.ne.s32.totalorder %v485, 0
        %vm662 = vcmp.ne.s32.totalorder %v492, 0
        %vm663 = vcmp.ne.s32.totalorder %v499, 0
        %vm664 = vcmp.ne.s32.totalorder %v506, 0
        %vm665 = vcmp.ne.s32.totalorder %v513, 0
        %vm666 = vcmp.ne.s32.totalorder %v520, 0
        %vm667 = vcmp.ne.s32.totalorder %v527, 0
        %vm668 = vcmp.ne.s32.totalorder %v534, 0
        %vm669 = vcmp.ne.s32.totalorder %v541, 0
        %vm670 = vcmp.ne.s32.totalorder %v548, 0
        %vm671 = vcmp.ne.s32.totalorder %v555, 0
        %vm672 = vcmp.ne.s32.totalorder %v562, 0
        %vm673 = vcmp.ne.s32.totalorder %v569, 0
        %vm674 = vcmp.ne.s32.totalorder %v576, 0
        %vm675 = vcmp.ne.s32.totalorder %v583, 0
        %vm676 = vcmp.ne.s32.totalorder %v590, 0
        %vm677 = vcmp.ne.s32.totalorder %v597, 0
        %vm678 = vcmp.ne.s32.totalorder %v604, 0
        %vm679 = vcmp.ne.s32.totalorder %v611, 0
        %vm680 = vcmp.ne.s32.totalorder %v618, 0
        %vm681 = vcmp.ne.s32.totalorder %v625, 0
        %vm682 = vcmp.ne.s32.totalorder %v632, 0
        %vm683 = vcmp.ne.s32.totalorder %v639, 0
        %vm684 = vcmp.ne.s32.totalorder %v646, 0
        %vm685 = vcmp.ne.s32.totalorder %v653, 0
        %vm686 = vcmp.lt.s32.totalorder %v436, 0
        %vm687 = vcmp.lt.s32.totalorder %v443, 0
        %vm688 = vcmp.lt.s32.totalorder %v450, 0
        %vm689 = vcmp.lt.s32.totalorder %v457, 0
        %vm690 = vcmp.lt.s32.totalorder %v464, 0
        %vm691 = vcmp.lt.s32.totalorder %v471, 0
        %vm692 = vcmp.lt.s32.totalorder %v478, 0
        %vm693 = vcmp.lt.s32.totalorder %v485, 0
        %vm694 = vcmp.lt.s32.totalorder %v492, 0
        %vm695 = vcmp.lt.s32.totalorder %v499, 0
        %vm696 = vcmp.lt.s32.totalorder %v506, 0
        %vm697 = vcmp.lt.s32.totalorder %v513, 0
        %vm698 = vcmp.lt.s32.totalorder %v520, 0
        %vm699 = vcmp.lt.s32.totalorder %v527, 0
        %vm700 = vcmp.lt.s32.totalorder %v534, 0
        %vm701 = vcmp.lt.s32.totalorder %v541, 0
        %vm702 = vcmp.lt.s32.totalorder %v548, 0
        %vm703 = vcmp.lt.s32.totalorder %v555, 0
        %vm704 = vcmp.lt.s32.totalorder %v562, 0
        %vm705 = vcmp.lt.s32.totalorder %v569, 0
        %vm706 = vcmp.lt.s32.totalorder %v576, 0
        %vm707 = vcmp.lt.s32.totalorder %v583, 0
        %vm708 = vcmp.lt.s32.totalorder %v590, 0
        %vm709 = vcmp.lt.s32.totalorder %v597, 0
        %vm710 = vcmp.lt.s32.totalorder %v604, 0
        %vm711 = vcmp.lt.s32.totalorder %v611, 0
        %vm712 = vcmp.lt.s32.totalorder %v618, 0
        %vm713 = vcmp.lt.s32.totalorder %v625, 0
        %vm714 = vcmp.lt.s32.totalorder %v632, 0
        %vm715 = vcmp.lt.s32.totalorder %v639, 0
        %vm716 = vcmp.lt.s32.totalorder %v646, 0
        %vm717 = vcmp.lt.s32.totalorder %v653, 0
        %vm718 = vmand %vm686, %vm654
        %vm719 = vmand %vm687, %vm655
        %vm720 = vmand %vm688, %vm656
        %vm721 = vmand %vm689, %vm657
        %vm722 = vmand %vm690, %vm658
        %vm723 = vmand %vm691, %vm659
        %vm724 = vmand %vm692, %vm660
        %vm725 = vmand %vm693, %vm661
        %vm726 = vmand %vm694, %vm662
        %vm727 = vmand %vm695, %vm663
        %vm728 = vmand %vm696, %vm664
        %vm729 = vmand %vm697, %vm665
        %vm730 = vmand %vm698, %vm666
        %vm731 = vmand %vm699, %vm667
        %vm732 = vmand %vm700, %vm668
        %vm733 = vmand %vm701, %vm669
        %vm734 = vmand %vm702, %vm670
        %vm735 = vmand %vm703, %vm671
        %vm736 = vmand %vm704, %vm672
        %vm737 = vmand %vm705, %vm673
        %vm738 = vmand %vm706, %vm674
        %vm739 = vmand %vm707, %vm675
        %vm740 = vmand %vm708, %vm676
        %vm741 = vmand %vm709, %vm677
        %vm742 = vmand %vm710, %vm678
        %vm743 = vmand %vm711, %vm679
        %vm744 = vmand %vm712, %vm680
        %vm745 = vmand %vm713, %vm681
        %vm746 = vmand %vm714, %vm682
        %vm747 = vmand %vm715, %vm683
        %vm748 = vmand %vm716, %vm684
        %vm749 = vmand %vm717, %vm685
        %v750 = vadd.s32 %v436, 16
        %v751 = vadd.s32 %v443, 16
        %v752 = vadd.s32 %v450, 16
        %v753 = vadd.s32 %v457, 16
        %v754 = vadd.s32 %v464, 16
        %v755 = vadd.s32 %v471, 16
        %v756 = vadd.s32 %v478, 16
        %v757 = vadd.s32 %v485, 16
        %v758 = vadd.s32 %v492, 16
        %v759 = vadd.s32 %v499, 16
        %v760 = vadd.s32 %v506, 16
        %v761 = vadd.s32 %v513, 16
        %v762 = vadd.s32 %v520, 16
        %v763 = vadd.s32 %v527, 16
        %v764 = vadd.s32 %v534, 16
        %v765 = vadd.s32 %v541, 16
        %v766 = vadd.s32 %v548, 16
        %v767 = vadd.s32 %v555, 16
        %v768 = vadd.s32 %v562, 16
        %v769 = vadd.s32 %v569, 16
        %v770 = vadd.s32 %v576, 16
        %v771 = vadd.s32 %v583, 16
        %v772 = vadd.s32 %v590, 16
        %v773 = vadd.s32 %v597, 16
        %v774 = vadd.s32 %v604, 16
        %v775 = vadd.s32 %v611, 16
        %v776 = vadd.s32 %v618, 16
        %v777 = vadd.s32 %v625, 16
        %v778 = vadd.s32 %v632, 16
        %v779 = vadd.s32 %v639, 16
        %v780 = vadd.s32 %v646, 16
        %v781 = vadd.s32 %v653, 16
        %v782 = vsel %vm718, %v750, %v436
        %v783 = vsel %vm719, %v751, %v443
        %v784 = vsel %vm720, %v752, %v450
        %v785 = vsel %vm721, %v753, %v457
        %v786 = vsel %vm722, %v754, %v464
        %v787 = vsel %vm723, %v755, %v471
        %v788 = vsel %vm724, %v756, %v478
        %v789 = vsel %vm725, %v757, %v485
        %v790 = vsel %vm726, %v758, %v492
        %v791 = vsel %vm727, %v759, %v499
        %v792 = vsel %vm728, %v760, %v506
        %v793 = vsel %vm729, %v761, %v513
        %v794 = vsel %vm730, %v762, %v520
        %v795 = vsel %vm731, %v763, %v527
        %v796 = vsel %vm732, %v764, %v534
        %v797 = vsel %vm733, %v765, %v541
        %v798 = vsel %vm734, %v766, %v548
        %v799 = vsel %vm735, %v767, %v555
        %v800 = vsel %vm736, %v768, %v562
        %v801 = vsel %vm737, %v769, %v569
        %v802 = vsel %vm738, %v770, %v576
        %v803 = vsel %vm739, %v771, %v583
        %v804 = vsel %vm740, %v772, %v590
        %v805 = vsel %vm741, %v773, %v597
        %v806 = vsel %vm742, %v774, %v604
        %v807 = vsel %vm743, %v775, %v611
        %v808 = vsel %vm744, %v776, %v618
        %v809 = vsel %vm745, %v777, %v625
        %v810 = vsel %vm746, %v778, %v632
        %v811 = vsel %vm747, %v779, %v639
        %v812 = vsel %vm748, %v780, %v646
        %v813 = vsel %vm749, %v781, %v653
        %vm814 = vcmp.ge.s32.totalorder %v782, 1
        %vm815 = vcmp.ge.s32.totalorder %v783, 1
        %vm816 = vcmp.ge.s32.totalorder %v784, 1
        %vm817 = vcmp.ge.s32.totalorder %v785, 1
        %vm818 = vcmp.ge.s32.totalorder %v786, 1
        %vm819 = vcmp.ge.s32.totalorder %v787, 1
        %vm820 = vcmp.ge.s32.totalorder %v788, 1
        %vm821 = vcmp.ge.s32.totalorder %v789, 1
        %vm822 = vcmp.ge.s32.totalorder %v790, 1
        %vm823 = vcmp.ge.s32.totalorder %v791, 1
        %vm824 = vcmp.ge.s32.totalorder %v792, 1
        %vm825 = vcmp.ge.s32.totalorder %v793, 1
        %vm826 = vcmp.ge.s32.totalorder %v794, 1
        %vm827 = vcmp.ge.s32.totalorder %v795, 1
        %vm828 = vcmp.ge.s32.totalorder %v796, 1
        %vm829 = vcmp.ge.s32.totalorder %v797, 1
        %vm830 = vcmp.ge.s32.totalorder %v798, 1
        %vm831 = vcmp.ge.s32.totalorder %v799, 1
        %vm832 = vcmp.ge.s32.totalorder %v800, 1
        %vm833 = vcmp.ge.s32.totalorder %v801, 1
        %vm834 = vcmp.ge.s32.totalorder %v802, 1
        %vm835 = vcmp.ge.s32.totalorder %v803, 1
        %vm836 = vcmp.ge.s32.totalorder %v804, 1
        %vm837 = vcmp.ge.s32.totalorder %v805, 1
        %vm838 = vcmp.ge.s32.totalorder %v806, 1
        %vm839 = vcmp.ge.s32.totalorder %v807, 1
        %vm840 = vcmp.ge.s32.totalorder %v808, 1
        %vm841 = vcmp.ge.s32.totalorder %v809, 1
        %vm842 = vcmp.ge.s32.totalorder %v810, 1
        %vm843 = vcmp.ge.s32.totalorder %v811, 1
        %vm844 = vcmp.ge.s32.totalorder %v812, 1
        %vm845 = vcmp.ge.s32.totalorder %v813, 1
        %vm846 = vcmp.le.s32.totalorder %v782, 14
        %vm847 = vcmp.le.s32.totalorder %v783, 14
        %vm848 = vcmp.le.s32.totalorder %v784, 14
        %vm849 = vcmp.le.s32.totalorder %v785, 14
        %vm850 = vcmp.le.s32.totalorder %v786, 14
        %vm851 = vcmp.le.s32.totalorder %v787, 14
        %vm852 = vcmp.le.s32.totalorder %v788, 14
        %vm853 = vcmp.le.s32.totalorder %v789, 14
        %vm854 = vcmp.le.s32.totalorder %v790, 14
        %vm855 = vcmp.le.s32.totalorder %v791, 14
        %vm856 = vcmp.le.s32.totalorder %v792, 14
        %vm857 = vcmp.le.s32.totalorder %v793, 14
        %vm858 = vcmp.le.s32.totalorder %v794, 14
        %vm859 = vcmp.le.s32.totalorder %v795, 14
        %vm860 = vcmp.le.s32.totalorder %v796, 14
        %vm861 = vcmp.le.s32.totalorder %v797, 14
        %vm862 = vcmp.le.s32.totalorder %v798, 14
        %vm863 = vcmp.le.s32.totalorder %v799, 14
        %vm864 = vcmp.le.s32.totalorder %v800, 14
        %vm865 = vcmp.le.s32.totalorder %v801, 14
        %vm866 = vcmp.le.s32.totalorder %v802, 14
        %vm867 = vcmp.le.s32.totalorder %v803, 14
        %vm868 = vcmp.le.s32.totalorder %v804, 14
        %vm869 = vcmp.le.s32.totalorder %v805, 14
        %vm870 = vcmp.le.s32.totalorder %v806, 14
        %vm871 = vcmp.le.s32.totalorder %v807, 14
        %vm872 = vcmp.le.s32.totalorder %v808, 14
        %vm873 = vcmp.le.s32.totalorder %v809, 14
        %vm874 = vcmp.le.s32.totalorder %v810, 14
        %vm875 = vcmp.le.s32.totalorder %v811, 14
        %vm876 = vcmp.le.s32.totalorder %v812, 14
        %vm877 = vcmp.le.s32.totalorder %v813, 14
        %vm878 = vcmask 588800
        %879 = vst.msk [vmem:[#allocation2] sm:$0xff] %vm878, 0.0
        %880 = vst.msk [vmem:[#allocation2 + $0x8] sm:$0xff] %vm878, 0.0
        %881 = vst.msk [vmem:[#allocation2 + $0x10] sm:$0xff] %vm878, 0.0
        %882 = vst.msk [vmem:[#allocation2 + $0x18] sm:$0xff] %vm878, 0.0
        %883 = vst.msk [vmem:[#allocation2 + $0x20] sm:$0xff] %vm878, 0.0
        %884 = vst.msk [vmem:[#allocation2 + $0x28] sm:$0xff] %vm878, 0.0
        %885 = vst.msk [vmem:[#allocation2 + $0x30] sm:$0xff] %vm878, 0.0
        %886 = vst.msk [vmem:[#allocation2 + $0x38] sm:$0xff] %vm878, 0.0
        %887 = vst.msk [vmem:[#allocation2 + $0x40] sm:$0xff] %vm878, 0.0
        %888 = vst.msk [vmem:[#allocation2 + $0x48] sm:$0xff] %vm878, 0.0
        %889 = vst.msk [vmem:[#allocation2 + $0x50] sm:$0xff] %vm878, 0.0
        %890 = vst.msk [vmem:[#allocation2 + $0x58] sm:$0xff] %vm878, 0.0
        %891 = vst.msk [vmem:[#allocation2 + $0x60] sm:$0xff] %vm878, 0.0
        %892 = vst.msk [vmem:[#allocation2 + $0x68] sm:$0xff] %vm878, 0.0
        %893 = vst.msk [vmem:[#allocation2 + $0x70] sm:$0xff] %vm878, 0.0
        %894 = vst.msk [vmem:[#allocation2 + $0x78] sm:$0xff] %vm878, 0.0
        %895 = vst.msk [vmem:[#allocation2 + $0x80] sm:$0xff] %vm878, 0.0
        %896 = vst.msk [vmem:[#allocation2 + $0x88] sm:$0xff] %vm878, 0.0
        %897 = vst.msk [vmem:[#allocation2 + $0x90] sm:$0xff] %vm878, 0.0
        %898 = vst.msk [vmem:[#allocation2 + $0x98] sm:$0xff] %vm878, 0.0
        %899 = vst.msk [vmem:[#allocation2 + $0xa0] sm:$0xff] %vm878, 0.0
        %900 = vst.msk [vmem:[#allocation2 + $0xa8] sm:$0xff] %vm878, 0.0
        %901 = vst.msk [vmem:[#allocation2 + $0xb0] sm:$0xff] %vm878, 0.0
        %902 = vst.msk [vmem:[#allocation2 + $0xb8] sm:$0xff] %vm878, 0.0
        %903 = vst.msk [vmem:[#allocation2 + $0xc0] sm:$0xff] %vm878, 0.0
        %904 = vst.msk [vmem:[#allocation2 + $0xc8] sm:$0xff] %vm878, 0.0
        %905 = vst.msk [vmem:[#allocation2 + $0xd0] sm:$0xff] %vm878, 0.0
        %906 = vst.msk [vmem:[#allocation2 + $0xd8] sm:$0xff] %vm878, 0.0
        %907 = vst.msk [vmem:[#allocation2 + $0xe0] sm:$0xff] %vm878, 0.0
        %908 = vst.msk [vmem:[#allocation2 + $0xe8] sm:$0xff] %vm878, 0.0
        %909 = vst.msk [vmem:[#allocation2 + $0xf0] sm:$0xff] %vm878, 0.0
        %910 = vst.msk [vmem:[#allocation2 + $0xf8] sm:$0xff] %vm878, 0.0
        %v911 = vsel %vm816, 1, 0
        %v912 = vsel %vm817, 1, 0
        %v913 = vsel %vm818, 1, 0
        %v914 = vsel %vm819, 1, 0
        %v915 = vsel %vm820, 1, 0
        %v916 = vsel %vm821, 1, 0
        %v917 = vsel %vm822, 1, 0
        %v918 = vsel %vm823, 1, 0
        %v919 = vsel %vm824, 1, 0
        %v920 = vsel %vm825, 1, 0
        %v921 = vsel %vm826, 1, 0
        %v922 = vsel %vm827, 1, 0
        %v923 = vsel %vm828, 1, 0
        %v924 = vsel %vm829, 1, 0
        %v925 = vsel %vm830, 1, 0
        %v926 = vsel %vm831, 1, 0
        %v927 = vsel %vm832, 1, 0
        %v928 = vsel %vm833, 1, 0
        %v929 = vsel %vm834, 1, 0
        %v930 = vsel %vm835, 1, 0
        %v931 = vsel %vm836, 1, 0
        %v932 = vsel %vm837, 1, 0
        %v933 = vsel %vm838, 1, 0
        %v934 = vsel %vm839, 1, 0
        %v935 = vsel %vm840, 1, 0
        %v936 = vsel %vm841, 1, 0
        %v937 = vsel %vm842, 1, 0
        %v938 = vsel %vm843, 1, 0
        %v939 = vsel %vm844, 1, 0
        %v940 = vsel %vm845, 1, 0
        %vm941 = vcmp.eq.s32.totalorder %v911, 1
        %vm942 = vcmp.eq.s32.totalorder %v912, 1
        %vm943 = vcmp.eq.s32.totalorder %v913, 1
        %vm944 = vcmp.eq.s32.totalorder %v914, 1
        %vm945 = vcmp.eq.s32.totalorder %v915, 1
        %vm946 = vcmp.eq.s32.totalorder %v916, 1
        %vm947 = vcmp.eq.s32.totalorder %v917, 1
        %vm948 = vcmp.eq.s32.totalorder %v918, 1
        %vm949 = vcmp.eq.s32.totalorder %v919, 1
        %vm950 = vcmp.eq.s32.totalorder %v920, 1
        %vm951 = vcmp.eq.s32.totalorder %v921, 1
        %vm952 = vcmp.eq.s32.totalorder %v922, 1
        %vm953 = vcmp.eq.s32.totalorder %v923, 1
        %vm954 = vcmp.eq.s32.totalorder %v924, 1
        %vm955 = vcmp.eq.s32.totalorder %v925, 1
        %vm956 = vcmp.eq.s32.totalorder %v926, 1
        %vm957 = vcmp.eq.s32.totalorder %v927, 1
        %vm958 = vcmp.eq.s32.totalorder %v928, 1
        %vm959 = vcmp.eq.s32.totalorder %v929, 1
        %vm960 = vcmp.eq.s32.totalorder %v930, 1
        %vm961 = vcmp.eq.s32.totalorder %v931, 1
        %vm962 = vcmp.eq.s32.totalorder %v932, 1
        %vm963 = vcmp.eq.s32.totalorder %v933, 1
        %vm964 = vcmp.eq.s32.totalorder %v934, 1
        %vm965 = vcmp.eq.s32.totalorder %v935, 1
        %vm966 = vcmp.eq.s32.totalorder %v936, 1
        %vm967 = vcmp.eq.s32.totalorder %v937, 1
        %vm968 = vcmp.eq.s32.totalorder %v938, 1
        %vm969 = vcmp.eq.s32.totalorder %v939, 1
        %vm970 = vcmp.eq.s32.totalorder %v940, 1
        %vm1001 = vcmask 1040384
        %v1002 = vrot.slane %v365, 7
        %v1003 = vrot.slane %v366, 7
        %v1004 = vsel %vm1001, %v1002, %v1003
        %v1005 = vrot.slane %v367, 7
        %v1006 = vsel %vm1001, %v1003, %v1005
        %v1007 = vrot.slane %v368, 7
        %v1008 = vsel %vm1001, %v1005, %v1007
        %v1009 = vrot.slane %v369, 7
        %v1010 = vsel %vm1001, %v1007, %v1009
        %v1011 = vrot.slane %v370, 7
        %v1012 = vsel %vm1001, %v1009, %v1011
        %v1013 = vrot.slane %v371, 7
        %v1014 = vsel %vm1001, %v1011, %v1013
        %v1015 = vrot.slane %v372, 7
        %v1016 = vsel %vm1001, %v1013, %v1015
        %v1017 = vrot.slane %v373, 7
        %v1018 = vsel %vm1001, %v1015, %v1017
        %v1019 = vrot.slane %v374, 7
        %v1020 = vsel %vm1001, %v1017, %v1019
        %v1021 = vrot.slane %v375, 7
        %v1022 = vsel %vm1001, %v1019, %v1021
        %v1023 = vrot.slane %v376, 7
        %v1024 = vsel %vm1001, %v1021, %v1023
        %v1025 = vrot.slane %v377, 7
        %v1026 = vsel %vm1001, %v1023, %v1025
        %v1027 = vrot.slane %v378, 7
        %v1028 = vsel %vm1001, %v1025, %v1027
        %v1029 = vrot.slane %v379, 7
        %v1030 = vsel %vm1001, %v1027, %v1029
        %v1031 = vrot.slane %v380, 7
        %v1032 = vsel %vm1001, %v1029, %v1031
        %v1033 = vrot.slane %v381, 7
        %v1034 = vsel %vm1001, %v1031, %v1033
        %v1035 = vrot.slane %v382, 7
        %v1036 = vsel %vm1001, %v1033, %v1035
        %v1037 = vrot.slane %v383, 7
        %v1038 = vsel %vm1001, %v1035, %v1037
        %v1039 = vrot.slane %v384, 7
        %v1040 = vsel %vm1001, %v1037, %v1039
        %v1041 = vrot.slane %v385, 7
        %v1042 = vsel %vm1001, %v1039, %v1041
        %v1043 = vrot.slane %v386, 7
        %v1044 = vsel %vm1001, %v1041, %v1043
        %v1045 = vrot.slane %v387, 7
        %v1046 = vsel %vm1001, %v1043, %v1045
        %v1047 = vrot.slane %v388, 7
        %v1048 = vsel %vm1001, %v1045, %v1047
        %v1049 = vrot.slane %v389, 7
        %v1050 = vsel %vm1001, %v1047, %v1049
        %v1051 = vrot.slane %v390, 7
        %v1052 = vsel %vm1001, %v1049, %v1051
        %v1053 = vrot.slane %v391, 7
        %v1054 = vsel %vm1001, %v1051, %v1053
        %v1055 = vrot.slane %v392, 7
        %v1056 = vsel %vm1001, %v1053, %v1055
        %v1057 = vrot.slane %v393, 7
        %v1058 = vsel %vm1001, %v1055, %v1057
        %v1059 = vrot.slane %v394, 7
        %v1060 = vsel %vm1001, %v1057, %v1059
        %v1091 = vsel %vm941, %v1002, 0.0
        %v1092 = vsel %vm942, %v1004, 0.0
        %v1093 = vsel %vm943, %v1006, 0.0
        %v1094 = vsel %vm944, %v1008, 0.0
        %v1095 = vsel %vm945, %v1010, 0.0
        %v1096 = vsel %vm946, %v1012, 0.0
        %v1097 = vsel %vm947, %v1014, 0.0
        %v1098 = vsel %vm948, %v1016, 0.0
        %v1099 = vsel %vm949, %v1018, 0.0
        %v1100 = vsel %vm950, %v1020, 0.0
        %v1101 = vsel %vm951, %v1022, 0.0
        %v1102 = vsel %vm952, %v1024, 0.0
        %v1103 = vsel %vm953, %v1026, 0.0
        %v1104 = vsel %vm954, %v1028, 0.0
        %v1105 = vsel %vm955, %v1030, 0.0
        %v1106 = vsel %vm956, %v1032, 0.0
        %v1107 = vsel %vm957, %v1034, 0.0
        %v1108 = vsel %vm958, %v1036, 0.0
        %v1109 = vsel %vm959, %v1038, 0.0
        %v1110 = vsel %vm960, %v1040, 0.0
        %v1111 = vsel %vm961, %v1042, 0.0
        %v1112 = vsel %vm962, %v1044, 0.0
        %v1113 = vsel %vm963, %v1046, 0.0
        %v1114 = vsel %vm964, %v1048, 0.0
        %v1115 = vsel %vm965, %v1050, 0.0
        %v1116 = vsel %vm966, %v1052, 0.0
        %v1117 = vsel %vm967, %v1054, 0.0
        %v1118 = vsel %vm968, %v1056, 0.0
        %v1119 = vsel %vm969, %v1058, 0.0
        %v1120 = vsel %vm970, %v1060, 0.0
        %vm1121 = vcmask 64513
        %1122 = vst.msk [vmem:[#allocation2 + $0x10] sm:$0xfe] %vm1121, %v1091
        %vm1123 = vcmask 64512
        %1124 = vst.msk [vmem:[#allocation2 + $0x18] sm:$0xff] %vm1123, %v1092
        %1125 = vst.msk [vmem:[#allocation2 + $0x20] sm:$0xff] %vm1123, %v1093
        %1126 = vst.msk [vmem:[#allocation2 + $0x28] sm:$0xff] %vm1123, %v1094
        %1127 = vst.msk [vmem:[#allocation2 + $0x30] sm:$0xff] %vm1123, %v1095
        %1128 = vst.msk [vmem:[#allocation2 + $0x38] sm:$0xff] %vm1123, %v1096
        %1129 = vst.msk [vmem:[#allocation2 + $0x40] sm:$0xff] %vm1123, %v1097
        %1130 = vst.msk [vmem:[#allocation2 + $0x48] sm:$0xff] %vm1123, %v1098
        %1131 = vst.msk [vmem:[#allocation2 + $0x50] sm:$0xff] %vm1123, %v1099
        %1132 = vst.msk [vmem:[#allocation2 + $0x58] sm:$0xff] %vm1123, %v1100
        %1133 = vst.msk [vmem:[#allocation2 + $0x60] sm:$0xff] %vm1123, %v1101
        %1134 = vst.msk [vmem:[#allocation2 + $0x68] sm:$0xff] %vm1123, %v1102
        %1135 = vst.msk [vmem:[#allocation2 + $0x70] sm:$0xff] %vm1123, %v1103
        %1136 = vst.msk [vmem:[#allocation2 + $0x78] sm:$0xff] %vm1123, %v1104
        %1137 = vst.msk [vmem:[#allocation2 + $0x80] sm:$0xff] %vm1123, %v1105
        %1138 = vst.msk [vmem:[#allocation2 + $0x88] sm:$0xff] %vm1123, %v1106
        %1139 = vst.msk [vmem:[#allocation2 + $0x90] sm:$0xff] %vm1123, %v1107
        %1140 = vst.msk [vmem:[#allocation2 + $0x98] sm:$0xff] %vm1123, %v1108
        %1141 = vst.msk [vmem:[#allocation2 + $0xa0] sm:$0xff] %vm1123, %v1109
        %1142 = vst.msk [vmem:[#allocation2 + $0xa8] sm:$0xff] %vm1123, %v1110
        %1143 = vst.msk [vmem:[#allocation2 + $0xb0] sm:$0xff] %vm1123, %v1111
        %1144 = vst.msk [vmem:[#allocation2 + $0xb8] sm:$0xff] %vm1123, %v1112
        %1145 = vst.msk [vmem:[#allocation2 + $0xc0] sm:$0xff] %vm1123, %v1113
        %1146 = vst.msk [vmem:[#allocation2 + $0xc8] sm:$0xff] %vm1123, %v1114
        %1147 = vst.msk [vmem:[#allocation2 + $0xd0] sm:$0xff] %vm1123, %v1115
        %1148 = vst.msk [vmem:[#allocation2 + $0xd8] sm:$0xff] %vm1123, %v1116
        %1149 = vst.msk [vmem:[#allocation2 + $0xe0] sm:$0xff] %vm1123, %v1117
        %1150 = vst.msk [vmem:[#allocation2 + $0xe8] sm:$0xff] %vm1123, %v1118
        %1151 = vst.msk [vmem:[#allocation2 + $0xf0] sm:$0xff] %vm1123, %v1119
        %1152 = vst.msk [vmem:[#allocation2 + $0xf8] sm:$0xff] %vm1123, %v1120
        %1153 = vrot.lane.b32.xlu0 %v365, 8
        %v1154 = vpop.permute.xlu0 %1153
        %1155 = vrot.lane.b32.xlu0 %v366, 8
        %v1156 = vpop.permute.xlu0 %1155
        %1157 = vrot.lane.b32.xlu0 %v367, 8
        %v1158 = vpop.permute.xlu0 %1157
        %1159 = vrot.lane.b32.xlu0 %v368, 8
        %v1160 = vpop.permute.xlu0 %1159
        %1161 = vrot.lane.b32.xlu0 %v369, 8
        %v1162 = vpop.permute.xlu0 %1161
        %1163 = vrot.lane.b32.xlu0 %v370, 8
        %v1164 = vpop.permute.xlu0 %1163
        %1165 = vrot.lane.b32.xlu0 %v371, 8
        %v1166 = vpop.permute.xlu0 %1165
        %1167 = vrot.lane.b32.xlu0 %v372, 8
        %v1168 = vpop.permute.xlu0 %1167
        %1169 = vrot.lane.b32.xlu0 %v373, 8
        %v1170 = vpop.permute.xlu0 %1169
        %1171 = vrot.lane.b32.xlu0 %v374, 8
        %v1172 = vpop.permute.xlu0 %1171
        %1173 = vrot.lane.b32.xlu0 %v375, 8
        %v1174 = vpop.permute.xlu0 %1173
        %1175 = vrot.lane.b32.xlu0 %v376, 8
        %v1176 = vpop.permute.xlu0 %1175
        %1177 = vrot.lane.b32.xlu0 %v377, 8
        %v1178 = vpop.permute.xlu0 %1177
        %1179 = vrot.lane.b32.xlu0 %v378, 8
        %v1180 = vpop.permute.xlu0 %1179
        %1181 = vrot.lane.b32.xlu0 %v379, 8
        %v1182 = vpop.permute.xlu0 %1181
        %1183 = vrot.lane.b32.xlu0 %v380, 8
        %v1184 = vpop.permute.xlu0 %1183
        %1185 = vrot.lane.b32.xlu0 %v381, 8
        %v1186 = vpop.permute.xlu0 %1185
        %1187 = vrot.lane.b32.xlu0 %v382, 8
        %v1188 = vpop.permute.xlu0 %1187
        %1189 = vrot.lane.b32.xlu0 %v383, 8
        %v1190 = vpop.permute.xlu0 %1189
        %1191 = vrot.lane.b32.xlu0 %v384, 8
        %v1192 = vpop.permute.xlu0 %1191
        %1193 = vrot.lane.b32.xlu0 %v385, 8
        %v1194 = vpop.permute.xlu0 %1193
        %1195 = vrot.lane.b32.xlu0 %v386, 8
        %v1196 = vpop.permute.xlu0 %1195
        %1197 = vrot.lane.b32.xlu0 %v387, 8
        %v1198 = vpop.permute.xlu0 %1197
        %1199 = vrot.lane.b32.xlu0 %v388, 8
        %v1200 = vpop.permute.xlu0 %1199
        %1201 = vrot.lane.b32.xlu0 %v389, 8
        %v1202 = vpop.permute.xlu0 %1201
        %1203 = vrot.lane.b32.xlu0 %v390, 8
        %v1204 = vpop.permute.xlu0 %1203
        %1205 = vrot.lane.b32.xlu0 %v391, 8
        %v1206 = vpop.permute.xlu0 %1205
        %1207 = vrot.lane.b32.xlu0 %v392, 8
        %v1208 = vpop.permute.xlu0 %1207
        %1209 = vrot.lane.b32.xlu0 %v393, 8
        %v1210 = vpop.permute.xlu0 %1209
        %1211 = vrot.lane.b32.xlu0 %v394, 8
        %v1212 = vpop.permute.xlu0 %1211
        %vm1243 = vcmask 130112
        %1244 = vst.msk [vmem:[#allocation2 + $0x10] sm:$0xff] %vm1243, %v1154
        %1245 = vst.msk [vmem:[#allocation2 + $0x18] sm:$0xff] %vm1243, %v1156
        %1246 = vst.msk [vmem:[#allocation2 + $0x20] sm:$0xff] %vm1243, %v1158
        %1247 = vst.msk [vmem:[#allocation2 + $0x28] sm:$0xff] %vm1243, %v1160
        %1248 = vst.msk [vmem:[#allocation2 + $0x30] sm:$0xff] %vm1243, %v1162
        %1249 = vst.msk [vmem:[#allocation2 + $0x38] sm:$0xff] %vm1243, %v1164
        %1250 = vst.msk [vmem:[#allocation2 + $0x40] sm:$0xff] %vm1243, %v1166
        %1251 = vst.msk [vmem:[#allocation2 + $0x48] sm:$0xff] %vm1243, %v1168
        %1252 = vst.msk [vmem:[#allocation2 + $0x50] sm:$0xff] %vm1243, %v1170
        %1253 = vst.msk [vmem:[#allocation2 + $0x58] sm:$0xff] %vm1243, %v1172
        %1254 = vst.msk [vmem:[#allocation2 + $0x60] sm:$0xff] %vm1243, %v1174
        %1255 = vst.msk [vmem:[#allocation2 + $0x68] sm:$0xff] %vm1243, %v1176
        %1256 = vst.msk [vmem:[#allocation2 + $0x70] sm:$0xff] %vm1243, %v1178
        %1257 = vst.msk [vmem:[#allocation2 + $0x78] sm:$0xff] %vm1243, %v1180
        %1258 = vst.msk [vmem:[#allocation2 + $0x80] sm:$0xff] %vm1243, %v1182
        %1259 = vst.msk [vmem:[#allocation2 + $0x88] sm:$0xff] %vm1243, %v1184
        %1260 = vst.msk [vmem:[#allocation2 + $0x90] sm:$0xff] %vm1243, %v1186
        %1261 = vst.msk [vmem:[#allocation2 + $0x98] sm:$0xff] %vm1243, %v1188
        %1262 = vst.msk [vmem:[#allocation2 + $0xa0] sm:$0xff] %vm1243, %v1190
        %1263 = vst.msk [vmem:[#allocation2 + $0xa8] sm:$0xff] %vm1243, %v1192
        %1264 = vst.msk [vmem:[#allocation2 + $0xb0] sm:$0xff] %vm1243, %v1194
        %1265 = vst.msk [vmem:[#allocation2 + $0xb8] sm:$0xff] %vm1243, %v1196
        %1266 = vst.msk [vmem:[#allocation2 + $0xc0] sm:$0xff] %vm1243, %v1198
        %1267 = vst.msk [vmem:[#allocation2 + $0xc8] sm:$0xff] %vm1243, %v1200
        %1268 = vst.msk [vmem:[#allocation2 + $0xd0] sm:$0xff] %vm1243, %v1202
        %1269 = vst.msk [vmem:[#allocation2 + $0xd8] sm:$0xff] %vm1243, %v1204
        %1270 = vst.msk [vmem:[#allocation2 + $0xe0] sm:$0xff] %vm1243, %v1206
        %1271 = vst.msk [vmem:[#allocation2 + $0xe8] sm:$0xff] %vm1243, %v1208
        %1272 = vst.msk [vmem:[#allocation2 + $0xf0] sm:$0xff] %vm1243, %v1210
        %1273 = vst.msk [vmem:[#allocation2 + $0xf8] sm:$0xff] %vm1243, %v1212
        %v1274 = vsel %vm847, 1, 0
        %v1275 = vsel %vm848, 1, 0
        %v1276 = vsel %vm849, 1, 0
        %v1277 = vsel %vm850, 1, 0
        %v1278 = vsel %vm851, 1, 0
        %v1279 = vsel %vm852, 1, 0
        %v1280 = vsel %vm853, 1, 0
        %v1281 = vsel %vm854, 1, 0
        %v1282 = vsel %vm855, 1, 0
        %v1283 = vsel %vm856, 1, 0
        %v1284 = vsel %vm857, 1, 0
        %v1285 = vsel %vm858, 1, 0
        %v1286 = vsel %vm859, 1, 0
        %v1287 = vsel %vm860, 1, 0
        %v1288 = vsel %vm861, 1, 0
        %v1289 = vsel %vm862, 1, 0
        %v1290 = vsel %vm863, 1, 0
        %v1291 = vsel %vm864, 1, 0
        %v1292 = vsel %vm865, 1, 0
        %v1293 = vsel %vm866, 1, 0
        %v1294 = vsel %vm867, 1, 0
        %v1295 = vsel %vm868, 1, 0
        %v1296 = vsel %vm869, 1, 0
        %v1297 = vsel %vm870, 1, 0
        %v1298 = vsel %vm871, 1, 0
        %v1299 = vsel %vm872, 1, 0
        %v1300 = vsel %vm873, 1, 0
        %v1301 = vsel %vm874, 1, 0
        %v1302 = vsel %vm875, 1, 0
        %v1303 = vsel %vm876, 1, 0
        %v1304 = vsel %vm877, 1, 0
        %vm1305 = vcmp.eq.s32.totalorder %v1274, 1
        %vm1306 = vcmp.eq.s32.totalorder %v1275, 1
        %vm1307 = vcmp.eq.s32.totalorder %v1276, 1
        %vm1308 = vcmp.eq.s32.totalorder %v1277, 1
        %vm1309 = vcmp.eq.s32.totalorder %v1278, 1
        %vm1310 = vcmp.eq.s32.totalorder %v1279, 1
        %vm1311 = vcmp.eq.s32.totalorder %v1280, 1
        %vm1312 = vcmp.eq.s32.totalorder %v1281, 1
        %vm1313 = vcmp.eq.s32.totalorder %v1282, 1
        %vm1314 = vcmp.eq.s32.totalorder %v1283, 1
        %vm1315 = vcmp.eq.s32.totalorder %v1284, 1
        %vm1316 = vcmp.eq.s32.totalorder %v1285, 1
        %vm1317 = vcmp.eq.s32.totalorder %v1286, 1
        %vm1318 = vcmp.eq.s32.totalorder %v1287, 1
        %vm1319 = vcmp.eq.s32.totalorder %v1288, 1
        %vm1320 = vcmp.eq.s32.totalorder %v1289, 1
        %vm1321 = vcmp.eq.s32.totalorder %v1290, 1
        %vm1322 = vcmp.eq.s32.totalorder %v1291, 1
        %vm1323 = vcmp.eq.s32.totalorder %v1292, 1
        %vm1324 = vcmp.eq.s32.totalorder %v1293, 1
        %vm1325 = vcmp.eq.s32.totalorder %v1294, 1
        %vm1326 = vcmp.eq.s32.totalorder %v1295, 1
        %vm1327 = vcmp.eq.s32.totalorder %v1296, 1
        %vm1328 = vcmp.eq.s32.totalorder %v1297, 1
        %vm1329 = vcmp.eq.s32.totalorder %v1298, 1
        %vm1330 = vcmp.eq.s32.totalorder %v1299, 1
        %vm1331 = vcmp.eq.s32.totalorder %v1300, 1
        %vm1332 = vcmp.eq.s32.totalorder %v1301, 1
        %vm1333 = vcmp.eq.s32.totalorder %v1302, 1
        %vm1334 = vcmp.eq.s32.totalorder %v1303, 1
        %vm1335 = vcmp.eq.s32.totalorder %v1304, 1
        %vm1337 = vcmask 1046528
        %v1338 = vrot.slane %v365, 1
        %v1339 = vrot.slane %v366, 1
        %v1340 = vsel %vm1337, %v1338, %v1339
        %v1341 = vrot.slane %v367, 1
        %v1342 = vsel %vm1337, %v1339, %v1341
        %v1343 = vrot.slane %v368, 1
        %v1344 = vsel %vm1337, %v1341, %v1343
        %v1345 = vrot.slane %v369, 1
        %v1346 = vsel %vm1337, %v1343, %v1345
        %v1347 = vrot.slane %v370, 1
        %v1348 = vsel %vm1337, %v1345, %v1347
        %v1349 = vrot.slane %v371, 1
        %v1350 = vsel %vm1337, %v1347, %v1349
        %v1351 = vrot.slane %v372, 1
        %v1352 = vsel %vm1337, %v1349, %v1351
        %v1353 = vrot.slane %v373, 1
        %v1354 = vsel %vm1337, %v1351, %v1353
        %v1355 = vrot.slane %v374, 1
        %v1356 = vsel %vm1337, %v1353, %v1355
        %v1357 = vrot.slane %v375, 1
        %v1358 = vsel %vm1337, %v1355, %v1357
        %v1359 = vrot.slane %v376, 1
        %v1360 = vsel %vm1337, %v1357, %v1359
        %v1361 = vrot.slane %v377, 1
        %v1362 = vsel %vm1337, %v1359, %v1361
        %v1363 = vrot.slane %v378, 1
        %v1364 = vsel %vm1337, %v1361, %v1363
        %v1365 = vrot.slane %v379, 1
        %v1366 = vsel %vm1337, %v1363, %v1365
        %v1367 = vrot.slane %v380, 1
        %v1368 = vsel %vm1337, %v1365, %v1367
        %v1369 = vrot.slane %v381, 1
        %v1370 = vsel %vm1337, %v1367, %v1369
        %v1371 = vrot.slane %v382, 1
        %v1372 = vsel %vm1337, %v1369, %v1371
        %v1373 = vrot.slane %v383, 1
        %v1374 = vsel %vm1337, %v1371, %v1373
        %v1375 = vrot.slane %v384, 1
        %v1376 = vsel %vm1337, %v1373, %v1375
        %v1377 = vrot.slane %v385, 1
        %v1378 = vsel %vm1337, %v1375, %v1377
        %v1379 = vrot.slane %v386, 1
        %v1380 = vsel %vm1337, %v1377, %v1379
        %v1381 = vrot.slane %v387, 1
        %v1382 = vsel %vm1337, %v1379, %v1381
        %v1383 = vrot.slane %v388, 1
        %v1384 = vsel %vm1337, %v1381, %v1383
        %v1385 = vrot.slane %v389, 1
        %v1386 = vsel %vm1337, %v1383, %v1385
        %v1387 = vrot.slane %v390, 1
        %v1388 = vsel %vm1337, %v1385, %v1387
        %v1389 = vrot.slane %v391, 1
        %v1390 = vsel %vm1337, %v1387, %v1389
        %v1391 = vrot.slane %v392, 1
        %v1392 = vsel %vm1337, %v1389, %v1391
        %v1393 = vrot.slane %v393, 1
        %v1394 = vsel %vm1337, %v1391, %v1393
        %v1395 = vrot.slane %v394, 1
        %v1396 = vsel %vm1337, %v1393, %v1395
        %v1397 = vrot.slane %v395, 1
        %v1398 = vsel %vm1337, %v1395, %v1397
        %v1430 = vsel %vm1305, %v1338, 0.0
        %v1431 = vsel %vm1306, %v1340, 0.0
        %v1432 = vsel %vm1307, %v1342, 0.0
        %v1433 = vsel %vm1308, %v1344, 0.0
        %v1434 = vsel %vm1309, %v1346, 0.0
        %v1435 = vsel %vm1310, %v1348, 0.0
        %v1436 = vsel %vm1311, %v1350, 0.0
        %v1437 = vsel %vm1312, %v1352, 0.0
        %v1438 = vsel %vm1313, %v1354, 0.0
        %v1439 = vsel %vm1314, %v1356, 0.0
        %v1440 = vsel %vm1315, %v1358, 0.0
        %v1441 = vsel %vm1316, %v1360, 0.0
        %v1442 = vsel %vm1317, %v1362, 0.0
        %v1443 = vsel %vm1318, %v1364, 0.0
        %v1444 = vsel %vm1319, %v1366, 0.0
        %v1445 = vsel %vm1320, %v1368, 0.0
        %v1446 = vsel %vm1321, %v1370, 0.0
        %v1447 = vsel %vm1322, %v1372, 0.0
        %v1448 = vsel %vm1323, %v1374, 0.0
        %v1449 = vsel %vm1324, %v1376, 0.0
        %v1450 = vsel %vm1325, %v1378, 0.0
        %v1451 = vsel %vm1326, %v1380, 0.0
        %v1452 = vsel %vm1327, %v1382, 0.0
        %v1453 = vsel %vm1328, %v1384, 0.0
        %v1454 = vsel %vm1329, %v1386, 0.0
        %v1455 = vsel %vm1330, %v1388, 0.0
        %v1456 = vsel %vm1331, %v1390, 0.0
        %v1457 = vsel %vm1332, %v1392, 0.0
        %v1458 = vsel %vm1333, %v1394, 0.0
        %v1459 = vsel %vm1334, %v1396, 0.0
        %v1460 = vsel %vm1335, %v1398, 0.0
        %1492 = vrot.lane.b32.xlu0 %v1430, 16
        %v1493 = vpop.permute.xlu0 %1492
        %1494 = vrot.lane.b32.xlu0 %v1431, 16
        %v1495 = vpop.permute.xlu0 %1494
        %1496 = vrot.lane.b32.xlu0 %v1432, 16
        %v1497 = vpop.permute.xlu0 %1496
        %1498 = vrot.lane.b32.xlu0 %v1433, 16
        %v1499 = vpop.permute.xlu0 %1498
        %1500 = vrot.lane.b32.xlu0 %v1434, 16
        %v1501 = vpop.permute.xlu0 %1500
        %1502 = vrot.lane.b32.xlu0 %v1435, 16
        %v1503 = vpop.permute.xlu0 %1502
        %1504 = vrot.lane.b32.xlu0 %v1436, 16
        %v1505 = vpop.permute.xlu0 %1504
        %1506 = vrot.lane.b32.xlu0 %v1437, 16
        %v1507 = vpop.permute.xlu0 %1506
        %1508 = vrot.lane.b32.xlu0 %v1438, 16
        %v1509 = vpop.permute.xlu0 %1508
        %1510 = vrot.lane.b32.xlu0 %v1439, 16
        %v1511 = vpop.permute.xlu0 %1510
        %1512 = vrot.lane.b32.xlu0 %v1440, 16
        %v1513 = vpop.permute.xlu0 %1512
        %1514 = vrot.lane.b32.xlu0 %v1441, 16
        %v1515 = vpop.permute.xlu0 %1514
        %1516 = vrot.lane.b32.xlu0 %v1442, 16
        %v1517 = vpop.permute.xlu0 %1516
        %1518 = vrot.lane.b32.xlu0 %v1443, 16
        %v1519 = vpop.permute.xlu0 %1518
        %1520 = vrot.lane.b32.xlu0 %v1444, 16
        %v1521 = vpop.permute.xlu0 %1520
        %1522 = vrot.lane.b32.xlu0 %v1445, 16
        %v1523 = vpop.permute.xlu0 %1522
        %1524 = vrot.lane.b32.xlu0 %v1446, 16
        %v1525 = vpop.permute.xlu0 %1524
        %1526 = vrot.lane.b32.xlu0 %v1447, 16
        %v1527 = vpop.permute.xlu0 %1526
        %1528 = vrot.lane.b32.xlu0 %v1448, 16
        %v1529 = vpop.permute.xlu0 %1528
        %1530 = vrot.lane.b32.xlu0 %v1449, 16
        %v1531 = vpop.permute.xlu0 %1530
        %1532 = vrot.lane.b32.xlu0 %v1450, 16
        %v1533 = vpop.permute.xlu0 %1532
        %1534 = vrot.lane.b32.xlu0 %v1451, 16
        %v1535 = vpop.permute.xlu0 %1534
        %1536 = vrot.lane.b32.xlu0 %v1452, 16
        %v1537 = vpop.permute.xlu0 %1536
        %1538 = vrot.lane.b32.xlu0 %v1453, 16
        %v1539 = vpop.permute.xlu0 %1538
        %1540 = vrot.lane.b32.xlu0 %v1454, 16
        %v1541 = vpop.permute.xlu0 %1540
        %1542 = vrot.lane.b32.xlu0 %v1455, 16
        %v1543 = vpop.permute.xlu0 %1542
        %1544 = vrot.lane.b32.xlu0 %v1456, 16
        %v1545 = vpop.permute.xlu0 %1544
        %1546 = vrot.lane.b32.xlu0 %v1457, 16
        %v1547 = vpop.permute.xlu0 %1546
        %1548 = vrot.lane.b32.xlu0 %v1458, 16
        %v1549 = vpop.permute.xlu0 %1548
        %1550 = vrot.lane.b32.xlu0 %v1459, 16
        %v1551 = vpop.permute.xlu0 %1550
        %1552 = vrot.lane.b32.xlu0 %v1460, 16
        %v1553 = vpop.permute.xlu0 %1552
        %vm1585 = vcmask 195719
        %1586 = vst.msk [vmem:[#allocation2 + $0x8] sm:$0x80] %vm1585, %v1493
        %vm1587 = vcmask 195712
        %1588 = vst.msk [vmem:[#allocation2 + $0x10] sm:$0xff] %vm1587, %v1495
        %1589 = vst.msk [vmem:[#allocation2 + $0x18] sm:$0xff] %vm1587, %v1497
        %1590 = vst.msk [vmem:[#allocation2 + $0x20] sm:$0xff] %vm1587, %v1499
        %1591 = vst.msk [vmem:[#allocation2 + $0x28] sm:$0xff] %vm1587, %v1501
        %1592 = vst.msk [vmem:[#allocation2 + $0x30] sm:$0xff] %vm1587, %v1503
        %1593 = vst.msk [vmem:[#allocation2 + $0x38] sm:$0xff] %vm1587, %v1505
        %1594 = vst.msk [vmem:[#allocation2 + $0x40] sm:$0xff] %vm1587, %v1507
        %1595 = vst.msk [vmem:[#allocation2 + $0x48] sm:$0xff] %vm1587, %v1509
        %1596 = vst.msk [vmem:[#allocation2 + $0x50] sm:$0xff] %vm1587, %v1511
        %1597 = vst.msk [vmem:[#allocation2 + $0x58] sm:$0xff] %vm1587, %v1513
        %1598 = vst.msk [vmem:[#allocation2 + $0x60] sm:$0xff] %vm1587, %v1515
        %1599 = vst.msk [vmem:[#allocation2 + $0x68] sm:$0xff] %vm1587, %v1517
        %1600 = vst.msk [vmem:[#allocation2 + $0x70] sm:$0xff] %vm1587, %v1519
        %1601 = vst.msk [vmem:[#allocation2 + $0x78] sm:$0xff] %vm1587, %v1521
        %1602 = vst.msk [vmem:[#allocation2 + $0x80] sm:$0xff] %vm1587, %v1523
        %1603 = vst.msk [vmem:[#allocation2 + $0x88] sm:$0xff] %vm1587, %v1525
        %1604 = vst.msk [vmem:[#allocation2 + $0x90] sm:$0xff] %vm1587, %v1527
        %1605 = vst.msk [vmem:[#allocation2 + $0x98] sm:$0xff] %vm1587, %v1529
        %1606 = vst.msk [vmem:[#allocation2 + $0xa0] sm:$0xff] %vm1587, %v1531
        %1607 = vst.msk [vmem:[#allocation2 + $0xa8] sm:$0xff] %vm1587, %v1533
        %1608 = vst.msk [vmem:[#allocation2 + $0xb0] sm:$0xff] %vm1587, %v1535
        %1609 = vst.msk [vmem:[#allocation2 + $0xb8] sm:$0xff] %vm1587, %v1537
        %1610 = vst.msk [vmem:[#allocation2 + $0xc0] sm:$0xff] %vm1587, %v1539
        %1611 = vst.msk [vmem:[#allocation2 + $0xc8] sm:$0xff] %vm1587, %v1541
        %1612 = vst.msk [vmem:[#allocation2 + $0xd0] sm:$0xff] %vm1587, %v1543
        %1613 = vst.msk [vmem:[#allocation2 + $0xd8] sm:$0xff] %vm1587, %v1545
        %1614 = vst.msk [vmem:[#allocation2 + $0xe0] sm:$0xff] %vm1587, %v1547
        %1615 = vst.msk [vmem:[#allocation2 + $0xe8] sm:$0xff] %vm1587, %v1549
        %1616 = vst.msk [vmem:[#allocation2 + $0xf0] sm:$0xff] %vm1587, %v1551
        %1617 = vst.msk [vmem:[#allocation2 + $0xf8] sm:$0xff] %vm1587, %v1553
        %v1618 = vsel %vm814, 1, 0
        %v1619 = vsel %vm815, 1, 0
        %vm1620 = vcmp.eq.s32.totalorder %v1618, 1
        %vm1621 = vcmp.eq.s32.totalorder %v1619, 1
        %v1623 = vrot.slane %v395, 7
        %v1624 = vsel %vm1001, %v1059, %v1623
        %v1625 = vrot.slane %v396, 7
        %v1626 = vsel %vm1001, %v1623, %v1625
        %v1629 = vsel %vm1620, %v1002, 0.0
        %v1630 = vsel %vm1621, %v1004, 0.0
        %v1631 = vsel %vm941, %v1006, 0.0
        %v1632 = vsel %vm942, %v1008, 0.0
        %v1633 = vsel %vm943, %v1010, 0.0
        %v1634 = vsel %vm944, %v1012, 0.0
        %v1635 = vsel %vm945, %v1014, 0.0
        %v1636 = vsel %vm946, %v1016, 0.0
        %v1637 = vsel %vm947, %v1018, 0.0
        %v1638 = vsel %vm948, %v1020, 0.0
        %v1639 = vsel %vm949, %v1022, 0.0
        %v1640 = vsel %vm950, %v1024, 0.0
        %v1641 = vsel %vm951, %v1026, 0.0
        %v1642 = vsel %vm952, %v1028, 0.0
        %v1643 = vsel %vm953, %v1030, 0.0
        %v1644 = vsel %vm954, %v1032, 0.0
        %v1645 = vsel %vm955, %v1034, 0.0
        %v1646 = vsel %vm956, %v1036, 0.0
        %v1647 = vsel %vm957, %v1038, 0.0
        %v1648 = vsel %vm958, %v1040, 0.0
        %v1649 = vsel %vm959, %v1042, 0.0
        %v1650 = vsel %vm960, %v1044, 0.0
        %v1651 = vsel %vm961, %v1046, 0.0
        %v1652 = vsel %vm962, %v1048, 0.0
        %v1653 = vsel %vm963, %v1050, 0.0
        %v1654 = vsel %vm964, %v1052, 0.0
        %v1655 = vsel %vm965, %v1054, 0.0
        %v1656 = vsel %vm966, %v1056, 0.0
        %v1657 = vsel %vm967, %v1058, 0.0
        %v1658 = vsel %vm968, %v1060, 0.0
        %v1659 = vsel %vm969, %v1624, 0.0
        %v1660 = vsel %vm970, %v1626, 0.0
        %1693 = vrot.lane.b32.xlu0 %v1629, 24
        %v1694 = vpop.permute.xlu0 %1693
        %1695 = vrot.lane.b32.xlu0 %v1630, 24
        %v1696 = vpop.permute.xlu0 %1695
        %1697 = vrot.lane.b32.xlu0 %v1631, 24
        %v1698 = vpop.permute.xlu0 %1697
        %1699 = vrot.lane.b32.xlu0 %v1632, 24
        %v1700 = vpop.permute.xlu0 %1699
        %1701 = vrot.lane.b32.xlu0 %v1633, 24
        %v1702 = vpop.permute.xlu0 %1701
        %1703 = vrot.lane.b32.xlu0 %v1634, 24
        %v1704 = vpop.permute.xlu0 %1703
        %1705 = vrot.lane.b32.xlu0 %v1635, 24
        %v1706 = vpop.permute.xlu0 %1705
        %1707 = vrot.lane.b32.xlu0 %v1636, 24
        %v1708 = vpop.permute.xlu0 %1707
        %1709 = vrot.lane.b32.xlu0 %v1637, 24
        %v1710 = vpop.permute.xlu0 %1709
        %1711 = vrot.lane.b32.xlu0 %v1638, 24
        %v1712 = vpop.permute.xlu0 %1711
        %1713 = vrot.lane.b32.xlu0 %v1639, 24
        %v1714 = vpop.permute.xlu0 %1713
        %1715 = vrot.lane.b32.xlu0 %v1640, 24
        %v1716 = vpop.permute.xlu0 %1715
        %1717 = vrot.lane.b32.xlu0 %v1641, 24
        %v1718 = vpop.permute.xlu0 %1717
        %1719 = vrot.lane.b32.xlu0 %v1642, 24
        %v1720 = vpop.permute.xlu0 %1719
        %1721 = vrot.lane.b32.xlu0 %v1643, 24
        %v1722 = vpop.permute.xlu0 %1721
        %1723 = vrot.lane.b32.xlu0 %v1644, 24
        %v1724 = vpop.permute.xlu0 %1723
        %1725 = vrot.lane.b32.xlu0 %v1645, 24
        %v1726 = vpop.permute.xlu0 %1725
        %1727 = vrot.lane.b32.xlu0 %v1646, 24
        %v1728 = vpop.permute.xlu0 %1727
        %1729 = vrot.lane.b32.xlu0 %v1647, 24
        %v1730 = vpop.permute.xlu0 %1729
        %1731 = vrot.lane.b32.xlu0 %v1648, 24
        %v1732 = vpop.permute.xlu0 %1731
        %1733 = vrot.lane.b32.xlu0 %v1649, 24
        %v1734 = vpop.permute.xlu0 %1733
        %1735 = vrot.lane.b32.xlu0 %v1650, 24
        %v1736 = vpop.permute.xlu0 %1735
        %1737 = vrot.lane.b32.xlu0 %v1651, 24
        %v1738 = vpop.permute.xlu0 %1737
        %1739 = vrot.lane.b32.xlu0 %v1652, 24
        %v1740 = vpop.permute.xlu0 %1739
        %1741 = vrot.lane.b32.xlu0 %v1653, 24
        %v1742 = vpop.permute.xlu0 %1741
        %1743 = vrot.lane.b32.xlu0 %v1654, 24
        %v1744 = vpop.permute.xlu0 %1743
        %1745 = vrot.lane.b32.xlu0 %v1655, 24
        %v1746 = vpop.permute.xlu0 %1745
        %1747 = vrot.lane.b32.xlu0 %v1656, 24
        %v1748 = vpop.permute.xlu0 %1747
        %1749 = vrot.lane.b32.xlu0 %v1657, 24
        %v1750 = vpop.permute.xlu0 %1749
        %1751 = vrot.lane.b32.xlu0 %v1658, 24
        %v1752 = vpop.permute.xlu0 %1751
        %1753 = vrot.lane.b32.xlu0 %v1659, 24
        %v1754 = vpop.permute.xlu0 %1753
        %1755 = vrot.lane.b32.xlu0 %v1660, 24
        %v1756 = vpop.permute.xlu0 %1755
        %vm1789 = vcmask 261313
        %1790 = vst.msk [vmem:[#allocation2] sm:$0xfe] %vm1789, %v1694
        %vm1791 = vcmask 261312
        %1792 = vst.msk [vmem:[#allocation2 + $0x8] sm:$0xff] %vm1791, %v1696
        %1793 = vst.msk [vmem:[#allocation2 + $0x10] sm:$0xff] %vm1791, %v1698
        %1794 = vst.msk [vmem:[#allocation2 + $0x18] sm:$0xff] %vm1791, %v1700
        %1795 = vst.msk [vmem:[#allocation2 + $0x20] sm:$0xff] %vm1791, %v1702
        %1796 = vst.msk [vmem:[#allocation2 + $0x28] sm:$0xff] %vm1791, %v1704
        %1797 = vst.msk [vmem:[#allocation2 + $0x30] sm:$0xff] %vm1791, %v1706
        %1798 = vst.msk [vmem:[#allocation2 + $0x38] sm:$0xff] %vm1791, %v1708
        %1799 = vst.msk [vmem:[#allocation2 + $0x40] sm:$0xff] %vm1791, %v1710
        %1800 = vst.msk [vmem:[#allocation2 + $0x48] sm:$0xff] %vm1791, %v1712
        %1801 = vst.msk [vmem:[#allocation2 + $0x50] sm:$0xff] %vm1791, %v1714
        %1802 = vst.msk [vmem:[#allocation2 + $0x58] sm:$0xff] %vm1791, %v1716
        %1803 = vst.msk [vmem:[#allocation2 + $0x60] sm:$0xff] %vm1791, %v1718
        %1804 = vst.msk [vmem:[#allocation2 + $0x68] sm:$0xff] %vm1791, %v1720
        %1805 = vst.msk [vmem:[#allocation2 + $0x70] sm:$0xff] %vm1791, %v1722
        %1806 = vst.msk [vmem:[#allocation2 + $0x78] sm:$0xff] %vm1791, %v1724
        %1807 = vst.msk [vmem:[#allocation2 + $0x80] sm:$0xff] %vm1791, %v1726
        %1808 = vst.msk [vmem:[#allocation2 + $0x88] sm:$0xff] %vm1791, %v1728
        %1809 = vst.msk [vmem:[#allocation2 + $0x90] sm:$0xff] %vm1791, %v1730
        %1810 = vst.msk [vmem:[#allocation2 + $0x98] sm:$0xff] %vm1791, %v1732
        %1811 = vst.msk [vmem:[#allocation2 + $0xa0] sm:$0xff] %vm1791, %v1734
        %1812 = vst.msk [vmem:[#allocation2 + $0xa8] sm:$0xff] %vm1791, %v1736
        %1813 = vst.msk [vmem:[#allocation2 + $0xb0] sm:$0xff] %vm1791, %v1738
        %1814 = vst.msk [vmem:[#allocation2 + $0xb8] sm:$0xff] %vm1791, %v1740
        %1815 = vst.msk [vmem:[#allocation2 + $0xc0] sm:$0xff] %vm1791, %v1742
        %1816 = vst.msk [vmem:[#allocation2 + $0xc8] sm:$0xff] %vm1791, %v1744
        %1817 = vst.msk [vmem:[#allocation2 + $0xd0] sm:$0xff] %vm1791, %v1746
        %1818 = vst.msk [vmem:[#allocation2 + $0xd8] sm:$0xff] %vm1791, %v1748
        %1819 = vst.msk [vmem:[#allocation2 + $0xe0] sm:$0xff] %vm1791, %v1750
        %1820 = vst.msk [vmem:[#allocation2 + $0xe8] sm:$0xff] %vm1791, %v1752
        %1821 = vst.msk [vmem:[#allocation2 + $0xf0] sm:$0xff] %vm1791, %v1754
        %1822 = vst.msk [vmem:[#allocation2 + $0xf8] sm:$0xff] %vm1791, %v1756
        %1823 = vrot.lane.b32.xlu0 %v365, 32
        %v1824 = vpop.permute.xlu0 %1823
        %1825 = vrot.lane.b32.xlu0 %v366, 32
        %v1826 = vpop.permute.xlu0 %1825
        %1827 = vrot.lane.b32.xlu0 %v367, 32
        %v1828 = vpop.permute.xlu0 %1827
        %1829 = vrot.lane.b32.xlu0 %v368, 32
        %v1830 = vpop.permute.xlu0 %1829
        %1831 = vrot.lane.b32.xlu0 %v369, 32
        %v1832 = vpop.permute.xlu0 %1831
        %1833 = vrot.lane.b32.xlu0 %v370, 32
        %v1834 = vpop.permute.xlu0 %1833
        %1835 = vrot.lane.b32.xlu0 %v371, 32
        %v1836 = vpop.permute.xlu0 %1835
        %1837 = vrot.lane.b32.xlu0 %v372, 32
        %v1838 = vpop.permute.xlu0 %1837
        %1839 = vrot.lane.b32.xlu0 %v373, 32
        %v1840 = vpop.permute.xlu0 %1839
        %1841 = vrot.lane.b32.xlu0 %v374, 32
        %v1842 = vpop.permute.xlu0 %1841
        %1843 = vrot.lane.b32.xlu0 %v375, 32
        %v1844 = vpop.permute.xlu0 %1843
        %1845 = vrot.lane.b32.xlu0 %v376, 32
        %v1846 = vpop.permute.xlu0 %1845
        %1847 = vrot.lane.b32.xlu0 %v377, 32
        %v1848 = vpop.permute.xlu0 %1847
        %1849 = vrot.lane.b32.xlu0 %v378, 32
        %v1850 = vpop.permute.xlu0 %1849
        %1851 = vrot.lane.b32.xlu0 %v379, 32
        %v1852 = vpop.permute.xlu0 %1851
        %1853 = vrot.lane.b32.xlu0 %v380, 32
        %v1854 = vpop.permute.xlu0 %1853
        %1855 = vrot.lane.b32.xlu0 %v381, 32
        %v1856 = vpop.permute.xlu0 %1855
        %1857 = vrot.lane.b32.xlu0 %v382, 32
        %v1858 = vpop.permute.xlu0 %1857
        %1859 = vrot.lane.b32.xlu0 %v383, 32
        %v1860 = vpop.permute.xlu0 %1859
        %1861 = vrot.lane.b32.xlu0 %v384, 32
        %v1862 = vpop.permute.xlu0 %1861
        %1863 = vrot.lane.b32.xlu0 %v385, 32
        %v1864 = vpop.permute.xlu0 %1863
        %1865 = vrot.lane.b32.xlu0 %v386, 32
        %v1866 = vpop.permute.xlu0 %1865
        %1867 = vrot.lane.b32.xlu0 %v387, 32
        %v1868 = vpop.permute.xlu0 %1867
        %1869 = vrot.lane.b32.xlu0 %v388, 32
        %v1870 = vpop.permute.xlu0 %1869
        %1871 = vrot.lane.b32.xlu0 %v389, 32
        %v1872 = vpop.permute.xlu0 %1871
        %1873 = vrot.lane.b32.xlu0 %v390, 32
        %v1874 = vpop.permute.xlu0 %1873
        %1875 = vrot.lane.b32.xlu0 %v391, 32
        %v1876 = vpop.permute.xlu0 %1875
        %1877 = vrot.lane.b32.xlu0 %v392, 32
        %v1878 = vpop.permute.xlu0 %1877
        %1879 = vrot.lane.b32.xlu0 %v393, 32
        %v1880 = vpop.permute.xlu0 %1879
        %1881 = vrot.lane.b32.xlu0 %v394, 32
        %v1882 = vpop.permute.xlu0 %1881
        %1883 = vrot.lane.b32.xlu0 %v395, 32
        %v1884 = vpop.permute.xlu0 %1883
        %1885 = vrot.lane.b32.xlu0 %v396, 32
        %v1886 = vpop.permute.xlu0 %1885
        %vm1919 = vcmask 326912
        %1920 = vst.msk [vmem:[#allocation2] sm:$0xff] %vm1919, %v1824
        %1921 = vst.msk [vmem:[#allocation2 + $0x8] sm:$0xff] %vm1919, %v1826
        %1922 = vst.msk [vmem:[#allocation2 + $0x10] sm:$0xff] %vm1919, %v1828
        %1923 = vst.msk [vmem:[#allocation2 + $0x18] sm:$0xff] %vm1919, %v1830
        %1924 = vst.msk [vmem:[#allocation2 + $0x20] sm:$0xff] %vm1919, %v1832
        %1925 = vst.msk [vmem:[#allocation2 + $0x28] sm:$0xff] %vm1919, %v1834
        %1926 = vst.msk [vmem:[#allocation2 + $0x30] sm:$0xff] %vm1919, %v1836
        %1927 = vst.msk [vmem:[#allocation2 + $0x38] sm:$0xff] %vm1919, %v1838
        %1928 = vst.msk [vmem:[#allocation2 + $0x40] sm:$0xff] %vm1919, %v1840
        %1929 = vst.msk [vmem:[#allocation2 + $0x48] sm:$0xff] %vm1919, %v1842
        %1930 = vst.msk [vmem:[#allocation2 + $0x50] sm:$0xff] %vm1919, %v1844
        %1931 = vst.msk [vmem:[#allocation2 + $0x58] sm:$0xff] %vm1919, %v1846
        %1932 = vst.msk [vmem:[#allocation2 + $0x60] sm:$0xff] %vm1919, %v1848
        %1933 = vst.msk [vmem:[#allocation2 + $0x68] sm:$0xff] %vm1919, %v1850
        %1934 = vst.msk [vmem:[#allocation2 + $0x70] sm:$0xff] %vm1919, %v1852
        %1935 = vst.msk [vmem:[#allocation2 + $0x78] sm:$0xff] %vm1919, %v1854
        %1936 = vst.msk [vmem:[#allocation2 + $0x80] sm:$0xff] %vm1919, %v1856
        %1937 = vst.msk [vmem:[#allocation2 + $0x88] sm:$0xff] %vm1919, %v1858
        %1938 = vst.msk [vmem:[#allocation2 + $0x90] sm:$0xff] %vm1919, %v1860
        %1939 = vst.msk [vmem:[#allocation2 + $0x98] sm:$0xff] %vm1919, %v1862
        %1940 = vst.msk [vmem:[#allocation2 + $0xa0] sm:$0xff] %vm1919, %v1864
        %1941 = vst.msk [vmem:[#allocation2 + $0xa8] sm:$0xff] %vm1919, %v1866
        %1942 = vst.msk [vmem:[#allocation2 + $0xb0] sm:$0xff] %vm1919, %v1868
        %1943 = vst.msk [vmem:[#allocation2 + $0xb8] sm:$0xff] %vm1919, %v1870
        %1944 = vst.msk [vmem:[#allocation2 + $0xc0] sm:$0xff] %vm1919, %v1872
        %1945 = vst.msk [vmem:[#allocation2 + $0xc8] sm:$0xff] %vm1919, %v1874
        %1946 = vst.msk [vmem:[#allocation2 + $0xd0] sm:$0xff] %vm1919, %v1876
        %1947 = vst.msk [vmem:[#allocation2 + $0xd8] sm:$0xff] %vm1919, %v1878
        %1948 = vst.msk [vmem:[#allocation2 + $0xe0] sm:$0xff] %vm1919, %v1880
        %1949 = vst.msk [vmem:[#allocation2 + $0xe8] sm:$0xff] %vm1919, %v1882
        %1950 = vst.msk [vmem:[#allocation2 + $0xf0] sm:$0xff] %vm1919, %v1884
        %1951 = vst.msk [vmem:[#allocation2 + $0xf8] sm:$0xff] %vm1919, %v1886
        %v1952 = vsel %vm846, 1, 0
        %vm1953 = vcmp.eq.s32.totalorder %v1952, 1
        %v1954 = vrot.slane %v396, 1
        %v1955 = vsel %vm1337, %v1397, %v1954
        %v1958 = vsel %vm1953, %v1340, 0.0
        %v1959 = vsel %vm1305, %v1342, 0.0
        %v1960 = vsel %vm1306, %v1344, 0.0
        %v1961 = vsel %vm1307, %v1346, 0.0
        %v1962 = vsel %vm1308, %v1348, 0.0
        %v1963 = vsel %vm1309, %v1350, 0.0
        %v1964 = vsel %vm1310, %v1352, 0.0
        %v1965 = vsel %vm1311, %v1354, 0.0
        %v1966 = vsel %vm1312, %v1356, 0.0
        %v1967 = vsel %vm1313, %v1358, 0.0
        %v1968 = vsel %vm1314, %v1360, 0.0
        %v1969 = vsel %vm1315, %v1362, 0.0
        %v1970 = vsel %vm1316, %v1364, 0.0
        %v1971 = vsel %vm1317, %v1366, 0.0
        %v1972 = vsel %vm1318, %v1368, 0.0
        %v1973 = vsel %vm1319, %v1370, 0.0
        %v1974 = vsel %vm1320, %v1372, 0.0
        %v1975 = vsel %vm1321, %v1374, 0.0
        %v1976 = vsel %vm1322, %v1376, 0.0
        %v1977 = vsel %vm1323, %v1378, 0.0
        %v1978 = vsel %vm1324, %v1380, 0.0
        %v1979 = vsel %vm1325, %v1382, 0.0
        %v1980 = vsel %vm1326, %v1384, 0.0
        %v1981 = vsel %vm1327, %v1386, 0.0
        %v1982 = vsel %vm1328, %v1388, 0.0
        %v1983 = vsel %vm1329, %v1390, 0.0
        %v1984 = vsel %vm1330, %v1392, 0.0
        %v1985 = vsel %vm1331, %v1394, 0.0
        %v1986 = vsel %vm1332, %v1396, 0.0
        %v1987 = vsel %vm1333, %v1398, 0.0
        %v1988 = vsel %vm1334, %v1955, 0.0
        %v1989 = vsel %vm1335, %v1954, 0.0
        %2022 = vrot.lane.b32.xlu0 %v1958, 40
        %v2023 = vpop.permute.xlu0 %2022
        %2024 = vrot.lane.b32.xlu0 %v1959, 40
        %v2025 = vpop.permute.xlu0 %2024
        %2026 = vrot.lane.b32.xlu0 %v1960, 40
        %v2027 = vpop.permute.xlu0 %2026
        %2028 = vrot.lane.b32.xlu0 %v1961, 40
        %v2029 = vpop.permute.xlu0 %2028
        %2030 = vrot.lane.b32.xlu0 %v1962, 40
        %v2031 = vpop.permute.xlu0 %2030
        %2032 = vrot.lane.b32.xlu0 %v1963, 40
        %v2033 = vpop.permute.xlu0 %2032
        %2034 = vrot.lane.b32.xlu0 %v1964, 40
        %v2035 = vpop.permute.xlu0 %2034
        %2036 = vrot.lane.b32.xlu0 %v1965, 40
        %v2037 = vpop.permute.xlu0 %2036
        %2038 = vrot.lane.b32.xlu0 %v1966, 40
        %v2039 = vpop.permute.xlu0 %2038
        %2040 = vrot.lane.b32.xlu0 %v1967, 40
        %v2041 = vpop.permute.xlu0 %2040
        %2042 = vrot.lane.b32.xlu0 %v1968, 40
        %v2043 = vpop.permute.xlu0 %2042
        %2044 = vrot.lane.b32.xlu0 %v1969, 40
        %v2045 = vpop.permute.xlu0 %2044
        %2046 = vrot.lane.b32.xlu0 %v1970, 40
        %v2047 = vpop.permute.xlu0 %2046
        %2048 = vrot.lane.b32.xlu0 %v1971, 40
        %v2049 = vpop.permute.xlu0 %2048
        %2050 = vrot.lane.b32.xlu0 %v1972, 40
        %v2051 = vpop.permute.xlu0 %2050
        %2052 = vrot.lane.b32.xlu0 %v1973, 40
        %v2053 = vpop.permute.xlu0 %2052
        %2054 = vrot.lane.b32.xlu0 %v1974, 40
        %v2055 = vpop.permute.xlu0 %2054
        %2056 = vrot.lane.b32.xlu0 %v1975, 40
        %v2057 = vpop.permute.xlu0 %2056
        %2058 = vrot.lane.b32.xlu0 %v1976, 40
        %v2059 = vpop.permute.xlu0 %2058
        %2060 = vrot.lane.b32.xlu0 %v1977, 40
        %v2061 = vpop.permute.xlu0 %2060
        %2062 = vrot.lane.b32.xlu0 %v1978, 40
        %v2063 = vpop.permute.xlu0 %2062
        %2064 = vrot.lane.b32.xlu0 %v1979, 40
        %v2065 = vpop.permute.xlu0 %2064
        %2066 = vrot.lane.b32.xlu0 %v1980, 40
        %v2067 = vpop.permute.xlu0 %2066
        %2068 = vrot.lane.b32.xlu0 %v1981, 40
        %v2069 = vpop.permute.xlu0 %2068
        %2070 = vrot.lane.b32.xlu0 %v1982, 40
        %v2071 = vpop.permute.xlu0 %2070
        %2072 = vrot.lane.b32.xlu0 %v1983, 40
        %v2073 = vpop.permute.xlu0 %2072
        %2074 = vrot.lane.b32.xlu0 %v1984, 40
        %v2075 = vpop.permute.xlu0 %2074
        %2076 = vrot.lane.b32.xlu0 %v1985, 40
        %v2077 = vpop.permute.xlu0 %2076
        %2078 = vrot.lane.b32.xlu0 %v1986, 40
        %v2079 = vpop.permute.xlu0 %2078
        %2080 = vrot.lane.b32.xlu0 %v1987, 40
        %v2081 = vpop.permute.xlu0 %2080
        %2082 = vrot.lane.b32.xlu0 %v1988, 40
        %v2083 = vpop.permute.xlu0 %2082
        %2084 = vrot.lane.b32.xlu0 %v1989, 40
        %v2085 = vpop.permute.xlu0 %2084
        %vm2118 = vcmask 392512
        %2119 = vst.msk [vmem:[#allocation2] sm:$0xff] %vm2118, %v2023
        %2120 = vst.msk [vmem:[#allocation2 + $0x8] sm:$0xff] %vm2118, %v2025
        %2121 = vst.msk [vmem:[#allocation2 + $0x10] sm:$0xff] %vm2118, %v2027
        %2122 = vst.msk [vmem:[#allocation2 + $0x18] sm:$0xff] %vm2118, %v2029
        %2123 = vst.msk [vmem:[#allocation2 + $0x20] sm:$0xff] %vm2118, %v2031
        %2124 = vst.msk [vmem:[#allocation2 + $0x28] sm:$0xff] %vm2118, %v2033
        %2125 = vst.msk [vmem:[#allocation2 + $0x30] sm:$0xff] %vm2118, %v2035
        %2126 = vst.msk [vmem:[#allocation2 + $0x38] sm:$0xff] %vm2118, %v2037
        %2127 = vst.msk [vmem:[#allocation2 + $0x40] sm:$0xff] %vm2118, %v2039
        %2128 = vst.msk [vmem:[#allocation2 + $0x48] sm:$0xff] %vm2118, %v2041
        %2129 = vst.msk [vmem:[#allocation2 + $0x50] sm:$0xff] %vm2118, %v2043
        %2130 = vst.msk [vmem:[#allocation2 + $0x58] sm:$0xff] %vm2118, %v2045
        %2131 = vst.msk [vmem:[#allocation2 + $0x60] sm:$0xff] %vm2118, %v2047
        %2132 = vst.msk [vmem:[#allocation2 + $0x68] sm:$0xff] %vm2118, %v2049
        %2133 = vst.msk [vmem:[#allocation2 + $0x70] sm:$0xff] %vm2118, %v2051
        %2134 = vst.msk [vmem:[#allocation2 + $0x78] sm:$0xff] %vm2118, %v2053
        %2135 = vst.msk [vmem:[#allocation2 + $0x80] sm:$0xff] %vm2118, %v2055
        %2136 = vst.msk [vmem:[#allocation2 + $0x88] sm:$0xff] %vm2118, %v2057
        %2137 = vst.msk [vmem:[#allocation2 + $0x90] sm:$0xff] %vm2118, %v2059
        %2138 = vst.msk [vmem:[#allocation2 + $0x98] sm:$0xff] %vm2118, %v2061
        %2139 = vst.msk [vmem:[#allocation2 + $0xa0] sm:$0xff] %vm2118, %v2063
        %2140 = vst.msk [vmem:[#allocation2 + $0xa8] sm:$0xff] %vm2118, %v2065
        %2141 = vst.msk [vmem:[#allocation2 + $0xb0] sm:$0xff] %vm2118, %v2067
        %2142 = vst.msk [vmem:[#allocation2 + $0xb8] sm:$0xff] %vm2118, %v2069
        %2143 = vst.msk [vmem:[#allocation2 + $0xc0] sm:$0xff] %vm2118, %v2071
        %2144 = vst.msk [vmem:[#allocation2 + $0xc8] sm:$0xff] %vm2118, %v2073
        %2145 = vst.msk [vmem:[#allocation2 + $0xd0] sm:$0xff] %vm2118, %v2075
        %2146 = vst.msk [vmem:[#allocation2 + $0xd8] sm:$0xff] %vm2118, %v2077
        %2147 = vst.msk [vmem:[#allocation2 + $0xe0] sm:$0xff] %vm2118, %v2079
        %2148 = vst.msk [vmem:[#allocation2 + $0xe8] sm:$0xff] %vm2118, %v2081
        %2149 = vst.msk [vmem:[#allocation2 + $0xf0] sm:$0xff] %vm2118, %v2083
        %vm2150 = vcmask 391488
        %2151 = vst.msk [vmem:[#allocation2 + $0xf8] sm:$0x7f] %vm2150, %v2085
        %v2153 = vsel %vm1620, %v1006, 0.0
        %v2154 = vsel %vm1621, %v1008, 0.0
        %v2155 = vsel %vm941, %v1010, 0.0
        %v2156 = vsel %vm942, %v1012, 0.0
        %v2157 = vsel %vm943, %v1014, 0.0
        %v2158 = vsel %vm944, %v1016, 0.0
        %v2159 = vsel %vm945, %v1018, 0.0
        %v2160 = vsel %vm946, %v1020, 0.0
        %v2161 = vsel %vm947, %v1022, 0.0
        %v2162 = vsel %vm948, %v1024, 0.0
        %v2163 = vsel %vm949, %v1026, 0.0
        %v2164 = vsel %vm950, %v1028, 0.0
        %v2165 = vsel %vm951, %v1030, 0.0
        %v2166 = vsel %vm952, %v1032, 0.0
        %v2167 = vsel %vm953, %v1034, 0.0
        %v2168 = vsel %vm954, %v1036, 0.0
        %v2169 = vsel %vm955, %v1038, 0.0
        %v2170 = vsel %vm956, %v1040, 0.0
        %v2171 = vsel %vm957, %v1042, 0.0
        %v2172 = vsel %vm958, %v1044, 0.0
        %v2173 = vsel %vm959, %v1046, 0.0
        %v2174 = vsel %vm960, %v1048, 0.0
        %v2175 = vsel %vm961, %v1050, 0.0
        %v2176 = vsel %vm962, %v1052, 0.0
        %v2177 = vsel %vm963, %v1054, 0.0
        %v2178 = vsel %vm964, %v1056, 0.0
        %v2179 = vsel %vm965, %v1058, 0.0
        %v2180 = vsel %vm966, %v1060, 0.0
        %v2181 = vsel %vm967, %v1624, 0.0
        %v2182 = vsel %vm968, %v1626, 0.0
        %v2183 = vsel %vm969, %v1625, 0.0
        %2215 = vrot.lane.b32.xlu0 %v2153, 48
        %v2216 = vpop.permute.xlu0 %2215
        %2217 = vrot.lane.b32.xlu0 %v2154, 48
        %v2218 = vpop.permute.xlu0 %2217
        %2219 = vrot.lane.b32.xlu0 %v2155, 48
        %v2220 = vpop.permute.xlu0 %2219
        %2221 = vrot.lane.b32.xlu0 %v2156, 48
        %v2222 = vpop.permute.xlu0 %2221
        %2223 = vrot.lane.b32.xlu0 %v2157, 48
        %v2224 = vpop.permute.xlu0 %2223
        %2225 = vrot.lane.b32.xlu0 %v2158, 48
        %v2226 = vpop.permute.xlu0 %2225
        %2227 = vrot.lane.b32.xlu0 %v2159, 48
        %v2228 = vpop.permute.xlu0 %2227
        %2229 = vrot.lane.b32.xlu0 %v2160, 48
        %v2230 = vpop.permute.xlu0 %2229
        %2231 = vrot.lane.b32.xlu0 %v2161, 48
        %v2232 = vpop.permute.xlu0 %2231
        %2233 = vrot.lane.b32.xlu0 %v2162, 48
        %v2234 = vpop.permute.xlu0 %2233
        %2235 = vrot.lane.b32.xlu0 %v2163, 48
        %v2236 = vpop.permute.xlu0 %2235
        %2237 = vrot.lane.b32.xlu0 %v2164, 48
        %v2238 = vpop.permute.xlu0 %2237
        %2239 = vrot.lane.b32.xlu0 %v2165, 48
        %v2240 = vpop.permute.xlu0 %2239
        %2241 = vrot.lane.b32.xlu0 %v2166, 48
        %v2242 = vpop.permute.xlu0 %2241
        %2243 = vrot.lane.b32.xlu0 %v2167, 48
        %v2244 = vpop.permute.xlu0 %2243
        %2245 = vrot.lane.b32.xlu0 %v2168, 48
        %v2246 = vpop.permute.xlu0 %2245
        %2247 = vrot.lane.b32.xlu0 %v2169, 48
        %v2248 = vpop.permute.xlu0 %2247
        %2249 = vrot.lane.b32.xlu0 %v2170, 48
        %v2250 = vpop.permute.xlu0 %2249
        %2251 = vrot.lane.b32.xlu0 %v2171, 48
        %v2252 = vpop.permute.xlu0 %2251
        %2253 = vrot.lane.b32.xlu0 %v2172, 48
        %v2254 = vpop.permute.xlu0 %2253
        %2255 = vrot.lane.b32.xlu0 %v2173, 48
        %v2256 = vpop.permute.xlu0 %2255
        %2257 = vrot.lane.b32.xlu0 %v2174, 48
        %v2258 = vpop.permute.xlu0 %2257
        %2259 = vrot.lane.b32.xlu0 %v2175, 48
        %v2260 = vpop.permute.xlu0 %2259
        %2261 = vrot.lane.b32.xlu0 %v2176, 48
        %v2262 = vpop.permute.xlu0 %2261
        %2263 = vrot.lane.b32.xlu0 %v2177, 48
        %v2264 = vpop.permute.xlu0 %2263
        %2265 = vrot.lane.b32.xlu0 %v2178, 48
        %v2266 = vpop.permute.xlu0 %2265
        %2267 = vrot.lane.b32.xlu0 %v2179, 48
        %v2268 = vpop.permute.xlu0 %2267
        %2269 = vrot.lane.b32.xlu0 %v2180, 48
        %v2270 = vpop.permute.xlu0 %2269
        %2271 = vrot.lane.b32.xlu0 %v2181, 48
        %v2272 = vpop.permute.xlu0 %2271
        %2273 = vrot.lane.b32.xlu0 %v2182, 48
        %v2274 = vpop.permute.xlu0 %2273
        %2275 = vrot.lane.b32.xlu0 %v2183, 48
        %v2276 = vpop.permute.xlu0 %2275
        %vm2308 = vcmask 458112
        %2309 = vst.msk [vmem:[#allocation2] sm:$0xff] %vm2308, %v2216
        %2310 = vst.msk [vmem:[#allocation2 + $0x8] sm:$0xff] %vm2308, %v2218
        %2311 = vst.msk [vmem:[#allocation2 + $0x10] sm:$0xff] %vm2308, %v2220
        %2312 = vst.msk [vmem:[#allocation2 + $0x18] sm:$0xff] %vm2308, %v2222
        %2313 = vst.msk [vmem:[#allocation2 + $0x20] sm:$0xff] %vm2308, %v2224
        %2314 = vst.msk [vmem:[#allocation2 + $0x28] sm:$0xff] %vm2308, %v2226
        %2315 = vst.msk [vmem:[#allocation2 + $0x30] sm:$0xff] %vm2308, %v2228
        %2316 = vst.msk [vmem:[#allocation2 + $0x38] sm:$0xff] %vm2308, %v2230
        %2317 = vst.msk [vmem:[#allocation2 + $0x40] sm:$0xff] %vm2308, %v2232
        %2318 = vst.msk [vmem:[#allocation2 + $0x48] sm:$0xff] %vm2308, %v2234
        %2319 = vst.msk [vmem:[#allocation2 + $0x50] sm:$0xff] %vm2308, %v2236
        %2320 = vst.msk [vmem:[#allocation2 + $0x58] sm:$0xff] %vm2308, %v2238
        %2321 = vst.msk [vmem:[#allocation2 + $0x60] sm:$0xff] %vm2308, %v2240
        %2322 = vst.msk [vmem:[#allocation2 + $0x68] sm:$0xff] %vm2308, %v2242
        %2323 = vst.msk [vmem:[#allocation2 + $0x70] sm:$0xff] %vm2308, %v2244
        %2324 = vst.msk [vmem:[#allocation2 + $0x78] sm:$0xff] %vm2308, %v2246
        %2325 = vst.msk [vmem:[#allocation2 + $0x80] sm:$0xff] %vm2308, %v2248
        %2326 = vst.msk [vmem:[#allocation2 + $0x88] sm:$0xff] %vm2308, %v2250
        %2327 = vst.msk [vmem:[#allocation2 + $0x90] sm:$0xff] %vm2308, %v2252
        %2328 = vst.msk [vmem:[#allocation2 + $0x98] sm:$0xff] %vm2308, %v2254
        %2329 = vst.msk [vmem:[#allocation2 + $0xa0] sm:$0xff] %vm2308, %v2256
        %2330 = vst.msk [vmem:[#allocation2 + $0xa8] sm:$0xff] %vm2308, %v2258
        %2331 = vst.msk [vmem:[#allocation2 + $0xb0] sm:$0xff] %vm2308, %v2260
        %2332 = vst.msk [vmem:[#allocation2 + $0xb8] sm:$0xff] %vm2308, %v2262
        %2333 = vst.msk [vmem:[#allocation2 + $0xc0] sm:$0xff] %vm2308, %v2264
        %2334 = vst.msk [vmem:[#allocation2 + $0xc8] sm:$0xff] %vm2308, %v2266
        %2335 = vst.msk [vmem:[#allocation2 + $0xd0] sm:$0xff] %vm2308, %v2268
        %2336 = vst.msk [vmem:[#allocation2 + $0xd8] sm:$0xff] %vm2308, %v2270
        %2337 = vst.msk [vmem:[#allocation2 + $0xe0] sm:$0xff] %vm2308, %v2272
        %2338 = vst.msk [vmem:[#allocation2 + $0xe8] sm:$0xff] %vm2308, %v2274
        %vm2339 = vcmask 450944
        %2340 = vst.msk [vmem:[#allocation2 + $0xf0] sm:$0x1] %vm2339, %v2276
        %2341 = vrot.lane.b32.xlu0 %v367, 56
        %v2342 = vpop.permute.xlu0 %2341
        %2343 = vrot.lane.b32.xlu0 %v368, 56
        %v2344 = vpop.permute.xlu0 %2343
        %2345 = vrot.lane.b32.xlu0 %v369, 56
        %v2346 = vpop.permute.xlu0 %2345
        %2347 = vrot.lane.b32.xlu0 %v370, 56
        %v2348 = vpop.permute.xlu0 %2347
        %2349 = vrot.lane.b32.xlu0 %v371, 56
        %v2350 = vpop.permute.xlu0 %2349
        %2351 = vrot.lane.b32.xlu0 %v372, 56
        %v2352 = vpop.permute.xlu0 %2351
        %2353 = vrot.lane.b32.xlu0 %v373, 56
        %v2354 = vpop.permute.xlu0 %2353
        %2355 = vrot.lane.b32.xlu0 %v374, 56
        %v2356 = vpop.permute.xlu0 %2355
        %2357 = vrot.lane.b32.xlu0 %v375, 56
        %v2358 = vpop.permute.xlu0 %2357
        %2359 = vrot.lane.b32.xlu0 %v376, 56
        %v2360 = vpop.permute.xlu0 %2359
        %2361 = vrot.lane.b32.xlu0 %v377, 56
        %v2362 = vpop.permute.xlu0 %2361
        %2363 = vrot.lane.b32.xlu0 %v378, 56
        %v2364 = vpop.permute.xlu0 %2363
        %2365 = vrot.lane.b32.xlu0 %v379, 56
        %v2366 = vpop.permute.xlu0 %2365
        %2367 = vrot.lane.b32.xlu0 %v380, 56
        %v2368 = vpop.permute.xlu0 %2367
        %2369 = vrot.lane.b32.xlu0 %v381, 56
        %v2370 = vpop.permute.xlu0 %2369
        %2371 = vrot.lane.b32.xlu0 %v382, 56
        %v2372 = vpop.permute.xlu0 %2371
        %2373 = vrot.lane.b32.xlu0 %v383, 56
        %v2374 = vpop.permute.xlu0 %2373
        %2375 = vrot.lane.b32.xlu0 %v384, 56
        %v2376 = vpop.permute.xlu0 %2375
        %2377 = vrot.lane.b32.xlu0 %v385, 56
        %v2378 = vpop.permute.xlu0 %2377
        %2379 = vrot.lane.b32.xlu0 %v386, 56
        %v2380 = vpop.permute.xlu0 %2379
        %2381 = vrot.lane.b32.xlu0 %v387, 56
        %v2382 = vpop.permute.xlu0 %2381
        %2383 = vrot.lane.b32.xlu0 %v388, 56
        %v2384 = vpop.permute.xlu0 %2383
        %2385 = vrot.lane.b32.xlu0 %v389, 56
        %v2386 = vpop.permute.xlu0 %2385
        %2387 = vrot.lane.b32.xlu0 %v390, 56
        %v2388 = vpop.permute.xlu0 %2387
        %2389 = vrot.lane.b32.xlu0 %v391, 56
        %v2390 = vpop.permute.xlu0 %2389
        %2391 = vrot.lane.b32.xlu0 %v392, 56
        %v2392 = vpop.permute.xlu0 %2391
        %2393 = vrot.lane.b32.xlu0 %v393, 56
        %v2394 = vpop.permute.xlu0 %2393
        %2395 = vrot.lane.b32.xlu0 %v394, 56
        %v2396 = vpop.permute.xlu0 %2395
        %2397 = vrot.lane.b32.xlu0 %v395, 56
        %v2398 = vpop.permute.xlu0 %2397
        %2399 = vrot.lane.b32.xlu0 %v396, 56
        %v2400 = vpop.permute.xlu0 %2399
        %vm2431 = vcmask 523712
        %2432 = vst.msk [vmem:[#allocation2] sm:$0xff] %vm2431, %v2342
        %2433 = vst.msk [vmem:[#allocation2 + $0x8] sm:$0xff] %vm2431, %v2344
        %2434 = vst.msk [vmem:[#allocation2 + $0x10] sm:$0xff] %vm2431, %v2346
        %2435 = vst.msk [vmem:[#allocation2 + $0x18] sm:$0xff] %vm2431, %v2348
        %2436 = vst.msk [vmem:[#allocation2 + $0x20] sm:$0xff] %vm2431, %v2350
        %2437 = vst.msk [vmem:[#allocation2 + $0x28] sm:$0xff] %vm2431, %v2352
        %2438 = vst.msk [vmem:[#allocation2 + $0x30] sm:$0xff] %vm2431, %v2354
        %2439 = vst.msk [vmem:[#allocation2 + $0x38] sm:$0xff] %vm2431, %v2356
        %2440 = vst.msk [vmem:[#allocation2 + $0x40] sm:$0xff] %vm2431, %v2358
        %2441 = vst.msk [vmem:[#allocation2 + $0x48] sm:$0xff] %vm2431, %v2360
        %2442 = vst.msk [vmem:[#allocation2 + $0x50] sm:$0xff] %vm2431, %v2362
        %2443 = vst.msk [vmem:[#allocation2 + $0x58] sm:$0xff] %vm2431, %v2364
        %2444 = vst.msk [vmem:[#allocation2 + $0x60] sm:$0xff] %vm2431, %v2366
        %2445 = vst.msk [vmem:[#allocation2 + $0x68] sm:$0xff] %vm2431, %v2368
        %2446 = vst.msk [vmem:[#allocation2 + $0x70] sm:$0xff] %vm2431, %v2370
        %2447 = vst.msk [vmem:[#allocation2 + $0x78] sm:$0xff] %vm2431, %v2372
        %2448 = vst.msk [vmem:[#allocation2 + $0x80] sm:$0xff] %vm2431, %v2374
        %2449 = vst.msk [vmem:[#allocation2 + $0x88] sm:$0xff] %vm2431, %v2376
        %2450 = vst.msk [vmem:[#allocation2 + $0x90] sm:$0xff] %vm2431, %v2378
        %2451 = vst.msk [vmem:[#allocation2 + $0x98] sm:$0xff] %vm2431, %v2380
        %2452 = vst.msk [vmem:[#allocation2 + $0xa0] sm:$0xff] %vm2431, %v2382
        %2453 = vst.msk [vmem:[#allocation2 + $0xa8] sm:$0xff] %vm2431, %v2384
        %2454 = vst.msk [vmem:[#allocation2 + $0xb0] sm:$0xff] %vm2431, %v2386
        %2455 = vst.msk [vmem:[#allocation2 + $0xb8] sm:$0xff] %vm2431, %v2388
        %2456 = vst.msk [vmem:[#allocation2 + $0xc0] sm:$0xff] %vm2431, %v2390
        %2457 = vst.msk [vmem:[#allocation2 + $0xc8] sm:$0xff] %vm2431, %v2392
        %2458 = vst.msk [vmem:[#allocation2 + $0xd0] sm:$0xff] %vm2431, %v2394
        %2459 = vst.msk [vmem:[#allocation2 + $0xd8] sm:$0xff] %vm2431, %v2396
        %2460 = vst.msk [vmem:[#allocation2 + $0xe0] sm:$0xff] %vm2431, %v2398
        %2461 = vst.msk [vmem:[#allocation2 + $0xe8] sm:$0xff] %vm2431, %v2400
        %v2462 = vsel %vm1953, %v1344, 0.0
        %v2463 = vsel %vm1305, %v1346, 0.0
        %v2464 = vsel %vm1306, %v1348, 0.0
        %v2465 = vsel %vm1307, %v1350, 0.0
        %v2466 = vsel %vm1308, %v1352, 0.0
        %v2467 = vsel %vm1309, %v1354, 0.0
        %v2468 = vsel %vm1310, %v1356, 0.0
        %v2469 = vsel %vm1311, %v1358, 0.0
        %v2470 = vsel %vm1312, %v1360, 0.0
        %v2471 = vsel %vm1313, %v1362, 0.0
        %v2472 = vsel %vm1314, %v1364, 0.0
        %v2473 = vsel %vm1315, %v1366, 0.0
        %v2474 = vsel %vm1316, %v1368, 0.0
        %v2475 = vsel %vm1317, %v1370, 0.0
        %v2476 = vsel %vm1318, %v1372, 0.0
        %v2477 = vsel %vm1319, %v1374, 0.0
        %v2478 = vsel %vm1320, %v1376, 0.0
        %v2479 = vsel %vm1321, %v1378, 0.0
        %v2480 = vsel %vm1322, %v1380, 0.0
        %v2481 = vsel %vm1323, %v1382, 0.0
        %v2482 = vsel %vm1324, %v1384, 0.0
        %v2483 = vsel %vm1325, %v1386, 0.0
        %v2484 = vsel %vm1326, %v1388, 0.0
        %v2485 = vsel %vm1327, %v1390, 0.0
        %v2486 = vsel %vm1328, %v1392, 0.0
        %v2487 = vsel %vm1329, %v1394, 0.0
        %v2488 = vsel %vm1330, %v1396, 0.0
        %v2489 = vsel %vm1331, %v1398, 0.0
        %v2490 = vsel %vm1332, %v1955, 0.0
        %v2491 = vsel %vm1333, %v1954, 0.0
        %2522 = vrot.lane.b32.xlu0 %v2462, 64
        %v2523 = vpop.permute.xlu0 %2522
        %2524 = vrot.lane.b32.xlu0 %v2463, 64
        %v2525 = vpop.permute.xlu0 %2524
        %2526 = vrot.lane.b32.xlu0 %v2464, 64
        %v2527 = vpop.permute.xlu0 %2526
        %2528 = vrot.lane.b32.xlu0 %v2465, 64
        %v2529 = vpop.permute.xlu0 %2528
        %2530 = vrot.lane.b32.xlu0 %v2466, 64
        %v2531 = vpop.permute.xlu0 %2530
        %2532 = vrot.lane.b32.xlu0 %v2467, 64
        %v2533 = vpop.permute.xlu0 %2532
        %2534 = vrot.lane.b32.xlu0 %v2468, 64
        %v2535 = vpop.permute.xlu0 %2534
        %2536 = vrot.lane.b32.xlu0 %v2469, 64
        %v2537 = vpop.permute.xlu0 %2536
        %2538 = vrot.lane.b32.xlu0 %v2470, 64
        %v2539 = vpop.permute.xlu0 %2538
        %2540 = vrot.lane.b32.xlu0 %v2471, 64
        %v2541 = vpop.permute.xlu0 %2540
        %2542 = vrot.lane.b32.xlu0 %v2472, 64
        %v2543 = vpop.permute.xlu0 %2542
        %2544 = vrot.lane.b32.xlu0 %v2473, 64
        %v2545 = vpop.permute.xlu0 %2544
        %2546 = vrot.lane.b32.xlu0 %v2474, 64
        %v2547 = vpop.permute.xlu0 %2546
        %2548 = vrot.lane.b32.xlu0 %v2475, 64
        %v2549 = vpop.permute.xlu0 %2548
        %2550 = vrot.lane.b32.xlu0 %v2476, 64
        %v2551 = vpop.permute.xlu0 %2550
        %2552 = vrot.lane.b32.xlu0 %v2477, 64
        %v2553 = vpop.permute.xlu0 %2552
        %2554 = vrot.lane.b32.xlu0 %v2478, 64
        %v2555 = vpop.permute.xlu0 %2554
        %2556 = vrot.lane.b32.xlu0 %v2479, 64
        %v2557 = vpop.permute.xlu0 %2556
        %2558 = vrot.lane.b32.xlu0 %v2480, 64
        %v2559 = vpop.permute.xlu0 %2558
        %2560 = vrot.lane.b32.xlu0 %v2481, 64
        %v2561 = vpop.permute.xlu0 %2560
        %2562 = vrot.lane.b32.xlu0 %v2482, 64
        %v2563 = vpop.permute.xlu0 %2562
        %2564 = vrot.lane.b32.xlu0 %v2483, 64
        %v2565 = vpop.permute.xlu0 %2564
        %2566 = vrot.lane.b32.xlu0 %v2484, 64
        %v2567 = vpop.permute.xlu0 %2566
        %2568 = vrot.lane.b32.xlu0 %v2485, 64
        %v2569 = vpop.permute.xlu0 %2568
        %2570 = vrot.lane.b32.xlu0 %v2486, 64
        %v2571 = vpop.permute.xlu0 %2570
        %2572 = vrot.lane.b32.xlu0 %v2487, 64
        %v2573 = vpop.permute.xlu0 %2572
        %2574 = vrot.lane.b32.xlu0 %v2488, 64
        %v2575 = vpop.permute.xlu0 %2574
        %2576 = vrot.lane.b32.xlu0 %v2489, 64
        %v2577 = vpop.permute.xlu0 %2576
        %2578 = vrot.lane.b32.xlu0 %v2490, 64
        %v2579 = vpop.permute.xlu0 %2578
        %2580 = vrot.lane.b32.xlu0 %v2491, 64
        %v2581 = vpop.permute.xlu0 %2580
        %vm2612 = vcmask 589312
        %2613 = vst.msk [vmem:[#allocation2] sm:$0xff] %vm2612, %v2523
        %2614 = vst.msk [vmem:[#allocation2 + $0x8] sm:$0xff] %vm2612, %v2525
        %2615 = vst.msk [vmem:[#allocation2 + $0x10] sm:$0xff] %vm2612, %v2527
        %2616 = vst.msk [vmem:[#allocation2 + $0x18] sm:$0xff] %vm2612, %v2529
        %2617 = vst.msk [vmem:[#allocation2 + $0x20] sm:$0xff] %vm2612, %v2531
        %2618 = vst.msk [vmem:[#allocation2 + $0x28] sm:$0xff] %vm2612, %v2533
        %2619 = vst.msk [vmem:[#allocation2 + $0x30] sm:$0xff] %vm2612, %v2535
        %2620 = vst.msk [vmem:[#allocation2 + $0x38] sm:$0xff] %vm2612, %v2537
        %2621 = vst.msk [vmem:[#allocation2 + $0x40] sm:$0xff] %vm2612, %v2539
        %2622 = vst.msk [vmem:[#allocation2 + $0x48] sm:$0xff] %vm2612, %v2541
        %2623 = vst.msk [vmem:[#allocation2 + $0x50] sm:$0xff] %vm2612, %v2543
        %2624 = vst.msk [vmem:[#allocation2 + $0x58] sm:$0xff] %vm2612, %v2545
        %2625 = vst.msk [vmem:[#allocation2 + $0x60] sm:$0xff] %vm2612, %v2547
        %2626 = vst.msk [vmem:[#allocation2 + $0x68] sm:$0xff] %vm2612, %v2549
        %2627 = vst.msk [vmem:[#allocation2 + $0x70] sm:$0xff] %vm2612, %v2551
        %2628 = vst.msk [vmem:[#allocation2 + $0x78] sm:$0xff] %vm2612, %v2553
        %2629 = vst.msk [vmem:[#allocation2 + $0x80] sm:$0xff] %vm2612, %v2555
        %2630 = vst.msk [vmem:[#allocation2 + $0x88] sm:$0xff] %vm2612, %v2557
        %2631 = vst.msk [vmem:[#allocation2 + $0x90] sm:$0xff] %vm2612, %v2559
        %2632 = vst.msk [vmem:[#allocation2 + $0x98] sm:$0xff] %vm2612, %v2561
        %2633 = vst.msk [vmem:[#allocation2 + $0xa0] sm:$0xff] %vm2612, %v2563
        %2634 = vst.msk [vmem:[#allocation2 + $0xa8] sm:$0xff] %vm2612, %v2565
        %2635 = vst.msk [vmem:[#allocation2 + $0xb0] sm:$0xff] %vm2612, %v2567
        %2636 = vst.msk [vmem:[#allocation2 + $0xb8] sm:$0xff] %vm2612, %v2569
        %2637 = vst.msk [vmem:[#allocation2 + $0xc0] sm:$0xff] %vm2612, %v2571
        %2638 = vst.msk [vmem:[#allocation2 + $0xc8] sm:$0xff] %vm2612, %v2573
        %2639 = vst.msk [vmem:[#allocation2 + $0xd0] sm:$0xff] %vm2612, %v2575
        %2640 = vst.msk [vmem:[#allocation2 + $0xd8] sm:$0xff] %vm2612, %v2577
        %2641 = vst.msk [vmem:[#allocation2 + $0xe0] sm:$0xff] %vm2612, %v2579
        %vm2642 = vcmask 588288
        %2643 = vst.msk [vmem:[#allocation2 + $0xe8] sm:$0x7f] %vm2642, %v2581
        %v2644 = vld [vmem:[#allocation2] sm:$0xff]
        %v2645 = vld [vmem:[#allocation2 + $0x8] sm:$0xff]
        %v2646 = vld [vmem:[#allocation2 + $0x10] sm:$0xff]
        %v2647 = vld [vmem:[#allocation2 + $0x18] sm:$0xff]
        %v2648 = vld [vmem:[#allocation2 + $0x20] sm:$0xff]
        %v2649 = vld [vmem:[#allocation2 + $0x28] sm:$0xff]
        %v2650 = vld [vmem:[#allocation2 + $0x30] sm:$0xff]
        %v2651 = vld [vmem:[#allocation2 + $0x38] sm:$0xff]
        %v2652 = vld [vmem:[#allocation2 + $0x40] sm:$0xff]
        %v2653 = vld [vmem:[#allocation2 + $0x48] sm:$0xff]
        %v2654 = vld [vmem:[#allocation2 + $0x50] sm:$0xff]
        %v2655 = vld [vmem:[#allocation2 + $0x58] sm:$0xff]
        %v2656 = vld [vmem:[#allocation2 + $0x60] sm:$0xff]
        %v2657 = vld [vmem:[#allocation2 + $0x68] sm:$0xff]
        %v2658 = vld [vmem:[#allocation2 + $0x70] sm:$0xff]
        %v2659 = vld [vmem:[#allocation2 + $0x78] sm:$0xff]
        %v2660 = vld [vmem:[#allocation2 + $0x80] sm:$0xff]
        %v2661 = vld [vmem:[#allocation2 + $0x88] sm:$0xff]
        %v2662 = vld [vmem:[#allocation2 + $0x90] sm:$0xff]
        %v2663 = vld [vmem:[#allocation2 + $0x98] sm:$0xff]
        %v2664 = vld [vmem:[#allocation2 + $0xa0] sm:$0xff]
        %v2665 = vld [vmem:[#allocation2 + $0xa8] sm:$0xff]
        %v2666 = vld [vmem:[#allocation2 + $0xb0] sm:$0xff]
        %v2667 = vld [vmem:[#allocation2 + $0xb8] sm:$0xff]
        %v2668 = vld [vmem:[#allocation2 + $0xc0] sm:$0xff]
        %v2669 = vld [vmem:[#allocation2 + $0xc8] sm:$0xff]
        %v2670 = vld [vmem:[#allocation2 + $0xd0] sm:$0xff]
        %v2671 = vld [vmem:[#allocation2 + $0xd8] sm:$0xff]
        %v2672 = vld [vmem:[#allocation2 + $0xe0] sm:$0xff]
        %v2673 = vld [vmem:[#allocation2 + $0xe8] sm:$0xff]
        %v2674 = vld [vmem:[#allocation2 + $0xf0] sm:$0xff]
        %v2675 = vld [vmem:[#allocation2 + $0xf8] sm:$0xff]
        %v2676 = vld [vmem:[%s1] sm:$0xff]
        %v2677 = vld [vmem:[%s1 + $0x8] sm:$0xff]
        %v2678 = vld [vmem:[%s1 + $0x10] sm:$0xff]
        %v2679 = vld [vmem:[%s1 + $0x18] sm:$0xff]
        %v2680 = vld [vmem:[%s1 + $0x20] sm:$0xff]
        %v2681 = vld [vmem:[%s1 + $0x28] sm:$0xff]
        %v2682 = vld [vmem:[%s1 + $0x30] sm:$0xff]
        %v2683 = vld [vmem:[%s1 + $0x38] sm:$0xff]
        %v2684 = vld [vmem:[%s1 + $0x40] sm:$0xff]
        %v2685 = vld [vmem:[%s2] sm:$0x1]
        %v2687 = vperm.slane %v2685, 0
        %v2690 = vsel %vm878, %v2644, 0
        %v2693 = vsel %vm878, %v2645, 0
        %v2696 = vsel %vm878, %v2646, 0
        %v2699 = vsel %vm878, %v2647, 0
        %v2702 = vsel %vm878, %v2648, 0
        %v2705 = vsel %vm878, %v2649, 0
        %v2708 = vsel %vm878, %v2650, 0
        %v2711 = vsel %vm878, %v2651, 0
        %v2714 = vsel %vm878, %v2652, 0
        %v2717 = vsel %vm878, %v2653, 0
        %v2720 = vsel %vm878, %v2654, 0
        %v2723 = vsel %vm878, %v2655, 0
        %v2726 = vsel %vm878, %v2656, 0
        %v2729 = vsel %vm878, %v2657, 0
        %v2732 = vsel %vm878, %v2658, 0
        %v2735 = vsel %vm878, %v2659, 0
        %v2738 = vsel %vm878, %v2660, 0
        %v2741 = vsel %vm878, %v2661, 0
        %v2744 = vsel %vm878, %v2662, 0
        %v2747 = vsel %vm878, %v2663, 0
        %v2750 = vsel %vm878, %v2664, 0
        %v2753 = vsel %vm878, %v2665, 0
        %v2756 = vsel %vm878, %v2666, 0
        %v2759 = vsel %vm878, %v2667, 0
        %v2762 = vsel %vm878, %v2668, 0
        %v2765 = vsel %vm878, %v2669, 0
        %v2768 = vsel %vm878, %v2670, 0
        %v2771 = vsel %vm878, %v2671, 0
        %v2774 = vsel %vm878, %v2672, 0
        %v2777 = vsel %vm878, %v2673, 0
        %v2780 = vsel %vm878, %v2674, 0
        %v2783 = vsel %vm878, %v2675, 0
        %2785 = vmatpush.msra.mxu0 0.0
        %2786 = vmatpush.msra.mxu0 0.0
        %2787 = vmatpush.msra.mxu0 0.0
        %2788 = vmatpush.msra.mxu0 0.0
        %2789 = vmatpush.msra.mxu0 0.0
        %2790 = vmatpush.msra.mxu0 0.0
        %2791 = vmatpush.msra.mxu0 0.0
        %2792 = vmatpush.msra.mxu0 %v2684
        %2793 = vmatpush.msra.mxu0 %v2683
        %2794 = vmatpush.msra.mxu0 %v2682
        %2795 = vmatpush.msra.mxu0 %v2681
        %2796 = vmatpush.msra.mxu0 %v2680
        %2797 = vmatpush.msra.mxu0 %v2679
        %2798 = vmatpush.msra.mxu0 %v2678
        %2799 = vmatpush.msra.mxu0 %v2677
        %2800 = vmatpush.msra.mxu0 %v2676
        %2801 = vmatmul.f32.gmra.mxu0 %v2690
        %v2802 = vpop.f32.mrf.mxu0
        %v2803 = vadd.f32 %v2687, %v2802
        %2804 = vmatmul.f32.gmra.mxu0 %v2693
        %v2805 = vpop.f32.mrf.mxu0
        %v2806 = vadd.f32 %v2687, %v2805
        %2807 = vmatmul.f32.gmra.mxu0 %v2696
        %v2808 = vpop.f32.mrf.mxu0
        %v2809 = vadd.f32 %v2687, %v2808
        %2810 = vmatmul.f32.gmra.mxu0 %v2699
        %v2811 = vpop.f32.mrf.mxu0
        %v2812 = vadd.f32 %v2687, %v2811
        %2813 = vmatmul.f32.gmra.mxu0 %v2702
        %v2814 = vpop.f32.mrf.mxu0
        %v2815 = vadd.f32 %v2687, %v2814
        %2816 = vmatmul.f32.gmra.mxu0 %v2705
        %v2817 = vpop.f32.mrf.mxu0
        %v2818 = vadd.f32 %v2687, %v2817
        %2819 = vmatmul.f32.gmra.mxu0 %v2708
        %v2820 = vpop.f32.mrf.mxu0
        %v2821 = vadd.f32 %v2687, %v2820
        %2822 = vmatmul.f32.gmra.mxu0 %v2711
        %v2823 = vpop.f32.mrf.mxu0
        %v2824 = vadd.f32 %v2687, %v2823
        %2825 = vmatmul.f32.gmra.mxu0 %v2714
        %v2826 = vpop.f32.mrf.mxu0
        %v2827 = vadd.f32 %v2687, %v2826
        %2828 = vmatmul.f32.gmra.mxu0 %v2717
        %v2829 = vpop.f32.mrf.mxu0
        %v2830 = vadd.f32 %v2687, %v2829
        %2831 = vmatmul.f32.gmra.mxu0 %v2720
        %v2832 = vpop.f32.mrf.mxu0
        %v2833 = vadd.f32 %v2687, %v2832
        %2834 = vmatmul.f32.gmra.mxu0 %v2723
        %v2835 = vpop.f32.mrf.mxu0
        %v2836 = vadd.f32 %v2687, %v2835
        %2837 = vmatmul.f32.gmra.mxu0 %v2726
        %v2838 = vpop.f32.mrf.mxu0
        %v2839 = vadd.f32 %v2687, %v2838
        %2840 = vmatmul.f32.gmra.mxu0 %v2729
        %v2841 = vpop.f32.mrf.mxu0
        %v2842 = vadd.f32 %v2687, %v2841
        %2843 = vmatmul.f32.gmra.mxu0 %v2732
        %v2844 = vpop.f32.mrf.mxu0
        %v2845 = vadd.f32 %v2687, %v2844
        %2846 = vmatmul.f32.gmra.mxu0 %v2735
        %v2847 = vpop.f32.mrf.mxu0
        %v2848 = vadd.f32 %v2687, %v2847
        %2849 = vmatmul.f32.gmra.mxu0 %v2738
        %v2850 = vpop.f32.mrf.mxu0
        %v2851 = vadd.f32 %v2687, %v2850
        %2852 = vmatmul.f32.gmra.mxu0 %v2741
        %v2853 = vpop.f32.mrf.mxu0
        %v2854 = vadd.f32 %v2687, %v2853
        %2855 = vmatmul.f32.gmra.mxu0 %v2744
        %v2856 = vpop.f32.mrf.mxu0
        %v2857 = vadd.f32 %v2687, %v2856
        %2858 = vmatmul.f32.gmra.mxu0 %v2747
        %v2859 = vpop.f32.mrf.mxu0
        %v2860 = vadd.f32 %v2687, %v2859
        %2861 = vmatmul.f32.gmra.mxu0 %v2750
        %v2862 = vpop.f32.mrf.mxu0
        %v2863 = vadd.f32 %v2687, %v2862
        %2864 = vmatmul.f32.gmra.mxu0 %v2753
        %v2865 = vpop.f32.mrf.mxu0
        %v2866 = vadd.f32 %v2687, %v2865
        %2867 = vmatmul.f32.gmra.mxu0 %v2756
        %v2868 = vpop.f32.mrf.mxu0
        %v2869 = vadd.f32 %v2687, %v2868
        %2870 = vmatmul.f32.gmra.mxu0 %v2759
        %v2871 = vpop.f32.mrf.mxu0
        %v2872 = vadd.f32 %v2687, %v2871
        %2873 = vmatmul.f32.gmra.mxu0 %v2762
        %v2874 = vpop.f32.mrf.mxu0
        %v2875 = vadd.f32 %v2687, %v2874
        %2876 = vmatmul.f32.gmra.mxu0 %v2765
        %v2877 = vpop.f32.mrf.mxu0
        %v2878 = vadd.f32 %v2687, %v2877
        %2879 = vmatmul.f32.gmra.mxu0 %v2768
        %v2880 = vpop.f32.mrf.mxu0
        %v2881 = vadd.f32 %v2687, %v2880
        %2882 = vmatmul.f32.gmra.mxu0 %v2771
        %v2883 = vpop.f32.mrf.mxu0
        %v2884 = vadd.f32 %v2687, %v2883
        %2885 = vmatmul.f32.gmra.mxu0 %v2774
        %v2886 = vpop.f32.mrf.mxu0
        %v2887 = vadd.f32 %v2687, %v2886
        %2888 = vmatmul.f32.gmra.mxu0 %v2777
        %v2889 = vpop.f32.mrf.mxu0
        %v2890 = vadd.f32 %v2687, %v2889
        %2891 = vmatmul.f32.gmra.mxu0 %v2780
        %v2892 = vpop.f32.mrf.mxu0
        %v2893 = vadd.f32 %v2687, %v2892
        %2894 = vmatmul.f32.gmra.mxu0 %v2783
        %v2895 = vpop.f32.mrf.mxu0
        %v2896 = vadd.f32 %v2687, %v2895
        %2897 = vdwg.mxu0
        %v2898 = vmax.f32 %v2803, 0.0
        %v2899 = vmax.f32 %v2806, 0.0
        %v2900 = vmax.f32 %v2809, 0.0
        %v2901 = vmax.f32 %v2812, 0.0
        %v2902 = vmax.f32 %v2815, 0.0
        %v2903 = vmax.f32 %v2818, 0.0
        %v2904 = vmax.f32 %v2821, 0.0
        %v2905 = vmax.f32 %v2824, 0.0
        %v2906 = vmax.f32 %v2827, 0.0
        %v2907 = vmax.f32 %v2830, 0.0
        %v2908 = vmax.f32 %v2833, 0.0
        %v2909 = vmax.f32 %v2836, 0.0
        %v2910 = vmax.f32 %v2839, 0.0
        %v2911 = vmax.f32 %v2842, 0.0
        %v2912 = vmax.f32 %v2845, 0.0
        %v2913 = vmax.f32 %v2848, 0.0
        %v2914 = vmax.f32 %v2851, 0.0
        %v2915 = vmax.f32 %v2854, 0.0
        %v2916 = vmax.f32 %v2857, 0.0
        %v2917 = vmax.f32 %v2860, 0.0
        %v2918 = vmax.f32 %v2863, 0.0
        %v2919 = vmax.f32 %v2866, 0.0
        %v2920 = vmax.f32 %v2869, 0.0
        %v2921 = vmax.f32 %v2872, 0.0
        %v2922 = vmax.f32 %v2875, 0.0
        %v2923 = vmax.f32 %v2878, 0.0
        %v2924 = vmax.f32 %v2881, 0.0
        %v2925 = vmax.f32 %v2884, 0.0
        %v2926 = vmax.f32 %v2887, 0.0
        %v2927 = vmax.f32 %v2890, 0.0
        %v2928 = vmax.f32 %v2893, 0.0
        %v2929 = vmax.f32 %v2896, 0.0
        %v2930 = vld [vmem:[%s7] sm:$0xff]
        %v2931 = vld [vmem:[%s7 + $0x8] sm:$0xff]
        %v2932 = vld [vmem:[%s7 + $0x10] sm:$0xff]
        %v2933 = vld [vmem:[%s7 + $0x18] sm:$0xff]
        %v2934 = vld [vmem:[%s7 + $0x20] sm:$0xff]
        %v2935 = vld [vmem:[%s7 + $0x28] sm:$0xff]
        %v2936 = vld [vmem:[%s7 + $0x30] sm:$0xff]
        %v2937 = vld [vmem:[%s7 + $0x38] sm:$0xff]
        %v2938 = vld [vmem:[%s7 + $0x40] sm:$0xff]
        %v2939 = vld [vmem:[%s7 + $0x48] sm:$0xff]
        %v2940 = vld [vmem:[%s7 + $0x50] sm:$0xff]
        %v2941 = vld [vmem:[%s7 + $0x58] sm:$0xff]
        %v2942 = vld [vmem:[%s7 + $0x60] sm:$0xff]
        %v2943 = vld [vmem:[%s7 + $0x68] sm:$0xff]
        %v2944 = vld [vmem:[%s7 + $0x70] sm:$0xff]
        %v2945 = vld [vmem:[%s7 + $0x78] sm:$0xff]
        %v2946 = vmax.f32 %v2898, %v2900
        %v2947 = vmax.f32 %v2899, %v2901
        %v2948 = vmax.f32 %v2900, %v2902
        %v2949 = vmax.f32 %v2901, %v2903
        %v2950 = vmax.f32 %v2902, %v2904
        %v2951 = vmax.f32 %v2903, %v2905
        %v2952 = vmax.f32 %v2904, %v2906
        %v2953 = vmax.f32 %v2905, %v2907
        %v2954 = vmax.f32 %v2906, %v2908
        %v2955 = vmax.f32 %v2907, %v2909
        %v2956 = vmax.f32 %v2908, %v2910
        %v2957 = vmax.f32 %v2909, %v2911
        %v2958 = vmax.f32 %v2910, %v2912
        %v2959 = vmax.f32 %v2911, %v2913
        %v2960 = vmax.f32 %v2912, %v2914
        %v2961 = vmax.f32 %v2913, %v2915
        %v2962 = vmax.f32 %v2914, %v2916
        %v2963 = vmax.f32 %v2915, %v2917
        %v2964 = vmax.f32 %v2916, %v2918
        %v2965 = vmax.f32 %v2917, %v2919
        %v2966 = vmax.f32 %v2918, %v2920
        %v2967 = vmax.f32 %v2919, %v2921
        %v2968 = vmax.f32 %v2920, %v2922
        %v2969 = vmax.f32 %v2921, %v2923
        %v2970 = vmax.f32 %v2922, %v2924
        %v2971 = vmax.f32 %v2923, %v2925
        %v2972 = vmax.f32 %v2924, %v2926
        %v2973 = vmax.f32 %v2925, %v2927
        %v2974 = vmax.f32 %v2926, %v2928
        %v2975 = vmax.f32 %v2927, %v2929
        %v3006 = vrot.slane %v2946, 1
        %v3007 = vrot.slane %v2947, 1
        %v3008 = vsel %vm1337, %v3006, %v3007
        %v3009 = vrot.slane %v2948, 1
        %v3010 = vsel %vm1337, %v3007, %v3009
        %v3011 = vrot.slane %v2949, 1
        %v3012 = vsel %vm1337, %v3009, %v3011
        %v3013 = vrot.slane %v2950, 1
        %v3014 = vsel %vm1337, %v3011, %v3013
        %v3015 = vrot.slane %v2951, 1
        %v3016 = vsel %vm1337, %v3013, %v3015
        %v3017 = vrot.slane %v2952, 1
        %v3018 = vsel %vm1337, %v3015, %v3017
        %v3019 = vrot.slane %v2953, 1
        %v3020 = vsel %vm1337, %v3017, %v3019
        %v3021 = vrot.slane %v2954, 1
        %v3022 = vsel %vm1337, %v3019, %v3021
        %v3023 = vrot.slane %v2955, 1
        %v3024 = vsel %vm1337, %v3021, %v3023
        %v3025 = vrot.slane %v2956, 1
        %v3026 = vsel %vm1337, %v3023, %v3025
        %v3027 = vrot.slane %v2957, 1
        %v3028 = vsel %vm1337, %v3025, %v3027
        %v3029 = vrot.slane %v2958, 1
        %v3030 = vsel %vm1337, %v3027, %v3029
        %v3031 = vrot.slane %v2959, 1
        %v3032 = vsel %vm1337, %v3029, %v3031
        %v3033 = vrot.slane %v2960, 1
        %v3034 = vsel %vm1337, %v3031, %v3033
        %v3035 = vrot.slane %v2961, 1
        %v3036 = vsel %vm1337, %v3033, %v3035
        %v3037 = vrot.slane %v2962, 1
        %v3038 = vsel %vm1337, %v3035, %v3037
        %v3039 = vrot.slane %v2963, 1
        %v3040 = vsel %vm1337, %v3037, %v3039
        %v3041 = vrot.slane %v2964, 1
        %v3042 = vsel %vm1337, %v3039, %v3041
        %v3043 = vrot.slane %v2965, 1
        %v3044 = vsel %vm1337, %v3041, %v3043
        %v3045 = vrot.slane %v2966, 1
        %v3046 = vsel %vm1337, %v3043, %v3045
        %v3047 = vrot.slane %v2967, 1
        %v3048 = vsel %vm1337, %v3045, %v3047
        %v3049 = vrot.slane %v2968, 1
        %v3050 = vsel %vm1337, %v3047, %v3049
        %v3051 = vrot.slane %v2969, 1
        %v3052 = vsel %vm1337, %v3049, %v3051
        %v3053 = vrot.slane %v2970, 1
        %v3054 = vsel %vm1337, %v3051, %v3053
        %v3055 = vrot.slane %v2971, 1
        %v3056 = vsel %vm1337, %v3053, %v3055
        %v3057 = vrot.slane %v2972, 1
        %v3058 = vsel %vm1337, %v3055, %v3057
        %v3059 = vrot.slane %v2973, 1
        %v3060 = vsel %vm1337, %v3057, %v3059
        %v3061 = vrot.slane %v2974, 1
        %v3062 = vsel %vm1337, %v3059, %v3061
        %v3063 = vrot.slane %v2975, 1
        %v3064 = vsel %vm1337, %v3061, %v3063
        %v3095 = vmax.f32 %v2946, %v3008
        %v3096 = vmax.f32 %v2947, %v3010
        %v3097 = vmax.f32 %v2948, %v3012
        %v3098 = vmax.f32 %v2949, %v3014
        %v3099 = vmax.f32 %v2950, %v3016
        %v3100 = vmax.f32 %v2951, %v3018
        %v3101 = vmax.f32 %v2952, %v3020
        %v3102 = vmax.f32 %v2953, %v3022
        %v3103 = vmax.f32 %v2954, %v3024
        %v3104 = vmax.f32 %v2955, %v3026
        %v3105 = vmax.f32 %v2956, %v3028
        %v3106 = vmax.f32 %v2957, %v3030
        %v3107 = vmax.f32 %v2958, %v3032
        %v3108 = vmax.f32 %v2959, %v3034
        %v3109 = vmax.f32 %v2960, %v3036
        %v3110 = vmax.f32 %v2961, %v3038
        %v3111 = vmax.f32 %v2962, %v3040
        %v3112 = vmax.f32 %v2963, %v3042
        %v3113 = vmax.f32 %v2964, %v3044
        %v3114 = vmax.f32 %v2965, %v3046
        %v3115 = vmax.f32 %v2966, %v3048
        %v3116 = vmax.f32 %v2967, %v3050
        %v3117 = vmax.f32 %v2968, %v3052
        %v3118 = vmax.f32 %v2969, %v3054
        %v3119 = vmax.f32 %v2970, %v3056
        %v3120 = vmax.f32 %v2971, %v3058
        %v3121 = vmax.f32 %v2972, %v3060
        %v3122 = vmax.f32 %v2973, %v3062
        %v3123 = vmax.f32 %v2974, %v3064
        %v3124 = vmax.f32 %v2975, %v3063
        %vm3125 = vcmask 908288
        %v3127 = vsel %vm3125, %v2931, 0
        %v3130 = vsel %vm3125, %v2933, 0
        %v3133 = vsel %vm3125, %v2935, 0
        %v3136 = vsel %vm3125, %v2937, 0
        %v3139 = vsel %vm3125, %v2939, 0
        %v3142 = vsel %vm3125, %v2941, 0
        %v3145 = vsel %vm3125, %v2943, 0
        %v3148 = vsel %vm3125, %v2945, 0
        %v3151 = vsel %vm1337, %v3124, 0
        %3153 = vmatpush.msra.mxu0 %v3110
        %3154 = vmatpush.msra.mxu0 %v3109
        %3155 = vmatpush.msra.mxu0 %v3108
        %3156 = vmatpush.msra.mxu0 %v3107
        %3157 = vmatpush.msra.mxu0 %v3106
        %3158 = vmatpush.msra.mxu0 %v3105
        %3159 = vmatpush.msra.mxu0 %v3104
        %3160 = vmatpush.msra.mxu0 %v3103
        %3161 = vmatpush.msra.mxu0 %v3102
        %3162 = vmatpush.msra.mxu0 %v3101
        %3163 = vmatpush.msra.mxu0 %v3100
        %3164 = vmatpush.msra.mxu0 %v3099
        %3165 = vmatpush.msra.mxu0 %v3098
        %3166 = vmatpush.msra.mxu0 %v3097
        %3167 = vmatpush.msra.mxu0 %v3096
        %3168 = vmatpush.msra.mxu0 %v3095
        %3169 = vmatmul.f32.gmra.mxu0 %v2930
        %v3170 = vpop.f32.mrf.mxu0
        %v3171 = vadd.f32 0.0, %v3170
        %3172 = vmatmul.f32.gmra.mxu0 %v2932
        %v3173 = vpop.f32.mrf.mxu0
        %v3174 = vadd.f32 0.0, %v3173
        %3175 = vmatmul.f32.gmra.mxu0 %v2934
        %v3176 = vpop.f32.mrf.mxu0
        %v3177 = vadd.f32 0.0, %v3176
        %3178 = vmatmul.f32.gmra.mxu0 %v2936
        %v3179 = vpop.f32.mrf.mxu0
        %v3180 = vadd.f32 0.0, %v3179
        %3181 = vmatmul.f32.gmra.mxu0 %v2938
        %v3182 = vpop.f32.mrf.mxu0
        %v3183 = vadd.f32 0.0, %v3182
        %3184 = vmatmul.f32.gmra.mxu0 %v2940
        %v3185 = vpop.f32.mrf.mxu0
        %v3186 = vadd.f32 0.0, %v3185
        %3187 = vmatmul.f32.gmra.mxu0 %v2942
        %v3188 = vpop.f32.mrf.mxu0
        %v3189 = vadd.f32 0.0, %v3188
        %3190 = vmatmul.f32.gmra.mxu0 %v2944
        %v3191 = vpop.f32.mrf.mxu0
        %v3192 = vadd.f32 0.0, %v3191
        %3193 = vdwg.mxu0
        %3194 = vmatpush.msra.mxu0 0.0
        %3195 = vmatpush.msra.mxu0 0.0
        %3196 = vmatpush.msra.mxu0 %v3151
        %3197 = vmatpush.msra.mxu0 %v3123
        %3198 = vmatpush.msra.mxu0 %v3122
        %3199 = vmatpush.msra.mxu0 %v3121
        %3200 = vmatpush.msra.mxu0 %v3120
        %3201 = vmatpush.msra.mxu0 %v3119
        %3202 = vmatpush.msra.mxu0 %v3118
        %3203 = vmatpush.msra.mxu0 %v3117
        %3204 = vmatpush.msra.mxu0 %v3116
        %3205 = vmatpush.msra.mxu0 %v3115
        %3206 = vmatpush.msra.mxu0 %v3114
        %3207 = vmatpush.msra.mxu0 %v3113
        %3208 = vmatpush.msra.mxu0 %v3112
        %3209 = vmatpush.msra.mxu0 %v3111
        %3210 = vmatmul.f32.gmra.mxu0 %v3127
        %v3211 = vpop.f32.mrf.mxu0
        %v3212 = vadd.f32 %v3171, %v3211
        %3213 = vmatmul.f32.gmra.mxu0 %v3130
        %v3214 = vpop.f32.mrf.mxu0
        %v3215 = vadd.f32 %v3174, %v3214
        %3216 = vmatmul.f32.gmra.mxu0 %v3133
        %v3217 = vpop.f32.mrf.mxu0
        %v3218 = vadd.f32 %v3177, %v3217
        %3219 = vmatmul.f32.gmra.mxu0 %v3136
        %v3220 = vpop.f32.mrf.mxu0
        %v3221 = vadd.f32 %v3180, %v3220
        %3222 = vmatmul.f32.gmra.mxu0 %v3139
        %v3223 = vpop.f32.mrf.mxu0
        %v3224 = vadd.f32 %v3183, %v3223
        %3225 = vmatmul.f32.gmra.mxu0 %v3142
        %v3226 = vpop.f32.mrf.mxu0
        %v3227 = vadd.f32 %v3186, %v3226
        %3228 = vmatmul.f32.gmra.mxu0 %v3145
        %v3229 = vpop.f32.mrf.mxu0
        %v3230 = vadd.f32 %v3189, %v3229
        %3231 = vmatmul.f32.gmra.mxu0 %v3148
        %v3232 = vpop.f32.mrf.mxu0
        %v3233 = vadd.f32 %v3192, %v3232
        %3234 = vdwg.mxu0
        %vm3235 = vcmp.lt.s32.totalorder %v398, 0
        %v3236 = vsub.s32 0, %v398
        %v3237 = vsel %vm3235, %v3236, %v398
        %v3238 = vshrl.u32 %v3237, 3
        %v3239 = vand.u32 %v3237, 7
        %v3240 = vsub.s32 0, %v3239
        %v3241 = vsel %vm3235, %v3240, %v3239
        %vm3242 = vcmp.lt.s32.totalorder %v399, 0
        %v3243 = vsub.s32 0, %v399
        %v3244 = vsel %vm3242, %v3243, %v399
        %v3245 = vshrl.u32 %v3244, 3
        %v3246 = vand.u32 %v3244, 7
        %v3247 = vsub.s32 0, %v3246
        %v3248 = vsel %vm3242, %v3247, %v3246
        %vm3249 = vcmp.lt.s32.totalorder %v400, 0
        %v3250 = vsub.s32 0, %v400
        %v3251 = vsel %vm3249, %v3250, %v400
        %v3252 = vshrl.u32 %v3251, 3
        %v3253 = vand.u32 %v3251, 7
        %v3254 = vsub.s32 0, %v3253
        %v3255 = vsel %vm3249, %v3254, %v3253
        %vm3256 = vcmp.lt.s32.totalorder %v401, 0
        %v3257 = vsub.s32 0, %v401
        %v3258 = vsel %vm3256, %v3257, %v401
        %v3259 = vshrl.u32 %v3258, 3
        %v3260 = vand.u32 %v3258, 7
        %v3261 = vsub.s32 0, %v3260
        %v3262 = vsel %vm3256, %v3261, %v3260
        %vm3263 = vcmp.lt.s32.totalorder %v402, 0
        %v3264 = vsub.s32 0, %v402
        %v3265 = vsel %vm3263, %v3264, %v402
        %v3266 = vshrl.u32 %v3265, 3
        %v3267 = vand.u32 %v3265, 7
        %v3268 = vsub.s32 0, %v3267
        %v3269 = vsel %vm3263, %v3268, %v3267
        %vm3270 = vcmp.lt.s32.totalorder %v403, 0
        %v3271 = vsub.s32 0, %v403
        %v3272 = vsel %vm3270, %v3271, %v403
        %v3273 = vshrl.u32 %v3272, 3
        %v3274 = vand.u32 %v3272, 7
        %v3275 = vsub.s32 0, %v3274
        %v3276 = vsel %vm3270, %v3275, %v3274
        %vm3277 = vcmp.lt.s32.totalorder %v404, 0
        %v3278 = vsub.s32 0, %v404
        %v3279 = vsel %vm3277, %v3278, %v404
        %v3280 = vshrl.u32 %v3279, 3
        %v3281 = vand.u32 %v3279, 7
        %v3282 = vsub.s32 0, %v3281
        %v3283 = vsel %vm3277, %v3282, %v3281
        %vm3284 = vcmp.lt.s32.totalorder %v405, 0
        %v3285 = vsub.s32 0, %v405
        %v3286 = vsel %vm3284, %v3285, %v405
        %v3287 = vshrl.u32 %v3286, 3
        %v3288 = vand.u32 %v3286, 7
        %v3289 = vsub.s32 0, %v3288
        %v3290 = vsel %vm3284, %v3289, %v3288
        %vm3291 = vcmp.ne.s32.totalorder %v3241, 0
        %vm3292 = vcmp.ne.s32.totalorder %v3248, 0
        %vm3293 = vcmp.ne.s32.totalorder %v3255, 0
        %vm3294 = vcmp.ne.s32.totalorder %v3262, 0
        %vm3295 = vcmp.ne.s32.totalorder %v3269, 0
        %vm3296 = vcmp.ne.s32.totalorder %v3276, 0
        %vm3297 = vcmp.ne.s32.totalorder %v3283, 0
        %vm3298 = vcmp.ne.s32.totalorder %v3290, 0
        %vm3299 = vcmp.lt.s32.totalorder %v3241, 0
        %vm3300 = vcmp.lt.s32.totalorder %v3248, 0
        %vm3301 = vcmp.lt.s32.totalorder %v3255, 0
        %vm3302 = vcmp.lt.s32.totalorder %v3262, 0
        %vm3303 = vcmp.lt.s32.totalorder %v3269, 0
        %vm3304 = vcmp.lt.s32.totalorder %v3276, 0
        %vm3305 = vcmp.lt.s32.totalorder %v3283, 0
        %vm3306 = vcmp.lt.s32.totalorder %v3290, 0
        %vm3307 = vmand %vm3299, %vm3291
        %vm3308 = vmand %vm3300, %vm3292
        %vm3309 = vmand %vm3301, %vm3293
        %vm3310 = vmand %vm3302, %vm3294
        %vm3311 = vmand %vm3303, %vm3295
        %vm3312 = vmand %vm3304, %vm3296
        %vm3313 = vmand %vm3305, %vm3297
        %vm3314 = vmand %vm3306, %vm3298
        %v3315 = vadd.s32 %v3241, 8
        %v3316 = vadd.s32 %v3248, 8
        %v3317 = vadd.s32 %v3255, 8
        %v3318 = vadd.s32 %v3262, 8
        %v3319 = vadd.s32 %v3269, 8
        %v3320 = vadd.s32 %v3276, 8
        %v3321 = vadd.s32 %v3283, 8
        %v3322 = vadd.s32 %v3290, 8
        %v3323 = vsel %vm3307, %v3315, %v3241
        %v3324 = vsel %vm3308, %v3316, %v3248
        %v3325 = vsel %vm3309, %v3317, %v3255
        %v3326 = vsel %vm3310, %v3318, %v3262
        %v3327 = vsel %vm3311, %v3319, %v3269
        %v3328 = vsel %vm3312, %v3320, %v3276
        %v3329 = vsel %vm3313, %v3321, %v3283
        %v3330 = vsel %vm3314, %v3322, %v3290
        %vm3331 = vcmp.ge.s32.totalorder %v3323, 1
        %vm3332 = vcmp.ge.s32.totalorder %v3324, 1
        %vm3333 = vcmp.ge.s32.totalorder %v3325, 1
        %vm3334 = vcmp.ge.s32.totalorder %v3326, 1
        %vm3335 = vcmp.ge.s32.totalorder %v3327, 1
        %vm3336 = vcmp.ge.s32.totalorder %v3328, 1
        %vm3337 = vcmp.ge.s32.totalorder %v3329, 1
        %vm3338 = vcmp.ge.s32.totalorder %v3330, 1
        %vm3339 = vcmp.le.s32.totalorder %v3323, 6
        %vm3340 = vcmp.le.s32.totalorder %v3324, 6
        %vm3341 = vcmp.le.s32.totalorder %v3325, 6
        %vm3342 = vcmp.le.s32.totalorder %v3326, 6
        %vm3343 = vcmp.le.s32.totalorder %v3327, 6
        %vm3344 = vcmp.le.s32.totalorder %v3328, 6
        %vm3345 = vcmp.le.s32.totalorder %v3329, 6
        %vm3346 = vcmp.le.s32.totalorder %v3330, 6
        %3347 = vst [vmem:[#allocation3] sm:$0xff] 0.0
        %3348 = vst [vmem:[#allocation3 + $0x8] sm:$0xff] 0.0
        %vm3349 = vcmask 261120
        %3350 = vst.msk [vmem:[#allocation3 + $0x10] sm:$0xff] %vm3349, 0.0
        %3351 = vst [vmem:[#allocation3 + $0x18] sm:$0xff] 0.0
        %3352 = vst [vmem:[#allocation3 + $0x20] sm:$0xff] 0.0
        %3353 = vst.msk [vmem:[#allocation3 + $0x28] sm:$0xff] %vm3349, 0.0
        %3354 = vst [vmem:[#allocation3 + $0x30] sm:$0xff] 0.0
        %3355 = vst [vmem:[#allocation3 + $0x38] sm:$0xff] 0.0
        %3356 = vst.msk [vmem:[#allocation3 + $0x40] sm:$0xff] %vm3349, 0.0
        %3357 = vst [vmem:[#allocation3 + $0x48] sm:$0xff] 0.0
        %3358 = vst [vmem:[#allocation3 + $0x50] sm:$0xff] 0.0
        %3359 = vst.msk [vmem:[#allocation3 + $0x58] sm:$0xff] %vm3349, 0.0
        %3360 = vst [vmem:[#allocation3 + $0x60] sm:$0xff] 0.0
        %3361 = vst [vmem:[#allocation3 + $0x68] sm:$0xff] 0.0
        %3362 = vst.msk [vmem:[#allocation3 + $0x70] sm:$0xff] %vm3349, 0.0
        %3363 = vst [vmem:[#allocation3 + $0x78] sm:$0xff] 0.0
        %3364 = vst [vmem:[#allocation3 + $0x80] sm:$0xff] 0.0
        %3365 = vst.msk [vmem:[#allocation3 + $0x88] sm:$0xff] %vm3349, 0.0
        %3366 = vst [vmem:[#allocation3 + $0x90] sm:$0xff] 0.0
        %3367 = vst [vmem:[#allocation3 + $0x98] sm:$0xff] 0.0
        %3368 = vst.msk [vmem:[#allocation3 + $0xa0] sm:$0xff] %vm3349, 0.0
        %3369 = vst [vmem:[#allocation3 + $0xa8] sm:$0xff] 0.0
        %3370 = vst [vmem:[#allocation3 + $0xb0] sm:$0xff] 0.0
        %3371 = vst.msk [vmem:[#allocation3 + $0xb8] sm:$0xff] %vm3349, 0.0
        %v3372 = vsel %vm3332, 1, 0
        %v3373 = vsel %vm3333, 1, 0
        %v3374 = vsel %vm3334, 1, 0
        %v3375 = vsel %vm3335, 1, 0
        %v3376 = vsel %vm3336, 1, 0
        %v3377 = vsel %vm3337, 1, 0
        %v3378 = vsel %vm3338, 1, 0
        %vm3379 = vcmp.eq.s32.totalorder %v3372, 1
        %vm3380 = vcmp.eq.s32.totalorder %v3373, 1
        %vm3381 = vcmp.eq.s32.totalorder %v3374, 1
        %vm3382 = vcmp.eq.s32.totalorder %v3375, 1
        %vm3383 = vcmp.eq.s32.totalorder %v3376, 1
        %vm3384 = vcmp.eq.s32.totalorder %v3377, 1
        %vm3385 = vcmp.eq.s32.totalorder %v3378, 1
        %v3393 = vrot.slane %v3212, 7
        %v3394 = vrot.slane %v3215, 7
        %v3395 = vsel %vm1001, %v3393, %v3394
        %v3396 = vrot.slane %v3218, 7
        %v3397 = vsel %vm1001, %v3394, %v3396
        %v3398 = vrot.slane %v3221, 7
        %v3399 = vsel %vm1001, %v3396, %v3398
        %v3400 = vrot.slane %v3224, 7
        %v3401 = vsel %vm1001, %v3398, %v3400
        %v3402 = vrot.slane %v3227, 7
        %v3403 = vsel %vm1001, %v3400, %v3402
        %v3404 = vrot.slane %v3230, 7
        %v3405 = vsel %vm1001, %v3402, %v3404
        %v3413 = vsel %vm3379, %v3393, 0.0
        %v3414 = vsel %vm3380, %v3395, 0.0
        %v3415 = vsel %vm3381, %v3397, 0.0
        %v3416 = vsel %vm3382, %v3399, 0.0
        %v3417 = vsel %vm3383, %v3401, 0.0
        %v3418 = vsel %vm3384, %v3403, 0.0
        %v3419 = vsel %vm3385, %v3405, 0.0
        %vm3420 = vcmask 261121
        %3421 = vst.msk [vmem:[#allocation3 + $0x18] sm:$0xfe] %vm3420, %v3413
        %3422 = vst.msk [vmem:[#allocation3 + $0x30] sm:$0xff] %vm3349, %v3414
        %3423 = vst.msk [vmem:[#allocation3 + $0x48] sm:$0xff] %vm3349, %v3415
        %3424 = vst.msk [vmem:[#allocation3 + $0x60] sm:$0xff] %vm3349, %v3416
        %3425 = vst.msk [vmem:[#allocation3 + $0x78] sm:$0xff] %vm3349, %v3417
        %3426 = vst.msk [vmem:[#allocation3 + $0x90] sm:$0xff] %vm3349, %v3418
        %3427 = vst.msk [vmem:[#allocation3 + $0xa8] sm:$0xff] %vm3349, %v3419
        %3428 = vrot.lane.b32.xlu0 %v3212, 32
        %v3429 = vpop.permute.xlu0 %3428
        %3430 = vrot.lane.b32.xlu0 %v3215, 32
        %v3431 = vpop.permute.xlu0 %3430
        %3432 = vrot.lane.b32.xlu0 %v3218, 32
        %v3433 = vpop.permute.xlu0 %3432
        %3434 = vrot.lane.b32.xlu0 %v3221, 32
        %v3435 = vpop.permute.xlu0 %3434
        %3436 = vrot.lane.b32.xlu0 %v3224, 32
        %v3437 = vpop.permute.xlu0 %3436
        %3438 = vrot.lane.b32.xlu0 %v3227, 32
        %v3439 = vpop.permute.xlu0 %3438
        %3440 = vrot.lane.b32.xlu0 %v3230, 32
        %v3441 = vpop.permute.xlu0 %3440
        %vm3449 = vcmask 523520
        %3450 = vst.msk [vmem:[#allocation3 + $0x18] sm:$0xff] %vm3449, %v3429
        %3451 = vst.msk [vmem:[#allocation3 + $0x30] sm:$0xff] %vm3449, %v3431
        %3452 = vst.msk [vmem:[#allocation3 + $0x48] sm:$0xff] %vm3449, %v3433
        %3453 = vst.msk [vmem:[#allocation3 + $0x60] sm:$0xff] %vm3449, %v3435
        %3454 = vst.msk [vmem:[#allocation3 + $0x78] sm:$0xff] %vm3449, %v3437
        %3455 = vst.msk [vmem:[#allocation3 + $0x90] sm:$0xff] %vm3449, %v3439
        %3456 = vst.msk [vmem:[#allocation3 + $0xa8] sm:$0xff] %vm3449, %v3441
        %v3457 = vsel %vm3339, 1, 0
        %v3458 = vsel %vm3340, 1, 0
        %v3459 = vsel %vm3341, 1, 0
        %v3460 = vsel %vm3342, 1, 0
        %v3461 = vsel %vm3343, 1, 0
        %v3462 = vsel %vm3344, 1, 0
        %v3463 = vsel %vm3345, 1, 0
        %v3464 = vsel %vm3346, 1, 0
        %vm3465 = vcmp.eq.s32.totalorder %v3457, 1
        %vm3466 = vcmp.eq.s32.totalorder %v3458, 1
        %vm3467 = vcmp.eq.s32.totalorder %v3459, 1
        %vm3468 = vcmp.eq.s32.totalorder %v3460, 1
        %vm3469 = vcmp.eq.s32.totalorder %v3461, 1
        %vm3470 = vcmp.eq.s32.totalorder %v3462, 1
        %vm3471 = vcmp.eq.s32.totalorder %v3463, 1
        %vm3472 = vcmp.eq.s32.totalorder %v3464, 1
        %v3474 = vrot.slane %v3212, 1
        %v3475 = vrot.slane %v3215, 1
        %v3476 = vsel %vm1337, %v3474, %v3475
        %v3477 = vrot.slane %v3218, 1
        %v3478 = vsel %vm1337, %v3475, %v3477
        %v3479 = vrot.slane %v3221, 1
        %v3480 = vsel %vm1337, %v3477, %v3479
        %v3481 = vrot.slane %v3224, 1
        %v3482 = vsel %vm1337, %v3479, %v3481
        %v3483 = vrot.slane %v3227, 1
        %v3484 = vsel %vm1337, %v3481, %v3483
        %v3485 = vrot.slane %v3230, 1
        %v3486 = vsel %vm1337, %v3483, %v3485
        %v3487 = vrot.slane %v3233, 1
        %v3488 = vsel %vm1337, %v3485, %v3487
        %v3497 = vsel %vm3465, %v3474, 0.0
        %v3498 = vsel %vm3466, %v3476, 0.0
        %v3499 = vsel %vm3467, %v3478, 0.0
        %v3500 = vsel %vm3468, %v3480, 0.0
        %v3501 = vsel %vm3469, %v3482, 0.0
        %v3502 = vsel %vm3470, %v3484, 0.0
        %v3503 = vsel %vm3471, %v3486, 0.0
        %v3504 = vsel %vm3472, %v3488, 0.0
        %3513 = vrot.lane.b32.xlu0 %v3497, 64
        %v3514 = vpop.permute.xlu0 %3513
        %3515 = vrot.lane.b32.xlu0 %v3498, 64
        %v3516 = vpop.permute.xlu0 %3515
        %3517 = vrot.lane.b32.xlu0 %v3499, 64
        %v3518 = vpop.permute.xlu0 %3517
        %3519 = vrot.lane.b32.xlu0 %v3500, 64
        %v3520 = vpop.permute.xlu0 %3519
        %3521 = vrot.lane.b32.xlu0 %v3501, 64
        %v3522 = vpop.permute.xlu0 %3521
        %3523 = vrot.lane.b32.xlu0 %v3502, 64
        %v3524 = vpop.permute.xlu0 %3523
        %3525 = vrot.lane.b32.xlu0 %v3503, 64
        %v3526 = vpop.permute.xlu0 %3525
        %3527 = vrot.lane.b32.xlu0 %v3504, 64
        %v3528 = vpop.permute.xlu0 %3527
        %vm3537 = vcmask 785927
        %3538 = vst.msk [vmem:[#allocation3] sm:$0x80] %vm3537, %v3514
        %vm3539 = vcmask 785920
        %3540 = vst.msk [vmem:[#allocation3 + $0x18] sm:$0xff] %vm3539, %v3516
        %3541 = vst.msk [vmem:[#allocation3 + $0x30] sm:$0xff] %vm3539, %v3518
        %3542 = vst.msk [vmem:[#allocation3 + $0x48] sm:$0xff] %vm3539, %v3520
        %3543 = vst.msk [vmem:[#allocation3 + $0x60] sm:$0xff] %vm3539, %v3522
        %3544 = vst.msk [vmem:[#allocation3 + $0x78] sm:$0xff] %vm3539, %v3524
        %3545 = vst.msk [vmem:[#allocation3 + $0x90] sm:$0xff] %vm3539, %v3526
        %3546 = vst.msk [vmem:[#allocation3 + $0xa8] sm:$0xff] %vm3539, %v3528
        %v3547 = vsel %vm3331, 1, 0
        %vm3548 = vcmp.eq.s32.totalorder %v3547, 1
        %v3549 = vrot.slane %v3233, 7
        %v3550 = vsel %vm1001, %v3404, %v3549
        %v3552 = vsel %vm3548, %v3393, 0.0
        %v3553 = vsel %vm3379, %v3395, 0.0
        %v3554 = vsel %vm3380, %v3397, 0.0
        %v3555 = vsel %vm3381, %v3399, 0.0
        %v3556 = vsel %vm3382, %v3401, 0.0
        %v3557 = vsel %vm3383, %v3403, 0.0
        %v3558 = vsel %vm3384, %v3405, 0.0
        %v3559 = vsel %vm3385, %v3550, 0.0
        %3568 = vrot.lane.b32.xlu0 %v3552, 96
        %v3569 = vpop.permute.xlu0 %3568
        %3570 = vrot.lane.b32.xlu0 %v3553, 96
        %v3571 = vpop.permute.xlu0 %3570
        %3572 = vrot.lane.b32.xlu0 %v3554, 96
        %v3573 = vpop.permute.xlu0 %3572
        %3574 = vrot.lane.b32.xlu0 %v3555, 96
        %v3575 = vpop.permute.xlu0 %3574
        %3576 = vrot.lane.b32.xlu0 %v3556, 96
        %v3577 = vpop.permute.xlu0 %3576
        %3578 = vrot.lane.b32.xlu0 %v3557, 96
        %v3579 = vpop.permute.xlu0 %3578
        %3580 = vrot.lane.b32.xlu0 %v3558, 96
        %v3581 = vpop.permute.xlu0 %3580
        %3582 = vrot.lane.b32.xlu0 %v3559, 96
        %v3583 = vpop.permute.xlu0 %3582
        %vm3592 = vcmask 1048321
        %3593 = vst.msk [vmem:[#allocation3] sm:$0xfe] %vm3592, %v3569
        %vm3594 = vcmask 1048320
        %3595 = vst.msk [vmem:[#allocation3 + $0x18] sm:$0xff] %vm3594, %v3571
        %3596 = vst.msk [vmem:[#allocation3 + $0x30] sm:$0xff] %vm3594, %v3573
        %3597 = vst.msk [vmem:[#allocation3 + $0x48] sm:$0xff] %vm3594, %v3575
        %3598 = vst.msk [vmem:[#allocation3 + $0x60] sm:$0xff] %vm3594, %v3577
        %3599 = vst.msk [vmem:[#allocation3 + $0x78] sm:$0xff] %vm3594, %v3579
        %3600 = vst.msk [vmem:[#allocation3 + $0x90] sm:$0xff] %vm3594, %v3581
        %3601 = vst.msk [vmem:[#allocation3 + $0xa8] sm:$0xff] %vm3594, %v3583
        %3602 = vst.msk [vmem:[#allocation3 + $0x8] sm:$0xff] %vm3349, %v3212
        %3603 = vst.msk [vmem:[#allocation3 + $0x20] sm:$0xff] %vm3349, %v3215
        %3604 = vst.msk [vmem:[#allocation3 + $0x38] sm:$0xff] %vm3349, %v3218
        %3605 = vst.msk [vmem:[#allocation3 + $0x50] sm:$0xff] %vm3349, %v3221
        %3606 = vst.msk [vmem:[#allocation3 + $0x68] sm:$0xff] %vm3349, %v3224
        %3607 = vst.msk [vmem:[#allocation3 + $0x80] sm:$0xff] %vm3349, %v3227
        %3608 = vst.msk [vmem:[#allocation3 + $0x98] sm:$0xff] %vm3349, %v3230
        %3609 = vst.msk [vmem:[#allocation3 + $0xb0] sm:$0xff] %vm3349, %v3233
        %v3611 = vsel %vm3465, %v3476, 0.0
        %v3612 = vsel %vm3466, %v3478, 0.0
        %v3613 = vsel %vm3467, %v3480, 0.0
        %v3614 = vsel %vm3468, %v3482, 0.0
        %v3615 = vsel %vm3469, %v3484, 0.0
        %v3616 = vsel %vm3470, %v3486, 0.0
        %v3617 = vsel %vm3471, %v3488, 0.0
        %v3618 = vsel %vm3472, %v3487, 0.0
        %3627 = vrot.lane.b32.xlu0 %v3611, 32
        %v3628 = vpop.permute.xlu0 %3627
        %3629 = vrot.lane.b32.xlu0 %v3612, 32
        %v3630 = vpop.permute.xlu0 %3629
        %3631 = vrot.lane.b32.xlu0 %v3613, 32
        %v3632 = vpop.permute.xlu0 %3631
        %3633 = vrot.lane.b32.xlu0 %v3614, 32
        %v3634 = vpop.permute.xlu0 %3633
        %3635 = vrot.lane.b32.xlu0 %v3615, 32
        %v3636 = vpop.permute.xlu0 %3635
        %3637 = vrot.lane.b32.xlu0 %v3616, 32
        %v3638 = vpop.permute.xlu0 %3637
        %3639 = vrot.lane.b32.xlu0 %v3617, 32
        %v3640 = vpop.permute.xlu0 %3639
        %3641 = vrot.lane.b32.xlu0 %v3618, 32
        %v3642 = vpop.permute.xlu0 %3641
        %3651 = vst.msk [vmem:[#allocation3 + $0x8] sm:$0xff] %vm3449, %v3628
        %3652 = vst.msk [vmem:[#allocation3 + $0x20] sm:$0xff] %vm3449, %v3630
        %3653 = vst.msk [vmem:[#allocation3 + $0x38] sm:$0xff] %vm3449, %v3632
        %3654 = vst.msk [vmem:[#allocation3 + $0x50] sm:$0xff] %vm3449, %v3634
        %3655 = vst.msk [vmem:[#allocation3 + $0x68] sm:$0xff] %vm3449, %v3636
        %3656 = vst.msk [vmem:[#allocation3 + $0x80] sm:$0xff] %vm3449, %v3638
        %3657 = vst.msk [vmem:[#allocation3 + $0x98] sm:$0xff] %vm3449, %v3640
        %vm3658 = vcmask 522496
        %3659 = vst.msk [vmem:[#allocation3 + $0xb0] sm:$0x7f] %vm3658, %v3642
        %v3661 = vsel %vm3548, %v3395, 0.0
        %v3662 = vsel %vm3379, %v3397, 0.0
        %v3663 = vsel %vm3380, %v3399, 0.0
        %v3664 = vsel %vm3381, %v3401, 0.0
        %v3665 = vsel %vm3382, %v3403, 0.0
        %v3666 = vsel %vm3383, %v3405, 0.0
        %v3667 = vsel %vm3384, %v3550, 0.0
        %v3668 = vsel %vm3385, %v3549, 0.0
        %3677 = vrot.lane.b32.xlu0 %v3661, 64
        %v3678 = vpop.permute.xlu0 %3677
        %3679 = vrot.lane.b32.xlu0 %v3662, 64
        %v3680 = vpop.permute.xlu0 %3679
        %3681 = vrot.lane.b32.xlu0 %v3663, 64
        %v3682 = vpop.permute.xlu0 %3681
        %3683 = vrot.lane.b32.xlu0 %v3664, 64
        %v3684 = vpop.permute.xlu0 %3683
        %3685 = vrot.lane.b32.xlu0 %v3665, 64
        %v3686 = vpop.permute.xlu0 %3685
        %3687 = vrot.lane.b32.xlu0 %v3666, 64
        %v3688 = vpop.permute.xlu0 %3687
        %3689 = vrot.lane.b32.xlu0 %v3667, 64
        %v3690 = vpop.permute.xlu0 %3689
        %3691 = vrot.lane.b32.xlu0 %v3668, 64
        %v3692 = vpop.permute.xlu0 %3691
        %3701 = vst.msk [vmem:[#allocation3 + $0x8] sm:$0xff] %vm3539, %v3678
        %3702 = vst.msk [vmem:[#allocation3 + $0x20] sm:$0xff] %vm3539, %v3680
        %3703 = vst.msk [vmem:[#allocation3 + $0x38] sm:$0xff] %vm3539, %v3682
        %3704 = vst.msk [vmem:[#allocation3 + $0x50] sm:$0xff] %vm3539, %v3684
        %3705 = vst.msk [vmem:[#allocation3 + $0x68] sm:$0xff] %vm3539, %v3686
        %3706 = vst.msk [vmem:[#allocation3 + $0x80] sm:$0xff] %vm3539, %v3688
        %3707 = vst.msk [vmem:[#allocation3 + $0x98] sm:$0xff] %vm3539, %v3690
        %vm3708 = vcmask 778752
        %3709 = vst.msk [vmem:[#allocation3 + $0xb0] sm:$0x1] %vm3708, %v3692
        %3710 = vrot.lane.b32.xlu0 %v3215, 96
        %v3711 = vpop.permute.xlu0 %3710
        %3712 = vrot.lane.b32.xlu0 %v3218, 96
        %v3713 = vpop.permute.xlu0 %3712
        %3714 = vrot.lane.b32.xlu0 %v3221, 96
        %v3715 = vpop.permute.xlu0 %3714
        %3716 = vrot.lane.b32.xlu0 %v3224, 96
        %v3717 = vpop.permute.xlu0 %3716
        %3718 = vrot.lane.b32.xlu0 %v3227, 96
        %v3719 = vpop.permute.xlu0 %3718
        %3720 = vrot.lane.b32.xlu0 %v3230, 96
        %v3721 = vpop.permute.xlu0 %3720
        %3722 = vrot.lane.b32.xlu0 %v3233, 96
        %v3723 = vpop.permute.xlu0 %3722
        %3731 = vst.msk [vmem:[#allocation3 + $0x8] sm:$0xff] %vm3594, %v3711
        %3732 = vst.msk [vmem:[#allocation3 + $0x20] sm:$0xff] %vm3594, %v3713
        %3733 = vst.msk [vmem:[#allocation3 + $0x38] sm:$0xff] %vm3594, %v3715
        %3734 = vst.msk [vmem:[#allocation3 + $0x50] sm:$0xff] %vm3594, %v3717
        %3735 = vst.msk [vmem:[#allocation3 + $0x68] sm:$0xff] %vm3594, %v3719
        %3736 = vst.msk [vmem:[#allocation3 + $0x80] sm:$0xff] %vm3594, %v3721
        %3737 = vst.msk [vmem:[#allocation3 + $0x98] sm:$0xff] %vm3594, %v3723
        %v3738 = vsel %vm3465, %v3478, 0.0
        %v3739 = vsel %vm3466, %v3480, 0.0
        %v3740 = vsel %vm3467, %v3482, 0.0
        %v3741 = vsel %vm3468, %v3484, 0.0
        %v3742 = vsel %vm3469, %v3486, 0.0
        %v3743 = vsel %vm3470, %v3488, 0.0
        %v3744 = vsel %vm3471, %v3487, 0.0
        %3745 = vst.msk [vmem:[#allocation3 + $0x10] sm:$0xff] %vm3349, %v3738
        %3746 = vst.msk [vmem:[#allocation3 + $0x28] sm:$0xff] %vm3349, %v3739
        %3747 = vst.msk [vmem:[#allocation3 + $0x40] sm:$0xff] %vm3349, %v3740
        %3748 = vst.msk [vmem:[#allocation3 + $0x58] sm:$0xff] %vm3349, %v3741
        %3749 = vst.msk [vmem:[#allocation3 + $0x70] sm:$0xff] %vm3349, %v3742
        %3750 = vst.msk [vmem:[#allocation3 + $0x88] sm:$0xff] %vm3349, %v3743
        %vm3751 = vcmask 260096
        %3752 = vst.msk [vmem:[#allocation3 + $0xa0] sm:$0x7f] %vm3751, %v3744
        %v3753 = vld [vmem:[#allocation3] sm:$0xff]
        %v3754 = vld [vmem:[#allocation3 + $0x8] sm:$0xff]
        %v3755 = vld [vmem:[#allocation3 + $0x10] sm:$0xff]
        %v3756 = vld [vmem:[#allocation3 + $0x18] sm:$0xff]
        %v3757 = vld [vmem:[#allocation3 + $0x20] sm:$0xff]
        %v3758 = vld [vmem:[#allocation3 + $0x28] sm:$0xff]
        %v3759 = vld [vmem:[#allocation3 + $0x30] sm:$0xff]
        %v3760 = vld [vmem:[#allocation3 + $0x38] sm:$0xff]
        %v3761 = vld [vmem:[#allocation3 + $0x40] sm:$0xff]
        %v3762 = vld [vmem:[#allocation3 + $0x48] sm:$0xff]
        %v3763 = vld [vmem:[#allocation3 + $0x50] sm:$0xff]
        %v3764 = vld [vmem:[#allocation3 + $0x58] sm:$0xff]
        %v3765 = vld [vmem:[#allocation3 + $0x60] sm:$0xff]
        %v3766 = vld [vmem:[#allocation3 + $0x68] sm:$0xff]
        %v3767 = vld [vmem:[#allocation3 + $0x70] sm:$0xff]
        %v3768 = vld [vmem:[#allocation3 + $0x78] sm:$0xff]
        %v3769 = vld [vmem:[#allocation3 + $0x80] sm:$0xff]
        %v3770 = vld [vmem:[#allocation3 + $0x88] sm:$0xff]
        %v3771 = vld [vmem:[#allocation3 + $0x90] sm:$0xff]
        %v3772 = vld [vmem:[#allocation3 + $0x98] sm:$0xff]
        %v3773 = vld [vmem:[#allocation3 + $0xa0] sm:$0xff]
        %v3774 = vld [vmem:[#allocation3 + $0xa8] sm:$0xff]
        %v3775 = vld [vmem:[#allocation3 + $0xb0] sm:$0xff]
        %v3776 = vld [vmem:[#allocation3 + $0xb8] sm:$0xff]
        %v3777 = vld [vmem:[#allocation5] sm:$0xff]
        %v3778 = vld [vmem:[#allocation5 + $0x8] sm:$0xff]
        %v3779 = vld [vmem:[#allocation5 + $0x10] sm:$0xff]
        %v3780 = vld [vmem:[#allocation5 + $0x18] sm:$0xff]
        %v3781 = vld [vmem:[#allocation5 + $0x20] sm:$0xff]
        %v3782 = vld [vmem:[#allocation5 + $0x28] sm:$0xff]
        %v3783 = vld [vmem:[#allocation5 + $0x30] sm:$0xff]
        %v3784 = vld [vmem:[#allocation5 + $0x38] sm:$0xff]
        %v3785 = vld [vmem:[#allocation5 + $0x40] sm:$0xff]
        %v3786 = vld [vmem:[#allocation5 + $0x48] sm:$0xff]
        %v3787 = vld [vmem:[#allocation5 + $0x50] sm:$0xff]
        %v3788 = vld [vmem:[#allocation5 + $0x58] sm:$0xff]
        %v3789 = vld [vmem:[#allocation5 + $0x60] sm:$0xff]
        %v3790 = vld [vmem:[#allocation5 + $0x68] sm:$0xff]
        %v3791 = vld [vmem:[#allocation5 + $0x70] sm:$0xff]
        %v3792 = vld [vmem:[#allocation5 + $0x78] sm:$0xff]
        %v3793 = vld [vmem:[#allocation5 + $0x80] sm:$0xff]
        %v3794 = vld [vmem:[#allocation5 + $0x88] sm:$0xff]
        %v3795 = vld [vmem:[#allocation5 + $0x90] sm:$0xff]
        %v3796 = vld [vmem:[#allocation5 + $0x98] sm:$0xff]
        %v3797 = vld [vmem:[#allocation5 + $0xa0] sm:$0xff]
        %v3798 = vld [vmem:[#allocation5 + $0xa8] sm:$0xff]
        %v3799 = vld [vmem:[#allocation5 + $0xb0] sm:$0xff]
        %v3800 = vld [vmem:[#allocation5 + $0xb8] sm:$0xff]
        %v3801 = vld [vmem:[#allocation5 + $0xc0] sm:$0xff]
        %v3802 = vld [vmem:[#allocation5 + $0xc8] sm:$0xff]
        %v3803 = vld [vmem:[#allocation5 + $0xd0] sm:$0xff]
        %v3804 = vld [vmem:[#allocation5 + $0xd8] sm:$0xff]
        %v3805 = vld [vmem:[#allocation5 + $0xe0] sm:$0xff]
        %v3806 = vld [vmem:[#allocation5 + $0xe8] sm:$0xff]
        %v3807 = vld [vmem:[#allocation5 + $0xf0] sm:$0xff]
        %v3808 = vld [vmem:[#allocation5 + $0xf8] sm:$0xff]
        %v3809 = vld [vmem:[#allocation5 + $0x100] sm:$0xff]
        %v3810 = vld [vmem:[#allocation5 + $0x108] sm:$0xff]
        %v3811 = vld [vmem:[#allocation5 + $0x110] sm:$0xff]
        %v3812 = vld [vmem:[#allocation5 + $0x118] sm:$0xff]
        %v3813 = vld [vmem:[%s4] sm:$0x1]
        %v3815 = vperm.slane %v3813, 0
        %v3818 = vsel %vm3349, %v3755, 0
        %v3821 = vsel %vm3349, %v3758, 0
        %v3824 = vsel %vm3349, %v3761, 0
        %v3827 = vsel %vm3349, %v3764, 0
        %v3830 = vsel %vm3349, %v3767, 0
        %v3833 = vsel %vm3349, %v3770, 0
        %v3836 = vsel %vm3349, %v3773, 0
        %v3839 = vsel %vm3349, %v3776, 0
        %3841 = vmatpush.msra.mxu0 %v3792
        %3842 = vmatpush.msra.mxu0 %v3791
        %3843 = vmatpush.msra.mxu0 %v3790
        %3844 = vmatpush.msra.mxu0 %v3789
        %3845 = vmatpush.msra.mxu0 %v3788
        %3846 = vmatpush.msra.mxu0 %v3787
        %3847 = vmatpush.msra.mxu0 %v3786
        %3848 = vmatpush.msra.mxu0 %v3785
        %3849 = vmatpush.msra.mxu0 %v3784
        %3850 = vmatpush.msra.mxu0 %v3783
        %3851 = vmatpush.msra.mxu0 %v3782
        %3852 = vmatpush.msra.mxu0 %v3781
        %3853 = vmatpush.msra.mxu0 %v3780
        %3854 = vmatpush.msra.mxu0 %v3779
        %3855 = vmatpush.msra.mxu0 %v3778
        %3856 = vmatpush.msra.mxu0 %v3777
        %3857 = vmatmul.f32.gmra.mxu0 %v3753
        %v3858 = vpop.f32.mrf.mxu0
        %v3859 = vadd.f32 %v3815, %v3858
        %3860 = vmatmul.f32.gmra.mxu0 %v3756
        %v3861 = vpop.f32.mrf.mxu0
        %v3862 = vadd.f32 %v3815, %v3861
        %3863 = vmatmul.f32.gmra.mxu0 %v3759
        %v3864 = vpop.f32.mrf.mxu0
        %v3865 = vadd.f32 %v3815, %v3864
        %3866 = vmatmul.f32.gmra.mxu0 %v3762
        %v3867 = vpop.f32.mrf.mxu0
        %v3868 = vadd.f32 %v3815, %v3867
        %3869 = vmatmul.f32.gmra.mxu0 %v3765
        %v3870 = vpop.f32.mrf.mxu0
        %v3871 = vadd.f32 %v3815, %v3870
        %3872 = vmatmul.f32.gmra.mxu0 %v3768
        %v3873 = vpop.f32.mrf.mxu0
        %v3874 = vadd.f32 %v3815, %v3873
        %3875 = vmatmul.f32.gmra.mxu0 %v3771
        %v3876 = vpop.f32.mrf.mxu0
        %v3877 = vadd.f32 %v3815, %v3876
        %3878 = vmatmul.f32.gmra.mxu0 %v3774
        %v3879 = vpop.f32.mrf.mxu0
        %v3880 = vadd.f32 %v3815, %v3879
        %3881 = vdwg.mxu0
        %3882 = vmatpush.msra.mxu0 %v3808
        %3883 = vmatpush.msra.mxu0 %v3807
        %3884 = vmatpush.msra.mxu0 %v3806
        %3885 = vmatpush.msra.mxu0 %v3805
        %3886 = vmatpush.msra.mxu0 %v3804
        %3887 = vmatpush.msra.mxu0 %v3803
        %3888 = vmatpush.msra.mxu0 %v3802
        %3889 = vmatpush.msra.mxu0 %v3801
        %3890 = vmatpush.msra.mxu0 %v3800
        %3891 = vmatpush.msra.mxu0 %v3799
        %3892 = vmatpush.msra.mxu0 %v3798
        %3893 = vmatpush.msra.mxu0 %v3797
        %3894 = vmatpush.msra.mxu0 %v3796
        %3895 = vmatpush.msra.mxu0 %v3795
        %3896 = vmatpush.msra.mxu0 %v3794
        %3897 = vmatpush.msra.mxu0 %v3793
        %3898 = vmatmul.f32.gmra.mxu0 %v3754
        %v3899 = vpop.f32.mrf.mxu0
        %v3900 = vadd.f32 %v3859, %v3899
        %3901 = vmatmul.f32.gmra.mxu0 %v3757
        %v3902 = vpop.f32.mrf.mxu0
        %v3903 = vadd.f32 %v3862, %v3902
        %3904 = vmatmul.f32.gmra.mxu0 %v3760
        %v3905 = vpop.f32.mrf.mxu0
        %v3906 = vadd.f32 %v3865, %v3905
        %3907 = vmatmul.f32.gmra.mxu0 %v3763
        %v3908 = vpop.f32.mrf.mxu0
        %v3909 = vadd.f32 %v3868, %v3908
        %3910 = vmatmul.f32.gmra.mxu0 %v3766
        %v3911 = vpop.f32.mrf.mxu0
        %v3912 = vadd.f32 %v3871, %v3911
        %3913 = vmatmul.f32.gmra.mxu0 %v3769
        %v3914 = vpop.f32.mrf.mxu0
        %v3915 = vadd.f32 %v3874, %v3914
        %3916 = vmatmul.f32.gmra.mxu0 %v3772
        %v3917 = vpop.f32.mrf.mxu0
        %v3918 = vadd.f32 %v3877, %v3917
        %3919 = vmatmul.f32.gmra.mxu0 %v3775
        %v3920 = vpop.f32.mrf.mxu0
        %v3921 = vadd.f32 %v3880, %v3920
        %3922 = vdwg.mxu0
        %3923 = vmatpush.msra.mxu0 0.0
        %3924 = vmatpush.msra.mxu0 0.0
        %3925 = vmatpush.msra.mxu0 0.0
        %3926 = vmatpush.msra.mxu0 0.0
        %3927 = vmatpush.msra.mxu0 0.0
        %3928 = vmatpush.msra.mxu0 0.0
        %3929 = vmatpush.msra.mxu0 0.0
        %3930 = vmatpush.msra.mxu0 0.0
        %3931 = vmatpush.msra.mxu0 0.0
        %3932 = vmatpush.msra.mxu0 0.0
        %3933 = vmatpush.msra.mxu0 0.0
        %3934 = vmatpush.msra.mxu0 0.0
        %3935 = vmatpush.msra.mxu0 %v3812
        %3936 = vmatpush.msra.mxu0 %v3811
        %3937 = vmatpush.msra.mxu0 %v3810
        %3938 = vmatpush.msra.mxu0 %v3809
        %3939 = vmatmul.f32.gmra.mxu0 %v3818
        %v3940 = vpop.f32.mrf.mxu0
        %v3941 = vadd.f32 %v3900, %v3940
        %3942 = vmatmul.f32.gmra.mxu0 %v3821
        %v3943 = vpop.f32.mrf.mxu0
        %v3944 = vadd.f32 %v3903, %v3943
        %3945 = vmatmul.f32.gmra.mxu0 %v3824
        %v3946 = vpop.f32.mrf.mxu0
        %v3947 = vadd.f32 %v3906, %v3946
        %3948 = vmatmul.f32.gmra.mxu0 %v3827
        %v3949 = vpop.f32.mrf.mxu0
        %v3950 = vadd.f32 %v3909, %v3949
        %3951 = vmatmul.f32.gmra.mxu0 %v3830
        %v3952 = vpop.f32.mrf.mxu0
        %v3953 = vadd.f32 %v3912, %v3952
        %3954 = vmatmul.f32.gmra.mxu0 %v3833
        %v3955 = vpop.f32.mrf.mxu0
        %v3956 = vadd.f32 %v3915, %v3955
        %3957 = vmatmul.f32.gmra.mxu0 %v3836
        %v3958 = vpop.f32.mrf.mxu0
        %v3959 = vadd.f32 %v3918, %v3958
        %3960 = vmatmul.f32.gmra.mxu0 %v3839
        %v3961 = vpop.f32.mrf.mxu0
        %v3962 = vadd.f32 %v3921, %v3961
        %3963 = vdwg.mxu0
        %v3964 = vmax.f32 %v3941, 0.0
        %v3965 = vmax.f32 %v3944, 0.0
        %v3966 = vmax.f32 %v3947, 0.0
        %v3967 = vmax.f32 %v3950, 0.0
        %v3968 = vmax.f32 %v3953, 0.0
        %v3969 = vmax.f32 %v3956, 0.0
        %v3970 = vmax.f32 %v3959, 0.0
        %v3971 = vmax.f32 %v3962, 0.0
        %v3972 = vld [vmem:[#allocation8] sm:$0xff]
        %v3973 = vld [vmem:[#allocation8 + $0x8] sm:$0xff]
        %v3974 = vmax.f32 %v3964, %v3965
        %v3975 = vmax.f32 %v3965, %v3966
        %v3976 = vmax.f32 %v3966, %v3967
        %v3977 = vmax.f32 %v3967, %v3968
        %v3978 = vmax.f32 %v3968, %v3969
        %v3979 = vmax.f32 %v3969, %v3970
        %v3980 = vmax.f32 %v3970, %v3971
        %v3988 = vrot.slane %v3974, 1
        %v3989 = vrot.slane %v3975, 1
        %v3990 = vsel %vm1337, %v3988, %v3989
        %v3991 = vrot.slane %v3976, 1
        %v3992 = vsel %vm1337, %v3989, %v3991
        %v3993 = vrot.slane %v3977, 1
        %v3994 = vsel %vm1337, %v3991, %v3993
        %v3995 = vrot.slane %v3978, 1
        %v3996 = vsel %vm1337, %v3993, %v3995
        %v3997 = vrot.slane %v3979, 1
        %v3998 = vsel %vm1337, %v3995, %v3997
        %v3999 = vrot.slane %v3980, 1
        %v4000 = vsel %vm1337, %v3997, %v3999
        %v4008 = vmax.f32 %v3974, %v3990
        %v4009 = vmax.f32 %v3975, %v3992
        %v4010 = vmax.f32 %v3976, %v3994
        %v4011 = vmax.f32 %v3977, %v3996
        %v4012 = vmax.f32 %v3978, %v3998
        %v4013 = vmax.f32 %v3979, %v4000
        %v4014 = vmax.f32 %v3980, %v3999
        %vm4015 = vcmask 449536
        %v4017 = vsel %vm4015, %v3972, 0
        %v4020 = vsel %vm4015, %v3973, 0
        %v4023 = vsel %vm1337, %v4014, 0
        %4025 = vmatpush.msra.mxu0 0.0
        %4026 = vmatpush.msra.mxu0 0.0
        %4027 = vmatpush.msra.mxu0 0.0
        %4028 = vmatpush.msra.mxu0 0.0
        %4029 = vmatpush.msra.mxu0 0.0
        %4030 = vmatpush.msra.mxu0 0.0
        %4031 = vmatpush.msra.mxu0 0.0
        %4032 = vmatpush.msra.mxu0 0.0
        %4033 = vmatpush.msra.mxu0 0.0
        %4034 = vmatpush.msra.mxu0 %v4023
        %4035 = vmatpush.msra.mxu0 %v4013
        %4036 = vmatpush.msra.mxu0 %v4012
        %4037 = vmatpush.msra.mxu0 %v4011
        %4038 = vmatpush.msra.mxu0 %v4010
        %4039 = vmatpush.msra.mxu0 %v4009
        %4040 = vmatpush.msra.mxu0 %v4008
        %4041 = vmatmul.f32.gmra.mxu0 %v4017
        %v4042 = vpop.f32.mrf.mxu0
        %v4043 = vadd.f32 0.0, %v4042
        %4044 = vmatmul.f32.gmra.mxu0 %v4020
        %v4045 = vpop.f32.mrf.mxu0
        %v4046 = vadd.f32 0.0, %v4045
        %4047 = vdwg.mxu0
        %vm4048 = vcmp.lt.s32.totalorder %v398, 0
        %v4049 = vsub.s32 0, %v398
        %v4050 = vsel %vm4048, %v4049, %v398
        %v4051 = vshrl.u32 %v4050, 2
        %v4052 = vand.u32 %v4050, 3
        %v4053 = vsub.s32 0, %v4052
        %v4054 = vsel %vm4048, %v4053, %v4052
        %vm4055 = vcmp.lt.s32.totalorder %v399, 0
        %v4056 = vsub.s32 0, %v399
        %v4057 = vsel %vm4055, %v4056, %v399
        %v4058 = vshrl.u32 %v4057, 2
        %v4059 = vand.u32 %v4057, 3
        %v4060 = vsub.s32 0, %v4059
        %v4061 = vsel %vm4055, %v4060, %v4059
        %vm4062 = vcmp.ne.s32.totalorder %v4054, 0
        %vm4063 = vcmp.ne.s32.totalorder %v4061, 0
        %vm4064 = vcmp.lt.s32.totalorder %v4054, 0
        %vm4065 = vcmp.lt.s32.totalorder %v4061, 0
        %vm4066 = vmand %vm4064, %vm4062
        %vm4067 = vmand %vm4065, %vm4063
        %v4068 = vadd.s32 %v4054, 4
        %v4069 = vadd.s32 %v4061, 4
        %v4070 = vsel %vm4066, %v4068, %v4054
        %v4071 = vsel %vm4067, %v4069, %v4061
        %vm4072 = vcmp.ge.s32.totalorder %v4070, 1
        %vm4073 = vcmp.ge.s32.totalorder %v4071, 1
        %vm4074 = vcmp.le.s32.totalorder %v4070, 2
        %vm4075 = vcmp.le.s32.totalorder %v4071, 2
        %4076 = vst [vmem:[#allocation4] sm:$0xff] 0.0
        %4077 = vst [vmem:[#allocation4 + $0x8] sm:$0xff] 0.0
        %4078 = vst [vmem:[#allocation4 + $0x10] sm:$0xff] 0.0
        %4079 = vst [vmem:[#allocation4 + $0x18] sm:$0xff] 0.0
        %vm4080 = vcmask 523264
        %4081 = vst.msk [vmem:[#allocation4 + $0x20] sm:$0xff] %vm4080, 0.0
        %4082 = vst [vmem:[#allocation4 + $0x28] sm:$0xff] 0.0
        %4083 = vst [vmem:[#allocation4 + $0x30] sm:$0xff] 0.0
        %4084 = vst [vmem:[#allocation4 + $0x38] sm:$0xff] 0.0
        %4085 = vst [vmem:[#allocation4 + $0x40] sm:$0xff] 0.0
        %4086 = vst.msk [vmem:[#allocation4 + $0x48] sm:$0xff] %vm4080, 0.0
        %v4087 = vsel %vm4072, 1, 0
        %v4088 = vsel %vm4073, 1, 0
        %vm4089 = vcmp.eq.s32.totalorder %v4087, 1
        %vm4090 = vcmp.eq.s32.totalorder %v4088, 1
        %vm4093 = vcmask 1044480
        %v4094 = vrot.slane %v4043, 3
        %v4095 = vrot.slane %v4046, 3
        %v4096 = vsel %vm4093, %v4094, %v4095
        %v4099 = vsel %vm4089, %v4094, 0.0
        %v4100 = vsel %vm4090, %v4096, 0.0
        %vm4101 = vcmask 523269
        %4102 = vst.msk [vmem:[#allocation4] sm:$0xe0] %vm4101, %v4099
        %4103 = vst.msk [vmem:[#allocation4 + $0x28] sm:$0xff] %vm4080, %v4100
        %vm4104 = vcmask 1043456
        %v4105 = vrot.slane %v4043, 4
        %v4106 = vrot.slane %v4046, 4
        %v4107 = vsel %vm4104, %v4105, %v4106
        %4108 = vrot.lane.b32.xlu0 %v4105, 64
        %v4109 = vpop.permute.xlu0 %4108
        %4110 = vrot.lane.b32.xlu0 %v4107, 64
        %v4111 = vpop.permute.xlu0 %4110
        %vm4114 = vcmask 1048068
        %4115 = vst.msk [vmem:[#allocation4] sm:$0xf0] %vm4114, %v4109
        %vm4116 = vcmask 1048064
        %4117 = vst.msk [vmem:[#allocation4 + $0x28] sm:$0xff] %vm4116, %v4111
        %v4118 = vsel %vm4074, 1, 0
        %v4119 = vsel %vm4075, 1, 0
        %vm4120 = vcmp.eq.s32.totalorder %v4118, 1
        %vm4121 = vcmp.eq.s32.totalorder %v4119, 1
        %vm4122 = vcmask 1042432
        %v4123 = vrot.slane %v4043, 5
        %v4124 = vrot.slane %v4046, 5
        %v4125 = vsel %vm4122, %v4123, %v4124
        %v4128 = vsel %vm4120, %v4123, 0.0
        %v4129 = vsel %vm4121, %v4125, 0.0
        %vm4130 = vcmask 523267
        %4131 = vst.msk [vmem:[#allocation4 + $0x8] sm:$0xf8] %vm4130, %v4128
        %4132 = vst.msk [vmem:[#allocation4 + $0x30] sm:$0xff] %vm4080, %v4129
        %v4133 = vrot.slane %v4043, 7
        %v4134 = vrot.slane %v4046, 7
        %v4135 = vsel %vm1001, %v4133, %v4134
        %v4138 = vsel %vm4089, %v4133, 0.0
        %v4139 = vsel %vm4090, %v4135, 0.0
        %4142 = vrot.lane.b32.xlu0 %v4138, 64
        %v4143 = vpop.permute.xlu0 %4142
        %4144 = vrot.lane.b32.xlu0 %v4139, 64
        %v4145 = vpop.permute.xlu0 %4144
        %vm4148 = vcmask 1048065
        %4149 = vst.msk [vmem:[#allocation4 + $0x8] sm:$0xfe] %vm4148, %v4143
        %4150 = vst.msk [vmem:[#allocation4 + $0x30] sm:$0xff] %vm4116, %v4145
        %4151 = vst.msk [vmem:[#allocation4 + $0x10] sm:$0xff] %vm4080, %v4043
        %4152 = vst.msk [vmem:[#allocation4 + $0x38] sm:$0xff] %vm4080, %v4046
        %v4153 = vrot.slane %v4043, 1
        %v4154 = vrot.slane %v4046, 1
        %v4155 = vsel %vm1337, %v4153, %v4154
        %v4158 = vsel %vm4120, %v4155, 0.0
        %v4159 = vsel %vm4121, %v4154, 0.0
        %4162 = vrot.lane.b32.xlu0 %v4158, 64
        %v4163 = vpop.permute.xlu0 %4162
        %4164 = vrot.lane.b32.xlu0 %v4159, 64
        %v4165 = vpop.permute.xlu0 %4164
        %4168 = vst.msk [vmem:[#allocation4 + $0x10] sm:$0xff] %vm4116, %v4163
        %vm4169 = vcmask 1047040
        %4170 = vst.msk [vmem:[#allocation4 + $0x38] sm:$0x7f] %vm4169, %v4165
        %v4172 = vsel %vm4089, %v4096, 0.0
        %v4173 = vsel %vm4090, %v4095, 0.0
        %4174 = vst.msk [vmem:[#allocation4 + $0x18] sm:$0xff] %vm4080, %v4172
        %vm4175 = vcmask 520192
        %4176 = vst.msk [vmem:[#allocation4 + $0x40] sm:$0x1f] %vm4175, %v4173
        %4177 = vrot.lane.b32.xlu0 %v4106, 64
        %v4178 = vpop.permute.xlu0 %4177
        %4180 = vst.msk [vmem:[#allocation4 + $0x18] sm:$0xff] %vm4116, %v4111
        %vm4181 = vcmask 1043968
        %4182 = vst.msk [vmem:[#allocation4 + $0x40] sm:$0xf] %vm4181, %v4178
        %v4184 = vsel %vm4120, %v4125, 0.0
        %v4185 = vsel %vm4121, %v4124, 0.0
        %4186 = vst.msk [vmem:[#allocation4 + $0x20] sm:$0xff] %vm4080, %v4184
        %vm4187 = vcmask 518144
        %4188 = vst.msk [vmem:[#allocation4 + $0x48] sm:$0x7] %vm4187, %v4185
        %v4189 = vld [vmem:[#allocation4] sm:$0xff]
        %v4190 = vld [vmem:[#allocation4 + $0x8] sm:$0xff]
        %v4191 = vld [vmem:[#allocation4 + $0x10] sm:$0xff]
        %v4192 = vld [vmem:[#allocation4 + $0x18] sm:$0xff]
        %v4193 = vld [vmem:[#allocation4 + $0x20] sm:$0xff]
        %v4194 = vld [vmem:[#allocation4 + $0x28] sm:$0xff]
        %v4195 = vld [vmem:[#allocation4 + $0x30] sm:$0xff]
        %v4196 = vld [vmem:[#allocation4 + $0x38] sm:$0xff]
        %v4197 = vld [vmem:[#allocation4 + $0x40] sm:$0xff]
        %v4198 = vld [vmem:[#allocation4 + $0x48] sm:$0xff]
        %v4199 = vld [vmem:[%s5] sm:$0xff]
        %v4200 = vld [vmem:[%s5 + $0x8] sm:$0xff]
        %v4201 = vld [vmem:[%s5 + $0x10] sm:$0xff]
        %v4202 = vld [vmem:[%s5 + $0x18] sm:$0xff]
        %v4203 = vld [vmem:[%s5 + $0x20] sm:$0xff]
        %v4204 = vld [vmem:[%s5 + $0x28] sm:$0xff]
        %v4205 = vld [vmem:[%s5 + $0x30] sm:$0xff]
        %v4206 = vld [vmem:[%s5 + $0x38] sm:$0xff]
        %v4207 = vld [vmem:[%s5 + $0x40] sm:$0xff]
        %v4208 = vld [vmem:[%s5 + $0x48] sm:$0xff]
        %v4209 = vld [vmem:[%s5 + $0x50] sm:$0xff]
        %v4210 = vld [vmem:[%s5 + $0x58] sm:$0xff]
        %v4211 = vld [vmem:[%s5 + $0x60] sm:$0xff]
        %v4212 = vld [vmem:[%s5 + $0x68] sm:$0xff]
        %v4213 = vld [vmem:[%s5 + $0x70] sm:$0xff]
        %v4214 = vld [vmem:[%s5 + $0x78] sm:$0xff]
        %v4215 = vld [vmem:[%s5 + $0x80] sm:$0xff]
        %v4216 = vld [vmem:[%s5 + $0x88] sm:$0xff]
        %v4217 = vld [vmem:[%s5 + $0x90] sm:$0xff]
        %v4218 = vld [vmem:[%s5 + $0x98] sm:$0xff]
        %v4219 = vld [vmem:[%s5 + $0xa0] sm:$0xff]
        %v4220 = vld [vmem:[%s5 + $0xa8] sm:$0xff]
        %v4221 = vld [vmem:[%s5 + $0xb0] sm:$0xff]
        %v4222 = vld [vmem:[%s5 + $0xb8] sm:$0xff]
        %v4223 = vld [vmem:[%s5 + $0xc0] sm:$0xff]
        %v4224 = vld [vmem:[%s5 + $0xc8] sm:$0xff]
        %v4225 = vld [vmem:[%s5 + $0xd0] sm:$0xff]
        %v4226 = vld [vmem:[%s5 + $0xd8] sm:$0xff]
        %v4227 = vld [vmem:[%s5 + $0xe0] sm:$0xff]
        %v4228 = vld [vmem:[%s5 + $0xe8] sm:$0xff]
        %v4229 = vld [vmem:[%s5 + $0xf0] sm:$0xff]
        %v4230 = vld [vmem:[%s5 + $0xf8] sm:$0xff]
        %v4231 = vld [vmem:[%s5 + $0x100] sm:$0xff]
        %v4232 = vld [vmem:[%s5 + $0x108] sm:$0xff]
        %v4233 = vld [vmem:[%s5 + $0x110] sm:$0xff]
        %v4234 = vld [vmem:[%s5 + $0x118] sm:$0xff]
        %v4235 = vld [vmem:[%s5 + $0x120] sm:$0xff]
        %v4236 = vld [vmem:[%s5 + $0x128] sm:$0xff]
        %v4237 = vld [vmem:[%s5 + $0x130] sm:$0xff]
        %v4238 = vld [vmem:[%s5 + $0x138] sm:$0xff]
        %v4239 = vld [vmem:[%s5 + $0x140] sm:$0xff]
        %v4240 = vld [vmem:[%s5 + $0x148] sm:$0xff]
        %v4241 = vld [vmem:[%s5 + $0x150] sm:$0xff]
        %v4242 = vld [vmem:[%s5 + $0x158] sm:$0xff]
        %v4243 = vld [vmem:[%s5 + $0x160] sm:$0xff]
        %v4244 = vld [vmem:[%s5 + $0x168] sm:$0xff]
        %v4245 = vld [vmem:[%s5 + $0x170] sm:$0xff]
        %v4246 = vld [vmem:[%s5 + $0x178] sm:$0xff]
        %v4247 = vld [vmem:[%s5 + $0x180] sm:$0xff]
        %v4248 = vld [vmem:[%s5 + $0x188] sm:$0xff]
        %v4249 = vld [vmem:[%s5 + $0x190] sm:$0xff]
        %v4250 = vld [vmem:[%s5 + $0x198] sm:$0xff]
        %v4251 = vld [vmem:[%s5 + $0x1a0] sm:$0xff]
        %v4252 = vld [vmem:[%s5 + $0x1a8] sm:$0xff]
        %v4253 = vld [vmem:[%s5 + $0x1b0] sm:$0xff]
        %v4254 = vld [vmem:[%s5 + $0x1b8] sm:$0xff]
        %v4255 = vld [vmem:[%s5 + $0x1c0] sm:$0xff]
        %v4256 = vld [vmem:[%s5 + $0x1c8] sm:$0xff]
        %v4257 = vld [vmem:[%s5 + $0x1d0] sm:$0xff]
        %v4258 = vld [vmem:[%s5 + $0x1d8] sm:$0xff]
        %v4259 = vld [vmem:[%s5 + $0x1e0] sm:$0xff]
        %v4260 = vld [vmem:[%s5 + $0x1e8] sm:$0xff]
        %v4261 = vld [vmem:[%s5 + $0x1f0] sm:$0xff]
        %v4262 = vld [vmem:[%s5 + $0x1f8] sm:$0xff]
        %v4263 = vld [vmem:[%s5 + $0x200] sm:$0xff]
        %v4264 = vld [vmem:[%s5 + $0x208] sm:$0xff]
        %v4265 = vld [vmem:[%s5 + $0x210] sm:$0xff]
        %v4266 = vld [vmem:[%s5 + $0x218] sm:$0xff]
        %v4267 = vld [vmem:[%s5 + $0x220] sm:$0xff]
        %v4268 = vld [vmem:[%s5 + $0x228] sm:$0xff]
        %v4269 = vld [vmem:[%s5 + $0x230] sm:$0xff]
        %v4270 = vld [vmem:[%s5 + $0x238] sm:$0xff]
        %v4271 = vld [vmem:[%s6] sm:$0x1]
        %v4273 = vperm.slane %v4271, 0
        %v4276 = vsel %vm4080, %v4193, 0
        %v4279 = vsel %vm4080, %v4198, 0
        %4281 = vmatpush.msra.mxu0 %v4214
        %4282 = vmatpush.msra.mxu0 %v4213
        %4283 = vmatpush.msra.mxu0 %v4212
        %4284 = vmatpush.msra.mxu0 %v4211
        %4285 = vmatpush.msra.mxu0 %v4210
        %4286 = vmatpush.msra.mxu0 %v4209
        %4287 = vmatpush.msra.mxu0 %v4208
        %4288 = vmatpush.msra.mxu0 %v4207
        %4289 = vmatpush.msra.mxu0 %v4206
        %4290 = vmatpush.msra.mxu0 %v4205
        %4291 = vmatpush.msra.mxu0 %v4204
        %4292 = vmatpush.msra.mxu0 %v4203
        %4293 = vmatpush.msra.mxu0 %v4202
        %4294 = vmatpush.msra.mxu0 %v4201
        %4295 = vmatpush.msra.mxu0 %v4200
        %4296 = vmatpush.msra.mxu0 %v4199
        %4297 = vmatmul.f32.gmra.mxu0 %v4189
        %v4298 = vpop.f32.mrf.mxu0
        %v4299 = vadd.f32 %v4273, %v4298
        %4300 = vmatmul.f32.gmra.mxu0 %v4194
        %v4301 = vpop.f32.mrf.mxu0
        %v4302 = vadd.f32 %v4273, %v4301
        %4303 = vdwg.mxu0
        %4304 = vmatpush.msra.mxu0 %v4230
        %4305 = vmatpush.msra.mxu0 %v4229
        %4306 = vmatpush.msra.mxu0 %v4228
        %4307 = vmatpush.msra.mxu0 %v4227
        %4308 = vmatpush.msra.mxu0 %v4226
        %4309 = vmatpush.msra.mxu0 %v4225
        %4310 = vmatpush.msra.mxu0 %v4224
        %4311 = vmatpush.msra.mxu0 %v4223
        %4312 = vmatpush.msra.mxu0 %v4222
        %4313 = vmatpush.msra.mxu0 %v4221
        %4314 = vmatpush.msra.mxu0 %v4220
        %4315 = vmatpush.msra.mxu0 %v4219
        %4316 = vmatpush.msra.mxu0 %v4218
        %4317 = vmatpush.msra.mxu0 %v4217
        %4318 = vmatpush.msra.mxu0 %v4216
        %4319 = vmatpush.msra.mxu0 %v4215
        %4320 = vmatmul.f32.gmra.mxu0 %v4190
        %v4321 = vpop.f32.mrf.mxu0
        %v4322 = vadd.f32 %v4299, %v4321
        %4323 = vmatmul.f32.gmra.mxu0 %v4195
        %v4324 = vpop.f32.mrf.mxu0
        %v4325 = vadd.f32 %v4302, %v4324
        %4326 = vdwg.mxu0
        %4327 = vmatpush.msra.mxu0 %v4246
        %4328 = vmatpush.msra.mxu0 %v4245
        %4329 = vmatpush.msra.mxu0 %v4244
        %4330 = vmatpush.msra.mxu0 %v4243
        %4331 = vmatpush.msra.mxu0 %v4242
        %4332 = vmatpush.msra.mxu0 %v4241
        %4333 = vmatpush.msra.mxu0 %v4240
        %4334 = vmatpush.msra.mxu0 %v4239
        %4335 = vmatpush.msra.mxu0 %v4238
        %4336 = vmatpush.msra.mxu0 %v4237
        %4337 = vmatpush.msra.mxu0 %v4236
        %4338 = vmatpush.msra.mxu0 %v4235
        %4339 = vmatpush.msra.mxu0 %v4234
        %4340 = vmatpush.msra.mxu0 %v4233
        %4341 = vmatpush.msra.mxu0 %v4232
        %4342 = vmatpush.msra.mxu0 %v4231
        %4343 = vmatmul.f32.gmra.mxu0 %v4191
        %v4344 = vpop.f32.mrf.mxu0
        %v4345 = vadd.f32 %v4322, %v4344
        %4346 = vmatmul.f32.gmra.mxu0 %v4196
        %v4347 = vpop.f32.mrf.mxu0
        %v4348 = vadd.f32 %v4325, %v4347
        %4349 = vdwg.mxu0
        %4350 = vmatpush.msra.mxu0 %v4262
        %4351 = vmatpush.msra.mxu0 %v4261
        %4352 = vmatpush.msra.mxu0 %v4260
        %4353 = vmatpush.msra.mxu0 %v4259
        %4354 = vmatpush.msra.mxu0 %v4258
        %4355 = vmatpush.msra.mxu0 %v4257
        %4356 = vmatpush.msra.mxu0 %v4256
        %4357 = vmatpush.msra.mxu0 %v4255
        %4358 = vmatpush.msra.mxu0 %v4254
        %4359 = vmatpush.msra.mxu0 %v4253
        %4360 = vmatpush.msra.mxu0 %v4252
        %4361 = vmatpush.msra.mxu0 %v4251
        %4362 = vmatpush.msra.mxu0 %v4250
        %4363 = vmatpush.msra.mxu0 %v4249
        %4364 = vmatpush.msra.mxu0 %v4248
        %4365 = vmatpush.msra.mxu0 %v4247
        %4366 = vmatmul.f32.gmra.mxu0 %v4192
        %v4367 = vpop.f32.mrf.mxu0
        %v4368 = vadd.f32 %v4345, %v4367
        %4369 = vmatmul.f32.gmra.mxu0 %v4197
        %v4370 = vpop.f32.mrf.mxu0
        %v4371 = vadd.f32 %v4348, %v4370
        %4372 = vdwg.mxu0
        %4373 = vmatpush.msra.mxu0 0.0
        %4374 = vmatpush.msra.mxu0 0.0
        %4375 = vmatpush.msra.mxu0 0.0
        %4376 = vmatpush.msra.mxu0 0.0
        %4377 = vmatpush.msra.mxu0 0.0
        %4378 = vmatpush.msra.mxu0 0.0
        %4379 = vmatpush.msra.mxu0 0.0
        %4380 = vmatpush.msra.mxu0 0.0
        %4381 = vmatpush.msra.mxu0 %v4270
        %4382 = vmatpush.msra.mxu0 %v4269
        %4383 = vmatpush.msra.mxu0 %v4268
        %4384 = vmatpush.msra.mxu0 %v4267
        %4385 = vmatpush.msra.mxu0 %v4266
        %4386 = vmatpush.msra.mxu0 %v4265
        %4387 = vmatpush.msra.mxu0 %v4264
        %4388 = vmatpush.msra.mxu0 %v4263
        %4389 = vmatmul.f32.gmra.mxu0 %v4276
        %v4390 = vpop.f32.mrf.mxu0
        %v4391 = vadd.f32 %v4368, %v4390
        %4392 = vmatmul.f32.gmra.mxu0 %v4279
        %v4393 = vpop.f32.mrf.mxu0
        %v4394 = vadd.f32 %v4371, %v4393
        %4395 = vdwg.mxu0
        %v4396 = vmax.f32 %v4391, 0.0
        %v4397 = vmax.f32 %v4394, 0.0
        %4398 = vst [vmem:[%s359] sm:$0xff] %v4396
        %4399 = vst [vmem:[%s359 + $0x8] sm:$0xff] %v4397
        %s4400 = sand.u32 %s227, 1
        %s4401 = scalar_lea.sflag [#allocation7], %s4400
        %s4402 = sand.u32 %s227, 1
        %s4403 = smul.addr %s4402, 16
        %s4404 = scalar_lea.vmem [#allocation10], %s4403
        // Predicated region
        $region65: #{cnn_model_forward.1} parent=55 // pred_check
          %p4405 = pneg %p237
        $region66: #{cnn_model_forward.1} parent=55 // pred_check_branch
          %4407 = sbr.rel (%p4405) target = $region68
        $region67: #{cnn_model_forward.1} parent=55 // pred_region
          %4409 = vsyncadd %s4401, 0
          %s4410 = smul.addr %s25, 2
          %s4411 = smul.addr %s4410, 8
          %s4412 = scalar_lea.hbm %s9, %s4411
          %s4413 = sshll.u32 %s4404, 4
          %s4414 = int_to_ptr.vmem [resolvable:$true] %s4413
          %s4415 = sshll.u32 %s4412, 4
          %s4416 = int_to_ptr.hbm [resolvable:$true] %s4415
          %4421 = dma.vmem_to_hbm [thread:$0]  %s4414, 256, %s4416, %s4401, 128, 128, 8
        $region68: #{cnn_model_forward.1} parent=55 // pred_fallthru
          _
      $region56: #{cnn_model_forward.1} parent=5 // pred_fallthru
        _
      %p4422 = scmp.le.s32.totalorder 2, %s20
      // Predicated region
      $region69: #{cnn_model_forward.1} parent=5 // pred_check
        %p4423 = pneg %p4422
      $region70: #{cnn_model_forward.1} parent=5 // pred_check_branch
        %4425 = sbr.rel (%p4423) target = $region72
      $region71: #{cnn_model_forward.1} parent=5 // pred_region
        %s4426 = ssub.s32 %s20, 2
        // Predicated region
        $region73: #{cnn_model_forward.1} parent=71 // pred_check
          %p4427 = pneg %p243
        $region74: #{cnn_model_forward.1} parent=71 // pred_check_branch
          %4429 = sbr.rel (%p4427) target = $region76
        $region75: #{cnn_model_forward.1} parent=71 // pred_region
          %s4430 = sand.u32 %s228, 1
          %s4431 = scalar_lea.sflag [#allocation7], %s4430
          %s4432 = sand.u32 %s228, 1
          %s4433 = smul.addr %s4432, 16
          %s4434 = scalar_lea.vmem [#allocation10], %s4433
          %4436 = dma.done %s4431, 256
        $region76: #{cnn_model_forward.1} parent=71 // pred_fallthru
          _
      $region72: #{cnn_model_forward.1} parent=5 // pred_fallthru
        _
    $region6: #{cnn_model_forward.1} parent=1 // loop_footer
      %s24 = sadd.s32 1, %s20
    $region7: #{cnn_model_forward.1} parent=1 // loop_footer_branch
      %19 = sbr.rel target = $region3
    $region8: #{cnn_model_forward.1} parent=1 // loop_exit
      _
    %4437 = vsyncpa [#allocation6], 1
    %s4438 = scalar_lea.sflag [#allocation6], 1
    %4439 = vsyncpa %s4438, 1
    %4440 = vsyncpa [#allocation9], 1
    %4441 = vsyncpa [#allocation7], 1
    %s4442 = scalar_lea.sflag [#allocation7], 1
    %4443 = vsyncpa %s4442, 1

</llo_original>
